<compile_context>
chip_gen: v7x
topology: tpu7x:2x2x1
jax: 0.10.0
libtpu: 0.0.40
codegen_flags: <defaults>
</compile_context>

<pallas_src>
import functools

import jax
import jax.numpy as jnp
from jax.experimental import pallas as pl
from jax.experimental.pallas import tpu as pltpu

LANES = 128


def _round_up(x, m):
    return (x + m - 1) // m * m


def _make_fused_kernel(H, W, C1, CP, compute_dtype):
    def kernel(x_ref, w1_ref, b1_ref, w2_ref, b2_ref, o_ref, mid_ref):
        # x_ref  : (1, H+2, W+2, C1)   spatially padded input, one batch sample (f32)
        # w1_ref : (9*C1, CP)          layer-1 im2col weights, Cout padded to CP
        # b1_ref : (1, CP)             layer-1 bias (f32, padded)
        # w2_ref : (3, 3, CP, CP)      layer-2 weights, Cin/Cout padded to CP
        # b2_ref : (1, CP)             layer-2 bias (f32, padded)
        # o_ref  : (1, H, W, CP)       lane-dense output tile (padded channels)
        # mid_ref: (H+2, W+2, CP) f32  VMEM scratch: padded layer-1 activation

        # ---------------- layer 1: im2col -> one MXU matmul (K = 9*C1) -------
        x = x_ref[0]                                           # (H+2, W+2, C1)
        cols = []
        for kh in range(3):
            for kw in range(3):
                cols.append(x[kh:kh + H, kw:kw + W, :].reshape(H * W, C1))
        patches = jnp.concatenate(cols, axis=-1)               # (H*W, 9*C1)
        acc1 = jnp.dot(patches.astype(compute_dtype), w1_ref[...],
                       preferred_element_type=jnp.float32)     # (H*W, CP)
        h1 = jnp.maximum(acc1 + b1_ref[0], 0.0)                # f32 epilogue

        # Keep the layer-1 activation (with its zero halo) resident in VMEM —
        # the intermediate never touches HBM.
        mid_ref[...] = jnp.zeros_like(mid_ref)
        mid_ref[1:H + 1, 1:W + 1, :] = h1.reshape(H, W, CP)

        # ---------------- layer 2: nine lane-dense taps (K = N = CP) ---------
        acc2 = jnp.zeros((H * W, CP), jnp.float32)
        for kh in range(3):
            for kw in range(3):
                tap = mid_ref[kh:kh + H, kw:kw + W, :].astype(compute_dtype)
                acc2 = acc2 + jnp.dot(tap.reshape(H * W, CP), w2_ref[kh, kw],
                                      preferred_element_type=jnp.float32)
        out = jnp.maximum(acc2 + b2_ref[0], 0.0)               # f32 epilogue
        o_ref[0] = out.reshape(H, W, CP).astype(o_ref.dtype)

    return kernel


@functools.partial(jax.jit, static_argnames=("compute_dtype",))
def conv_relu2_forward(x_nchw, params, compute_dtype=jnp.bfloat16):
    """ConvRelu2.forward. Input/output are NCHW (matches the PyTorch module)."""
    (w1, b1), (w2, b2) = params
    N, C1, H, W = x_nchw.shape
    C2 = w1.shape[-1]
    CP = _round_up(max(C2, LANES), LANES)      # lane-dense channel padding

    # NCHW -> NHWC + 'same' spatial pad: tiny glue (input is a few KiB here);
    # the conv math itself lives in the kernel.
    # TODO(synk): fold the transpose/pad into the kernel read path (or accept
    # NHWC at the API) for large activations where this becomes an HBM rewrite.
    x = jnp.transpose(x_nchw, (0, 2, 3, 1))
    x = jnp.pad(x, ((0, 0), (1, 1), (1, 1), (0, 0)))

    # Weight/bias prep (tiny, one-time): layer-1 weights as an im2col matrix
    # (9*C1, CP); layer-2 weights padded to (3,3,CP,CP). Padded channels stay
    # exactly zero through both layers, so slicing them off at the end is exact.
    w1_mat = jnp.pad(w1.reshape(9 * C1, C2), ((0, 0), (0, CP - C2)))
    w2_pad = jnp.pad(w2, ((0, 0), (0, 0), (0, CP - C2), (0, CP - C2)))
    b1_p = jnp.pad(b1, (0, CP - C2)).astype(jnp.float32).reshape(1, CP)
    b2_p = jnp.pad(b2, (0, CP - C2)).astype(jnp.float32).reshape(1, CP)

    kernel = _make_fused_kernel(H, W, C1, CP, compute_dtype)

    out_padded = pl.pallas_call(
        kernel,
        out_shape=jax.ShapeDtypeStruct((N, H, W, CP), jnp.float32),
        grid_spec=pltpu.PrefetchScalarGridSpec(
            num_scalar_prefetch=0,
            # TODO(synk): add an H-strip grid axis with a 2-row halo for images
            # whose full padded tile + scratch would not fit VMEM (v7x: 64 MiB).
            grid=(N,),
            in_specs=[
                pl.BlockSpec((1, H + 2, W + 2, C1), lambda n: (n, 0, 0, 0)),
                pl.BlockSpec((9 * C1, CP), lambda n: (0, 0)),
                pl.BlockSpec((1, CP), lambda n: (0, 0)),
                pl.BlockSpec((3, 3, CP, CP), lambda n: (0, 0, 0, 0)),
                pl.BlockSpec((1, CP), lambda n: (0, 0)),
            ],
            out_specs=pl.BlockSpec((1, H, W, CP), lambda n: (n, 0, 0, 0)),
            scratch_shapes=[pltpu.VMEM((H + 2, W + 2, CP), jnp.float32)],
        ),
        compiler_params=pltpu.CompilerParams(
            dimension_semantics=("parallel",)),
    )(x, w1_mat.astype(compute_dtype), b1_p,
      w2_pad.astype(compute_dtype), b2_p)

    # Drop the channel padding, back to the module's NCHW layout.
    return jnp.transpose(out_padded[..., :C2], (0, 3, 1, 2))


def init_params(key, c_in, c_out, dtype=jnp.float32):
    """Deterministic synthetic init (PyTorch-style uniform fan-in bound)."""
    def one_layer(k, cin, cout):
        k_w, k_b = jax.random.split(k)
        fan_in = cin * 3 * 3
        bound = 1.0 / (fan_in ** 0.5)
        w = jax.random.uniform(k_w, (3, 3, cin, cout), dtype,
                               minval=-bound, maxval=bound)
        b = jax.random.uniform(k_b, (cout,), dtype,
                               minval=-bound, maxval=bound)
        return w, b

    k1, k2 = jax.random.split(key)
    return (one_layer(k1, c_in, c_out), one_layer(k2, c_out, c_out))


def _reference_forward(x_nchw, params, compute_dtype=jnp.bfloat16):
    """Pure-JAX reference (lax conv) with matching matmul-input precision."""
    out = x_nchw
    for (w, b) in params:
        # w is (kh, kw, Cin, Cout) -> lax wants (Cout, Cin, kh, kw) for OIHW.
        w_oihw = jnp.transpose(w, (3, 2, 0, 1)).astype(compute_dtype)
        out = jax.lax.conv_general_dilated(
            out.astype(compute_dtype), w_oihw, window_strides=(1, 1),
            padding=((1, 1), (1, 1)),
            dimension_numbers=("NCHW", "OIHW", "NCHW"),
            preferred_element_type=jnp.float32)
        out = jnp.maximum(out + b.reshape(1, -1, 1, 1).astype(jnp.float32), 0.0)
    return out


if __name__ == "__main__":
    key = jax.random.PRNGKey(0)
    k_x, k_p = jax.random.split(key)

    N, C_in, H, W = 2, 4, 16, 16
    C_out = 8

    x = jax.random.normal(k_x, (N, C_in, H, W), jnp.float32)
    params = init_params(k_p, C_in, C_out)

    # Exact-math sanity check (f32 operands end to end).
    out_f32 = jax.block_until_ready(
        conv_relu2_forward(x, params, compute_dtype=jnp.float32))
    ref_f32 = jax.block_until_ready(_reference_forward(x, params, jnp.float32))
    assert out_f32.shape == (N, C_out, H, W), out_f32.shape
    assert jnp.allclose(out_f32, ref_f32, atol=1e-4, rtol=1e-4), \
        float(jnp.max(jnp.abs(out_f32 - ref_f32)))

    # Default fast path: bf16 MXU operands, f32 accumulation / epilogue.
    out = jax.block_until_ready(conv_relu2_forward(x, params))
    ref = jax.block_until_ready(_reference_forward(x, params, jnp.bfloat16))
    assert out.shape == (N, C_out, H, W), out.shape
    assert jnp.allclose(out, ref, atol=2e-2, rtol=2e-2), \
        float(jnp.max(jnp.abs(out - ref)))

    print("KERNEL_OK")
</pallas_src>

<mosaic_0001>
module attributes {stable_mosaic.version = 11 : i64} {
  func.func @kernel(%arg0: i32, %arg1: memref<1x18x18x4xf32, #tpu.memory_space<vmem>>, %arg2: memref<36x128xf32, #tpu.memory_space<vmem>>, %arg3: memref<1x128xf32, #tpu.memory_space<vmem>>, %arg4: memref<3x3x128x128xf32, #tpu.memory_space<vmem>>, %arg5: memref<1x128xf32, #tpu.memory_space<vmem>>, %arg6: memref<1x16x16x128xf32, #tpu.memory_space<vmem>>, %arg7: memref<18x18x128xf32, #tpu.memory_space<vmem>>) attributes {dimension_semantics = [#tpu.dimension_semantics<parallel>], iteration_bounds = array<i64: 2>, scalar_prefetch = 0 : i64, scratch_operands = 1 : i64, tpu.core_type = #tpu.core_type<tc>, window_params = [{transform_indices = @transform_0, window_bounds = array<i64: 1, 18, 18, 4>}, {pipeline_mode = #tpu.pipeline_mode<synchronous>, transform_indices = @transform_1, window_bounds = array<i64: 36, 128>}, {pipeline_mode = #tpu.pipeline_mode<synchronous>, transform_indices = @transform_2, window_bounds = array<i64: 1, 128>}, {pipeline_mode = #tpu.pipeline_mode<synchronous>, transform_indices = @transform_3, window_bounds = array<i64: 3, 3, 128, 128>}, {pipeline_mode = #tpu.pipeline_mode<synchronous>, transform_indices = @transform_4, window_bounds = array<i64: 1, 128>}, {transform_indices = @transform_5, window_bounds = array<i64: 1, 16, 16, 128>}]} {
    %c0 = arith.constant 0 : index
    %c0_0 = arith.constant 0 : index
    %c0_1 = arith.constant 0 : index
    %c0_2 = arith.constant 0 : index
    %0 = vector.load %arg1[%c0, %c0_0, %c0_1, %c0_2] : memref<1x18x18x4xf32, #tpu.memory_space<vmem>>, vector<1x18x18x4xf32>
    %1 = vector.shape_cast %0 : vector<1x18x18x4xf32> to vector<18x18x4xf32>
    %2 = vector.extract_strided_slice %1 {offsets = [0, 0, 0], sizes = [16, 16, 4], strides = [1, 1, 1]} : vector<18x18x4xf32> to vector<16x16x4xf32>
    %3 = vector.shape_cast %2 : vector<16x16x4xf32> to vector<256x4xf32>
    %4 = vector.extract_strided_slice %1 {offsets = [0, 1, 0], sizes = [16, 16, 4], strides = [1, 1, 1]} : vector<18x18x4xf32> to vector<16x16x4xf32>
    %5 = vector.shape_cast %4 : vector<16x16x4xf32> to vector<256x4xf32>
    %6 = vector.extract_strided_slice %1 {offsets = [0, 2, 0], sizes = [16, 16, 4], strides = [1, 1, 1]} : vector<18x18x4xf32> to vector<16x16x4xf32>
    %7 = vector.shape_cast %6 : vector<16x16x4xf32> to vector<256x4xf32>
    %8 = vector.extract_strided_slice %1 {offsets = [1, 0, 0], sizes = [16, 16, 4], strides = [1, 1, 1]} : vector<18x18x4xf32> to vector<16x16x4xf32>
    %9 = vector.shape_cast %8 : vector<16x16x4xf32> to vector<256x4xf32>
    %10 = vector.extract_strided_slice %1 {offsets = [1, 1, 0], sizes = [16, 16, 4], strides = [1, 1, 1]} : vector<18x18x4xf32> to vector<16x16x4xf32>
    %11 = vector.shape_cast %10 : vector<16x16x4xf32> to vector<256x4xf32>
    %12 = vector.extract_strided_slice %1 {offsets = [1, 2, 0], sizes = [16, 16, 4], strides = [1, 1, 1]} : vector<18x18x4xf32> to vector<16x16x4xf32>
    %13 = vector.shape_cast %12 : vector<16x16x4xf32> to vector<256x4xf32>
    %14 = vector.extract_strided_slice %1 {offsets = [2, 0, 0], sizes = [16, 16, 4], strides = [1, 1, 1]} : vector<18x18x4xf32> to vector<16x16x4xf32>
    %15 = vector.shape_cast %14 : vector<16x16x4xf32> to vector<256x4xf32>
    %16 = vector.extract_strided_slice %1 {offsets = [2, 1, 0], sizes = [16, 16, 4], strides = [1, 1, 1]} : vector<18x18x4xf32> to vector<16x16x4xf32>
    %17 = vector.shape_cast %16 : vector<16x16x4xf32> to vector<256x4xf32>
    %18 = vector.extract_strided_slice %1 {offsets = [2, 2, 0], sizes = [16, 16, 4], strides = [1, 1, 1]} : vector<18x18x4xf32> to vector<16x16x4xf32>
    %19 = vector.shape_cast %18 : vector<16x16x4xf32> to vector<256x4xf32>
    %20 = tpu.concatenate %3, %5, %7, %9, %11, %13, %15, %17, %19 in 1 : vector<256x4xf32>, vector<256x4xf32>, vector<256x4xf32>, vector<256x4xf32>, vector<256x4xf32>, vector<256x4xf32>, vector<256x4xf32>, vector<256x4xf32>, vector<256x4xf32> -> vector<256x36xf32>
    %c0_3 = arith.constant 0 : index
    %c0_4 = arith.constant 0 : index
    %21 = vector.load %arg2[%c0_3, %c0_4] : memref<36x128xf32, #tpu.memory_space<vmem>>, vector<36x128xf32>
    %cst = arith.constant dense<0.000000e+00> : vector<256x128xf32>
    %22 = tpu.matmul %20, %21, %cst {dimension_numbers = #tpu.dot_dimension_numbers<[1], [0], [0], [1], [0, 0, 1, 1], [], []>} : vector<256x36xf32>, vector<36x128xf32>, vector<256x128xf32> -> vector<256x128xf32>
    %c0_5 = arith.constant 0 : index
    %c0_6 = arith.constant 0 : index
    %23 = vector.load %arg3[%c0_5, %c0_6] : memref<1x128xf32, #tpu.memory_space<vmem>>, vector<1x128xf32>
    %24 = vector.shape_cast %23 : vector<1x128xf32> to vector<128xf32>
    %25 = vector.shape_cast %24 : vector<128xf32> to vector<1x128xf32>
    %26 = vector.broadcast %25 : vector<1x128xf32> to vector<256x128xf32>
    %27 = arith.addf %22, %26 : vector<256x128xf32>
    %cst_7 = arith.constant 0.000000e+00 : f32
    %28 = vector.broadcast %cst_7 : f32 to vector<256x128xf32>
    %29 = arith.maximumf %27, %28 : vector<256x128xf32>
    %cst_8 = arith.constant 0.000000e+00 : f32
    %30 = vector.broadcast %cst_8 : f32 to vector<18x18x128xf32>
    %c0_9 = arith.constant 0 : index
    %c0_10 = arith.constant 0 : index
    %c0_11 = arith.constant 0 : index
    %31 = vector.load %arg7[%c0_9, %c0_10, %c0_11] : memref<18x18x128xf32, #tpu.memory_space<vmem>>, vector<18x18x128xf32>
    tpu.vector_store %arg7[%c0_9, %c0_10, %c0_11], %30 {strides = array<i32>} : memref<18x18x128xf32, #tpu.memory_space<vmem>>, vector<18x18x128xf32>,
    %32 = vector.shape_cast %29 : vector<256x128xf32> to vector<16x16x128xf32>
    %c1 = arith.constant 1 : index
    %c1_12 = arith.constant 1 : index
    %c0_13 = arith.constant 0 : index
    %33 = vector.load %arg7[%c1, %c1_12, %c0_13] : memref<18x18x128xf32, #tpu.memory_space<vmem>>, vector<16x16x128xf32>
    tpu.vector_store %arg7[%c1, %c1_12, %c0_13], %32 {strides = array<i32>} : memref<18x18x128xf32, #tpu.memory_space<vmem>>, vector<16x16x128xf32>,
    %cst_14 = arith.constant 0.000000e+00 : f32
    %34 = vector.broadcast %cst_14 : f32 to vector<256x128xf32>
    %c0_15 = arith.constant 0 : index
    %c0_16 = arith.constant 0 : index
    %c0_17 = arith.constant 0 : index
    %35 = vector.load %arg7[%c0_15, %c0_16, %c0_17] : memref<18x18x128xf32, #tpu.memory_space<vmem>>, vector<16x16x128xf32>
    %36 = vector.shape_cast %35 : vector<16x16x128xf32> to vector<256x128xf32>
    %c0_18 = arith.constant 0 : index
    %c0_19 = arith.constant 0 : index
    %c0_20 = arith.constant 0 : index
    %c0_21 = arith.constant 0 : index
    %37 = vector.load %arg4[%c0_18, %c0_19, %c0_20, %c0_21] : memref<3x3x128x128xf32, #tpu.memory_space<vmem>>, vector<1x1x128x128xf32>
    %38 = vector.shape_cast %37 : vector<1x1x128x128xf32> to vector<128x128xf32>
    %cst_22 = arith.constant dense<0.000000e+00> : vector<256x128xf32>
    %39 = tpu.matmul %36, %38, %cst_22 {dimension_numbers = #tpu.dot_dimension_numbers<[1], [0], [0], [1], [0, 0, 1, 1], [], []>} : vector<256x128xf32>, vector<128x128xf32>, vector<256x128xf32> -> vector<256x128xf32>
    %40 = arith.addf %34, %39 : vector<256x128xf32>
    %c0_23 = arith.constant 0 : index
    %c1_24 = arith.constant 1 : index
    %c0_25 = arith.constant 0 : index
    %41 = vector.load %arg7[%c0_23, %c1_24, %c0_25] : memref<18x18x128xf32, #tpu.memory_space<vmem>>, vector<16x16x128xf32>
    %42 = vector.shape_cast %41 : vector<16x16x128xf32> to vector<256x128xf32>
    %c0_26 = arith.constant 0 : index
    %c1_27 = arith.constant 1 : index
    %c0_28 = arith.constant 0 : index
    %c0_29 = arith.constant 0 : index
    %43 = vector.load %arg4[%c0_26, %c1_27, %c0_28, %c0_29] : memref<3x3x128x128xf32, #tpu.memory_space<vmem>>, vector<1x1x128x128xf32>
    %44 = vector.shape_cast %43 : vector<1x1x128x128xf32> to vector<128x128xf32>
    %cst_30 = arith.constant dense<0.000000e+00> : vector<256x128xf32>
    %45 = tpu.matmul %42, %44, %cst_30 {dimension_numbers = #tpu.dot_dimension_numbers<[1], [0], [0], [1], [0, 0, 1, 1], [], []>} : vector<256x128xf32>, vector<128x128xf32>, vector<256x128xf32> -> vector<256x128xf32>
    %46 = arith.addf %40, %45 : vector<256x128xf32>
    %c0_31 = arith.constant 0 : index
    %c2 = arith.constant 2 : index
    %c0_32 = arith.constant 0 : index
    %47 = vector.load %arg7[%c0_31, %c2, %c0_32] : memref<18x18x128xf32, #tpu.memory_space<vmem>>, vector<16x16x128xf32>
    %48 = vector.shape_cast %47 : vector<16x16x128xf32> to vector<256x128xf32>
    %c0_33 = arith.constant 0 : index
    %c2_34 = arith.constant 2 : index
    %c0_35 = arith.constant 0 : index
    %c0_36 = arith.constant 0 : index
    %49 = vector.load %arg4[%c0_33, %c2_34, %c0_35, %c0_36] : memref<3x3x128x128xf32, #tpu.memory_space<vmem>>, vector<1x1x128x128xf32>
    %50 = vector.shape_cast %49 : vector<1x1x128x128xf32> to vector<128x128xf32>
    %cst_37 = arith.constant dense<0.000000e+00> : vector<256x128xf32>
    %51 = tpu.matmul %48, %50, %cst_37 {dimension_numbers = #tpu.dot_dimension_numbers<[1], [0], [0], [1], [0, 0, 1, 1], [], []>} : vector<256x128xf32>, vector<128x128xf32>, vector<256x128xf32> -> vector<256x128xf32>
    %52 = arith.addf %46, %51 : vector<256x128xf32>
    %c1_38 = arith.constant 1 : index
    %c0_39 = arith.constant 0 : index
    %c0_40 = arith.constant 0 : index
    %53 = vector.load %arg7[%c1_38, %c0_39, %c0_40] : memref<18x18x128xf32, #tpu.memory_space<vmem>>, vector<16x16x128xf32>
    %54 = vector.shape_cast %53 : vector<16x16x128xf32> to vector<256x128xf32>
    %c1_41 = arith.constant 1 : index
    %c0_42 = arith.constant 0 : index
    %c0_43 = arith.constant 0 : index
    %c0_44 = arith.constant 0 : index
    %55 = vector.load %arg4[%c1_41, %c0_42, %c0_43, %c0_44] : memref<3x3x128x128xf32, #tpu.memory_space<vmem>>, vector<1x1x128x128xf32>
    %56 = vector.shape_cast %55 : vector<1x1x128x128xf32> to vector<128x128xf32>
    %cst_45 = arith.constant dense<0.000000e+00> : vector<256x128xf32>
    %57 = tpu.matmul %54, %56, %cst_45 {dimension_numbers = #tpu.dot_dimension_numbers<[1], [0], [0], [1], [0, 0, 1, 1], [], []>} : vector<256x128xf32>, vector<128x128xf32>, vector<256x128xf32> -> vector<256x128xf32>
    %58 = arith.addf %52, %57 : vector<256x128xf32>
    %c1_46 = arith.constant 1 : index
    %c1_47 = arith.constant 1 : index
    %c0_48 = arith.constant 0 : index
    %59 = vector.load %arg7[%c1_46, %c1_47, %c0_48] : memref<18x18x128xf32, #tpu.memory_space<vmem>>, vector<16x16x128xf32>
    %60 = vector.shape_cast %59 : vector<16x16x128xf32> to vector<256x128xf32>
    %c1_49 = arith.constant 1 : index
    %c1_50 = arith.constant 1 : index
    %c0_51 = arith.constant 0 : index
    %c0_52 = arith.constant 0 : index
    %61 = vector.load %arg4[%c1_49, %c1_50, %c0_51, %c0_52] : memref<3x3x128x128xf32, #tpu.memory_space<vmem>>, vector<1x1x128x128xf32>
    %62 = vector.shape_cast %61 : vector<1x1x128x128xf32> to vector<128x128xf32>
    %cst_53 = arith.constant dense<0.000000e+00> : vector<256x128xf32>
    %63 = tpu.matmul %60, %62, %cst_53 {dimension_numbers = #tpu.dot_dimension_numbers<[1], [0], [0], [1], [0, 0, 1, 1], [], []>} : vector<256x128xf32>, vector<128x128xf32>, vector<256x128xf32> -> vector<256x128xf32>
    %64 = arith.addf %58, %63 : vector<256x128xf32>
    %c1_54 = arith.constant 1 : index
    %c2_55 = arith.constant 2 : index
    %c0_56 = arith.constant 0 : index
    %65 = vector.load %arg7[%c1_54, %c2_55, %c0_56] : memref<18x18x128xf32, #tpu.memory_space<vmem>>, vector<16x16x128xf32>
    %66 = vector.shape_cast %65 : vector<16x16x128xf32> to vector<256x128xf32>
    %c1_57 = arith.constant 1 : index
    %c2_58 = arith.constant 2 : index
    %c0_59 = arith.constant 0 : index
    %c0_60 = arith.constant 0 : index
    %67 = vector.load %arg4[%c1_57, %c2_58, %c0_59, %c0_60] : memref<3x3x128x128xf32, #tpu.memory_space<vmem>>, vector<1x1x128x128xf32>
    %68 = vector.shape_cast %67 : vector<1x1x128x128xf32> to vector<128x128xf32>
    %cst_61 = arith.constant dense<0.000000e+00> : vector<256x128xf32>
    %69 = tpu.matmul %66, %68, %cst_61 {dimension_numbers = #tpu.dot_dimension_numbers<[1], [0], [0], [1], [0, 0, 1, 1], [], []>} : vector<256x128xf32>, vector<128x128xf32>, vector<256x128xf32> -> vector<256x128xf32>
    %70 = arith.addf %64, %69 : vector<256x128xf32>
    %c2_62 = arith.constant 2 : index
    %c0_63 = arith.constant 0 : index
    %c0_64 = arith.constant 0 : index
    %71 = vector.load %arg7[%c2_62, %c0_63, %c0_64] : memref<18x18x128xf32, #tpu.memory_space<vmem>>, vector<16x16x128xf32>
    %72 = vector.shape_cast %71 : vector<16x16x128xf32> to vector<256x128xf32>
    %c2_65 = arith.constant 2 : index
    %c0_66 = arith.constant 0 : index
    %c0_67 = arith.constant 0 : index
    %c0_68 = arith.constant 0 : index
    %73 = vector.load %arg4[%c2_65, %c0_66, %c0_67, %c0_68] : memref<3x3x128x128xf32, #tpu.memory_space<vmem>>, vector<1x1x128x128xf32>
    %74 = vector.shape_cast %73 : vector<1x1x128x128xf32> to vector<128x128xf32>
    %cst_69 = arith.constant dense<0.000000e+00> : vector<256x128xf32>
    %75 = tpu.matmul %72, %74, %cst_69 {dimension_numbers = #tpu.dot_dimension_numbers<[1], [0], [0], [1], [0, 0, 1, 1], [], []>} : vector<256x128xf32>, vector<128x128xf32>, vector<256x128xf32> -> vector<256x128xf32>
    %76 = arith.addf %70, %75 : vector<256x128xf32>
    %c2_70 = arith.constant 2 : index
    %c1_71 = arith.constant 1 : index
    %c0_72 = arith.constant 0 : index
    %77 = vector.load %arg7[%c2_70, %c1_71, %c0_72] : memref<18x18x128xf32, #tpu.memory_space<vmem>>, vector<16x16x128xf32>
    %78 = vector.shape_cast %77 : vector<16x16x128xf32> to vector<256x128xf32>
    %c2_73 = arith.constant 2 : index
    %c1_74 = arith.constant 1 : index
    %c0_75 = arith.constant 0 : index
    %c0_76 = arith.constant 0 : index
    %79 = vector.load %arg4[%c2_73, %c1_74, %c0_75, %c0_76] : memref<3x3x128x128xf32, #tpu.memory_space<vmem>>, vector<1x1x128x128xf32>
    %80 = vector.shape_cast %79 : vector<1x1x128x128xf32> to vector<128x128xf32>
    %cst_77 = arith.constant dense<0.000000e+00> : vector<256x128xf32>
    %81 = tpu.matmul %78, %80, %cst_77 {dimension_numbers = #tpu.dot_dimension_numbers<[1], [0], [0], [1], [0, 0, 1, 1], [], []>} : vector<256x128xf32>, vector<128x128xf32>, vector<256x128xf32> -> vector<256x128xf32>
    %82 = arith.addf %76, %81 : vector<256x128xf32>
    %c2_78 = arith.constant 2 : index
    %c2_79 = arith.constant 2 : index
    %c0_80 = arith.constant 0 : index
    %83 = vector.load %arg7[%c2_78, %c2_79, %c0_80] : memref<18x18x128xf32, #tpu.memory_space<vmem>>, vector<16x16x128xf32>
    %84 = vector.shape_cast %83 : vector<16x16x128xf32> to vector<256x128xf32>
    %c2_81 = arith.constant 2 : index
    %c2_82 = arith.constant 2 : index
    %c0_83 = arith.constant 0 : index
    %c0_84 = arith.constant 0 : index
    %85 = vector.load %arg4[%c2_81, %c2_82, %c0_83, %c0_84] : memref<3x3x128x128xf32, #tpu.memory_space<vmem>>, vector<1x1x128x128xf32>
    %86 = vector.shape_cast %85 : vector<1x1x128x128xf32> to vector<128x128xf32>
    %cst_85 = arith.constant dense<0.000000e+00> : vector<256x128xf32>
    %87 = tpu.matmul %84, %86, %cst_85 {dimension_numbers = #tpu.dot_dimension_numbers<[1], [0], [0], [1], [0, 0, 1, 1], [], []>} : vector<256x128xf32>, vector<128x128xf32>, vector<256x128xf32> -> vector<256x128xf32>
    %88 = arith.addf %82, %87 : vector<256x128xf32>
    %c0_86 = arith.constant 0 : index
    %c0_87 = arith.constant 0 : index
    %89 = vector.load %arg5[%c0_86, %c0_87] : memref<1x128xf32, #tpu.memory_space<vmem>>, vector<1x128xf32>
    %90 = vector.shape_cast %89 : vector<1x128xf32> to vector<128xf32>
    %91 = vector.shape_cast %90 : vector<128xf32> to vector<1x128xf32>
    %92 = vector.broadcast %91 : vector<1x128xf32> to vector<256x128xf32>
    %93 = arith.addf %88, %92 : vector<256x128xf32>
    %cst_88 = arith.constant 0.000000e+00 : f32
    %94 = vector.broadcast %cst_88 : f32 to vector<256x128xf32>
    %95 = arith.maximumf %93, %94 : vector<256x128xf32>
    %96 = vector.shape_cast %95 : vector<256x128xf32> to vector<16x16x128xf32>
    %c0_89 = arith.constant 0 : index
    %c0_90 = arith.constant 0 : index
    %c0_91 = arith.constant 0 : index
    %c0_92 = arith.constant 0 : index
    %97 = vector.load %arg6[%c0_89, %c0_90, %c0_91, %c0_92] : memref<1x16x16x128xf32, #tpu.memory_space<vmem>>, vector<1x16x16x128xf32>
    %98 = vector.shape_cast %97 : vector<1x16x16x128xf32> to vector<16x16x128xf32>
    %99 = vector.shape_cast %96 : vector<16x16x128xf32> to vector<1x16x16x128xf32>
    tpu.vector_store %arg6[%c0_89, %c0_90, %c0_91, %c0_92], %99 {strides = array<i32>} : memref<1x16x16x128xf32, #tpu.memory_space<vmem>>, vector<1x16x16x128xf32>,
    return
  }
  func.func @transform_0(%arg0: i32) -> (i32, i32, i32, i32) {
    %c0_i32 = arith.constant 0 : i32
    %c0_i32_0 = arith.constant 0 : i32
    %c0_i32_1 = arith.constant 0 : i32
    %c0_i32_2 = arith.constant 0 : i32
    return %arg0, %c0_i32, %c0_i32_0, %c0_i32_1 : i32, i32, i32, i32
  }
  func.func @transform_1(%arg0: i32) -> (i32, i32) {
    %c0_i32 = arith.constant 0 : i32
    %c0_i32_0 = arith.constant 0 : i32
    %c0_i32_1 = arith.constant 0 : i32
    return %c0_i32, %c0_i32_0 : i32, i32
  }
  func.func @transform_2(%arg0: i32) -> (i32, i32) {
    %c0_i32 = arith.constant 0 : i32
    %c0_i32_0 = arith.constant 0 : i32
    %c0_i32_1 = arith.constant 0 : i32
    return %c0_i32, %c0_i32_0 : i32, i32
  }
  func.func @transform_3(%arg0: i32) -> (i32, i32, i32, i32) {
    %c0_i32 = arith.constant 0 : i32
    %c0_i32_0 = arith.constant 0 : i32
    %c0_i32_1 = arith.constant 0 : i32
    %c0_i32_2 = arith.constant 0 : i32
    %c0_i32_3 = arith.constant 0 : i32
    return %c0_i32, %c0_i32_0, %c0_i32_1, %c0_i32_2 : i32, i32, i32, i32
  }
  func.func @transform_4(%arg0: i32) -> (i32, i32) {
    %c0_i32 = arith.constant 0 : i32
    %c0_i32_0 = arith.constant 0 : i32
    %c0_i32_1 = arith.constant 0 : i32
    return %c0_i32, %c0_i32_0 : i32, i32
  }
  func.func @transform_5(%arg0: i32) -> (i32, i32, i32, i32) {
    %c0_i32 = arith.constant 0 : i32
    %c0_i32_0 = arith.constant 0 : i32
    %c0_i32_1 = arith.constant 0 : i32
    %c0_i32_2 = arith.constant 0 : i32
    return %arg0, %c0_i32, %c0_i32_0, %c0_i32_1 : i32, i32, i32, i32
  }
}

</mosaic_0001>

<llo_original>
// kernel: conv_relu2_forward.1
$region0: #{conv_relu2_forward.1}
  #allocation0 [shape = 'u32[]', space=smem, size = 0x4, offset = 0x4, fixed_abs, tag = 'smem constant byte address 0x4 - core index']
  #allocation1 [shape = 'u32[144,128]{1,0:T(1,128)}', space=vmem, size = 0x12000, scoped, tag = 'internal scratch']
  #allocation2 [shape = 'f32[18,18,128]{2,1,0:T(8,128)}', space=vmem, size = 0x36000, scoped, tag = 'scratch operand']
  %s0 = inlined_call_operand.vmem [shape: f32[2,18,18,4], index: 0, kind: input, shape index: {}]
  %s1 = inlined_call_operand.vmem [shape: f32[36,128], index: 1, kind: input, shape index: {}]
  %s2 = inlined_call_operand.vmem [shape: f32[1,128], index: 2, kind: input, shape index: {}]
  %s3 = inlined_call_operand.vmem [shape: f32[3,3,128,128], index: 3, kind: input, shape index: {}]
  %s4 = inlined_call_operand.vmem [shape: f32[1,128], index: 4, kind: input, shape index: {}]
  %s5 = inlined_call_operand.vmem [shape: f32[2,16,16,128], index: 5, kind: output, shape index: {}]
  %s6 = sld [smem:[#allocation0]]
  $region53: #{conv_relu2_forward.1} parent=0
    _
  %s8 = ssub.s32 1, %s6
  %s9 = scalar_select 0, %s8, %s6
  loop: start=0, step=1, limit=4
  $region2: #{conv_relu2_forward.1} parent=0 // loop_pre_header
    _
  $region3: #{conv_relu2_forward.1} parent=0 // loop_header
    %s11 = sphi 0, %s15
    %p12 = scmp.ge.s32.totalorder %s11, 4
    %s21 = sphi 0, %s23
    %s24 = sphi 0, %s21
    %s25 = sphi 0, %s24
    %s41 = sphi 0, %s25
    %s45 = sphi 0, %s45
    %s47 = sphi 0, %s45
    %s48 = sphi 0, %s47
    %s62 = sphi 0, %s48
    %s66 = sphi 0, %s66
    %s68 = sphi 0, %s66
    %s69 = sphi 0, %s68
    %s83 = sphi 0, %s69
    %s87 = sphi 0, %s87
    %s89 = sphi 0, %s87
    %s90 = sphi 0, %s89
    %s104 = sphi 0, %s90
    %s108 = sphi 0, %s108
    %s110 = sphi 0, %s108
    %s111 = sphi 0, %s110
    %s125 = sphi 0, %s111
    %s131 = sphi 0, %s133
    %s134 = sphi 0, %s131
    %s135 = sphi 0, %s134
    %s151 = sphi 0, %s135
  $region4: #{conv_relu2_forward.1} parent=0 // loop_header_branch
    %14 = sbr.rel (%p12) target = $region8
  $region5: #{conv_relu2_forward.1} parent=0 // loop_body
    %s16 = ssub.s32 %s11, 1
    %s17 = ssub.s32 %s11, 2
    %s18 = sadd.s32 %s11, 1
    %s19 = ssub.s32 %s11, %s18
    %p20 = scmp.eq.s32.totalorder %s19, 0
    %s22 = sadd.s32 %s21, 1
    %s23 = scalar_select %p20, %s21, %s22
    %p26 = pneg %p20
    %p27 = scmp.eq.s32.totalorder %s11, 1
    %p28 = por %p26, %p27
    %p29 = scmp.ne.s32.totalorder %s21, %s24
    %p30 = scmp.eq.s32.totalorder %s11, 0
    %p31 = por %p29, %p30
    %p32 = scmp.ne.s32.totalorder %s21, %s24
    %p33 = scmp.eq.s32.totalorder %s16, 1
    %p34 = por %p32, %p33
    %p35 = scmp.ne.s32.totalorder %s24, %s25
    %p36 = scmp.eq.s32.totalorder %s16, 0
    %p37 = por %p35, %p36
    %p38 = scmp.ne.s32.totalorder %s24, %s25
    %p39 = scmp.eq.s32.totalorder %s17, 1
    %p40 = por %p38, %p39
    %p42 = scmp.ne.s32.totalorder %s25, %s41
    %p43 = scmp.eq.s32.totalorder %s17, 0
    %p44 = por %p42, %p43
    %s46 = sadd.s32 %s45, 1
    %p49 = scmp.eq.s32.totalorder %s11, 1
    %p50 = scmp.ne.s32.totalorder %s45, %s47
    %p51 = scmp.eq.s32.totalorder %s11, 0
    %p52 = por %p50, %p51
    %p53 = scmp.ne.s32.totalorder %s45, %s47
    %p54 = scmp.eq.s32.totalorder %s16, 1
    %p55 = por %p53, %p54
    %p56 = scmp.ne.s32.totalorder %s47, %s48
    %p57 = scmp.eq.s32.totalorder %s16, 0
    %p58 = por %p56, %p57
    %p59 = scmp.ne.s32.totalorder %s47, %s48
    %p60 = scmp.eq.s32.totalorder %s17, 1
    %p61 = por %p59, %p60
    %p63 = scmp.ne.s32.totalorder %s48, %s62
    %p64 = scmp.eq.s32.totalorder %s17, 0
    %p65 = por %p63, %p64
    %s67 = sadd.s32 %s66, 1
    %p70 = scmp.eq.s32.totalorder %s11, 1
    %p71 = scmp.ne.s32.totalorder %s66, %s68
    %p72 = scmp.eq.s32.totalorder %s11, 0
    %p73 = por %p71, %p72
    %p74 = scmp.ne.s32.totalorder %s66, %s68
    %p75 = scmp.eq.s32.totalorder %s16, 1
    %p76 = por %p74, %p75
    %p77 = scmp.ne.s32.totalorder %s68, %s69
    %p78 = scmp.eq.s32.totalorder %s16, 0
    %p79 = por %p77, %p78
    %p80 = scmp.ne.s32.totalorder %s68, %s69
    %p81 = scmp.eq.s32.totalorder %s17, 1
    %p82 = por %p80, %p81
    %p84 = scmp.ne.s32.totalorder %s69, %s83
    %p85 = scmp.eq.s32.totalorder %s17, 0
    %p86 = por %p84, %p85
    %s88 = sadd.s32 %s87, 1
    %p91 = scmp.eq.s32.totalorder %s11, 1
    %p92 = scmp.ne.s32.totalorder %s87, %s89
    %p93 = scmp.eq.s32.totalorder %s11, 0
    %p94 = por %p92, %p93
    %p95 = scmp.ne.s32.totalorder %s87, %s89
    %p96 = scmp.eq.s32.totalorder %s16, 1
    %p97 = por %p95, %p96
    %p98 = scmp.ne.s32.totalorder %s89, %s90
    %p99 = scmp.eq.s32.totalorder %s16, 0
    %p100 = por %p98, %p99
    %p101 = scmp.ne.s32.totalorder %s89, %s90
    %p102 = scmp.eq.s32.totalorder %s17, 1
    %p103 = por %p101, %p102
    %p105 = scmp.ne.s32.totalorder %s90, %s104
    %p106 = scmp.eq.s32.totalorder %s17, 0
    %p107 = por %p105, %p106
    %s109 = sadd.s32 %s108, 1
    %p112 = scmp.eq.s32.totalorder %s11, 1
    %p113 = scmp.ne.s32.totalorder %s108, %s110
    %p114 = scmp.eq.s32.totalorder %s11, 0
    %p115 = por %p113, %p114
    %p116 = scmp.ne.s32.totalorder %s108, %s110
    %p117 = scmp.eq.s32.totalorder %s16, 1
    %p118 = por %p116, %p117
    %p119 = scmp.ne.s32.totalorder %s110, %s111
    %p120 = scmp.eq.s32.totalorder %s16, 0
    %p121 = por %p119, %p120
    %p122 = scmp.ne.s32.totalorder %s110, %s111
    %p123 = scmp.eq.s32.totalorder %s17, 1
    %p124 = por %p122, %p123
    %p126 = scmp.ne.s32.totalorder %s111, %s125
    %p127 = scmp.eq.s32.totalorder %s17, 0
    %p128 = por %p126, %p127
    %s129 = ssub.s32 %s11, %s18
    %p130 = scmp.eq.s32.totalorder %s129, 0
    %s132 = sadd.s32 %s131, 1
    %s133 = scalar_select %p130, %s131, %s132
    %p136 = pneg %p130
    %p137 = scmp.eq.s32.totalorder %s11, 1
    %p138 = por %p136, %p137
    %p139 = scmp.ne.s32.totalorder %s131, %s134
    %p140 = scmp.eq.s32.totalorder %s11, 0
    %p141 = por %p139, %p140
    %p142 = scmp.ne.s32.totalorder %s131, %s134
    %p143 = scmp.eq.s32.totalorder %s16, 1
    %p144 = por %p142, %p143
    %p145 = scmp.ne.s32.totalorder %s134, %s135
    %p146 = scmp.eq.s32.totalorder %s16, 0
    %p147 = por %p145, %p146
    %p148 = scmp.ne.s32.totalorder %s134, %s135
    %p149 = scmp.eq.s32.totalorder %s17, 1
    %p150 = por %p148, %p149
    %p152 = scmp.ne.s32.totalorder %s135, %s151
    %p153 = scmp.eq.s32.totalorder %s17, 0
    %p154 = por %p152, %p153
    %p155 = scmp.le.s32.totalorder 1, %s11
    %p156 = scmp.lt.s32.totalorder %s11, 3
    %p157 = pnand %p155, %p156
    %p158 = pneg %p157
    // Predicated region
    $region9: #{conv_relu2_forward.1} parent=5 // pred_check
      _
    $region10: #{conv_relu2_forward.1} parent=5 // pred_check_branch
      %160 = sbr.rel (%p157) target = $region12
    $region11: #{conv_relu2_forward.1} parent=5 // pred_region
      %s161 = ssub.s32 %s11, 1
      // Predicated region
      $region13: #{conv_relu2_forward.1} parent=11 // pred_check
        %p162 = pneg %p58
      $region14: #{conv_relu2_forward.1} parent=11 // pred_check_branch
        %164 = sbr.rel (%p162) target = $region16
      $region15: #{conv_relu2_forward.1} parent=11 // pred_region
        _
      $region16: #{conv_relu2_forward.1} parent=11 // pred_fallthru
        _
      // Predicated region
      $region17: #{conv_relu2_forward.1} parent=11 // pred_check
        %p165 = pneg %p79
      $region18: #{conv_relu2_forward.1} parent=11 // pred_check_branch
        %167 = sbr.rel (%p165) target = $region20
      $region19: #{conv_relu2_forward.1} parent=11 // pred_region
        _
      $region20: #{conv_relu2_forward.1} parent=11 // pred_fallthru
        _
      // Predicated region
      $region21: #{conv_relu2_forward.1} parent=11 // pred_check
        %p168 = pneg %p100
      $region22: #{conv_relu2_forward.1} parent=11 // pred_check_branch
        %170 = sbr.rel (%p168) target = $region24
      $region23: #{conv_relu2_forward.1} parent=11 // pred_region
        _
      $region24: #{conv_relu2_forward.1} parent=11 // pred_fallthru
        _
      // Predicated region
      $region25: #{conv_relu2_forward.1} parent=11 // pred_check
        %p171 = pneg %p121
      $region26: #{conv_relu2_forward.1} parent=11 // pred_check_branch
        %173 = sbr.rel (%p171) target = $region28
      $region27: #{conv_relu2_forward.1} parent=11 // pred_region
        _
      $region28: #{conv_relu2_forward.1} parent=11 // pred_fallthru
        _
    $region12: #{conv_relu2_forward.1} parent=5 // pred_fallthru
      _
    %p174 = scmp.lt.s32.totalorder %s11, 2
    // Predicated region
    $region29: #{conv_relu2_forward.1} parent=5 // pred_check
      %p175 = pneg %p174
    $region30: #{conv_relu2_forward.1} parent=5 // pred_check_branch
      %177 = sbr.rel (%p175) target = $region32
    $region31: #{conv_relu2_forward.1} parent=5 // pred_region
      // Predicated region
      $region33: #{conv_relu2_forward.1} parent=31 // pred_check
        %p178 = pneg %p31
      $region34: #{conv_relu2_forward.1} parent=31 // pred_check_branch
        %180 = sbr.rel (%p178) target = $region36
      $region35: #{conv_relu2_forward.1} parent=31 // pred_region
        %p181 = scmp.lt.s32.totalorder %s11, 1
        %s182 = scalar_select %p181, %s11, 1
        %s183 = smul.addr %s182, 54
        %s184 = smul.addr %s183, 8
        %s185 = scalar_lea.vmem %s0, %s184
      $region36: #{conv_relu2_forward.1} parent=31 // pred_fallthru
        _
    $region32: #{conv_relu2_forward.1} parent=5 // pred_fallthru
      _
    %p186 = scmp.le.s32.totalorder 1, %s11
    %p187 = scmp.lt.s32.totalorder %s11, 3
    %p188 = pnand %p186, %p187
    %p189 = pneg %p188
    // Predicated region
    $region37: #{conv_relu2_forward.1} parent=5 // pred_check
      _
    $region38: #{conv_relu2_forward.1} parent=5 // pred_check_branch
      %191 = sbr.rel (%p188) target = $region40
    $region39: #{conv_relu2_forward.1} parent=5 // pred_region
      %s192 = ssub.s32 %s11, 1
      %p193 = scmp.lt.s32.totalorder %s16, 1
      %s194 = scalar_select %p193, %s16, 1
      %s195 = smul.addr %s194, 54
      %s196 = smul.addr %s195, 8
      %s197 = scalar_lea.vmem %s0, %s196
      %p198 = pneg %p37
      %p199 = pneg %p34
      %p200 = pneg %p58
      %p201 = pneg %p55
      %p202 = pneg %p79
      %p203 = pneg %p76
      %p204 = pneg %p100
      %p205 = pneg %p97
      %p206 = pneg %p121
      %p207 = pneg %p118
      %p208 = pneg %p147
      %p209 = pneg %p144
      %p210 = scmp.lt.s32.totalorder %s16, 1
      %s211 = scalar_select %p210, %s16, 1
      %s212 = smul.addr %s211, 32
      %s213 = smul.addr %s212, 8
      %s214 = scalar_lea.vmem %s5, %s213
      %p215 = scmp.lt.s32.totalorder %s16, 1
      %s216 = scalar_select %p215, %s16, 1
      %s217 = smul.addr %s216, 54
      %s218 = smul.addr %s217, 8
      %s219 = scalar_lea.vmem %s0, %s218
      %p220 = scmp.lt.s32.totalorder %s16, 1
      %s221 = scalar_select %p220, %s16, 1
      %s222 = smul.addr %s221, 32
      %s223 = smul.addr %s222, 8
      %s224 = scalar_lea.vmem %s5, %s223
      %v225 = vld [vmem:[%s219] sm:$0xff]
      %v226 = vld [vmem:[%s219 + $0x8] sm:$0xff]
      %v227 = vld [vmem:[%s219 + $0x10] sm:$0x3]
      %v228 = vld [vmem:[%s219 + $0x18] sm:$0xff]
      %v229 = vld [vmem:[%s219 + $0x20] sm:$0xff]
      %v230 = vld [vmem:[%s219 + $0x28] sm:$0x3]
      %v231 = vld [vmem:[%s219 + $0x30] sm:$0xff]
      %v232 = vld [vmem:[%s219 + $0x38] sm:$0xff]
      %v233 = vld [vmem:[%s219 + $0x40] sm:$0x3]
      %v234 = vld [vmem:[%s219 + $0x48] sm:$0xff]
      %v235 = vld [vmem:[%s219 + $0x50] sm:$0xff]
      %v236 = vld [vmem:[%s219 + $0x58] sm:$0x3]
      %v237 = vld [vmem:[%s219 + $0x60] sm:$0xff]
      %v238 = vld [vmem:[%s219 + $0x68] sm:$0xff]
      %v239 = vld [vmem:[%s219 + $0x70] sm:$0x3]
      %v240 = vld [vmem:[%s219 + $0x78] sm:$0xff]
      %v241 = vld [vmem:[%s219 + $0x80] sm:$0xff]
      %v242 = vld [vmem:[%s219 + $0x88] sm:$0x3]
      %v243 = vld [vmem:[%s219 + $0x90] sm:$0xff]
      %v244 = vld [vmem:[%s219 + $0x98] sm:$0xff]
      %v245 = vld [vmem:[%s219 + $0xa0] sm:$0x3]
      %v246 = vld [vmem:[%s219 + $0xa8] sm:$0xff]
      %v247 = vld [vmem:[%s219 + $0xb0] sm:$0xff]
      %v248 = vld [vmem:[%s219 + $0xb8] sm:$0x3]
      %v249 = vld [vmem:[%s219 + $0xc0] sm:$0xff]
      %v250 = vld [vmem:[%s219 + $0xc8] sm:$0xff]
      %v251 = vld [vmem:[%s219 + $0xd0] sm:$0x3]
      %v252 = vld [vmem:[%s219 + $0xd8] sm:$0xff]
      %v253 = vld [vmem:[%s219 + $0xe0] sm:$0xff]
      %v254 = vld [vmem:[%s219 + $0xe8] sm:$0x3]
      %v255 = vld [vmem:[%s219 + $0xf0] sm:$0xff]
      %v256 = vld [vmem:[%s219 + $0xf8] sm:$0xff]
      %v257 = vld [vmem:[%s219 + $0x100] sm:$0x3]
      %v258 = vld [vmem:[%s219 + $0x108] sm:$0xff]
      %v259 = vld [vmem:[%s219 + $0x110] sm:$0xff]
      %v260 = vld [vmem:[%s219 + $0x118] sm:$0x3]
      %v261 = vld [vmem:[%s219 + $0x120] sm:$0xff]
      %v262 = vld [vmem:[%s219 + $0x128] sm:$0xff]
      %v263 = vld [vmem:[%s219 + $0x130] sm:$0x3]
      %v264 = vld [vmem:[%s219 + $0x138] sm:$0xff]
      %v265 = vld [vmem:[%s219 + $0x140] sm:$0xff]
      %v266 = vld [vmem:[%s219 + $0x148] sm:$0x3]
      %v267 = vld [vmem:[%s219 + $0x150] sm:$0xff]
      %v268 = vld [vmem:[%s219 + $0x158] sm:$0xff]
      %v269 = vld [vmem:[%s219 + $0x160] sm:$0x3]
      %v270 = vld [vmem:[%s219 + $0x168] sm:$0xff]
      %v271 = vld [vmem:[%s219 + $0x170] sm:$0xff]
      %v272 = vld [vmem:[%s219 + $0x178] sm:$0x3]
      %v273 = vld [vmem:[%s219 + $0x180] sm:$0xff]
      %v274 = vld [vmem:[%s219 + $0x188] sm:$0xff]
      %v275 = vld [vmem:[%s219 + $0x190] sm:$0x3]
      %v276 = vld [vmem:[%s219 + $0x198] sm:$0xff]
      %v277 = vld [vmem:[%s219 + $0x1a0] sm:$0xff]
      %v278 = vld [vmem:[%s219 + $0x1a8] sm:$0x3]
      %vm327 = vcmask 1046528
      %v328 = vrot.slane %v225, 1
      %v329 = vrot.slane %v226, 1
      %v330 = vsel %vm327, %v328, %v329
      %v331 = vrot.slane %v227, 1
      %v332 = vsel %vm327, %v329, %v331
      %v333 = vrot.slane %v228, 1
      %v334 = vrot.slane %v229, 1
      %v335 = vsel %vm327, %v333, %v334
      %v336 = vrot.slane %v230, 1
      %v337 = vsel %vm327, %v334, %v336
      %v338 = vrot.slane %v231, 1
      %v339 = vrot.slane %v232, 1
      %v340 = vsel %vm327, %v338, %v339
      %v341 = vrot.slane %v233, 1
      %v342 = vsel %vm327, %v339, %v341
      %v343 = vrot.slane %v234, 1
      %v344 = vrot.slane %v235, 1
      %v345 = vsel %vm327, %v343, %v344
      %v346 = vrot.slane %v236, 1
      %v347 = vsel %vm327, %v344, %v346
      %v348 = vrot.slane %v237, 1
      %v349 = vrot.slane %v238, 1
      %v350 = vsel %vm327, %v348, %v349
      %v351 = vrot.slane %v239, 1
      %v352 = vsel %vm327, %v349, %v351
      %v353 = vrot.slane %v240, 1
      %v354 = vrot.slane %v241, 1
      %v355 = vsel %vm327, %v353, %v354
      %v356 = vrot.slane %v242, 1
      %v357 = vsel %vm327, %v354, %v356
      %v358 = vrot.slane %v243, 1
      %v359 = vrot.slane %v244, 1
      %v360 = vsel %vm327, %v358, %v359
      %v361 = vrot.slane %v245, 1
      %v362 = vsel %vm327, %v359, %v361
      %v363 = vrot.slane %v246, 1
      %v364 = vrot.slane %v247, 1
      %v365 = vsel %vm327, %v363, %v364
      %v366 = vrot.slane %v248, 1
      %v367 = vsel %vm327, %v364, %v366
      %v368 = vrot.slane %v249, 1
      %v369 = vrot.slane %v250, 1
      %v370 = vsel %vm327, %v368, %v369
      %v371 = vrot.slane %v251, 1
      %v372 = vsel %vm327, %v369, %v371
      %v373 = vrot.slane %v252, 1
      %v374 = vrot.slane %v253, 1
      %v375 = vsel %vm327, %v373, %v374
      %v376 = vrot.slane %v254, 1
      %v377 = vsel %vm327, %v374, %v376
      %v378 = vrot.slane %v255, 1
      %v379 = vrot.slane %v256, 1
      %v380 = vsel %vm327, %v378, %v379
      %v381 = vrot.slane %v257, 1
      %v382 = vsel %vm327, %v379, %v381
      %v383 = vrot.slane %v258, 1
      %v384 = vrot.slane %v259, 1
      %v385 = vsel %vm327, %v383, %v384
      %v386 = vrot.slane %v260, 1
      %v387 = vsel %vm327, %v384, %v386
      %v388 = vrot.slane %v261, 1
      %v389 = vrot.slane %v262, 1
      %v390 = vsel %vm327, %v388, %v389
      %v391 = vrot.slane %v263, 1
      %v392 = vsel %vm327, %v389, %v391
      %v393 = vrot.slane %v264, 1
      %v394 = vrot.slane %v265, 1
      %v395 = vsel %vm327, %v393, %v394
      %v396 = vrot.slane %v266, 1
      %v397 = vsel %vm327, %v394, %v396
      %v398 = vrot.slane %v267, 1
      %v399 = vrot.slane %v268, 1
      %v400 = vsel %vm327, %v398, %v399
      %v401 = vrot.slane %v269, 1
      %v402 = vsel %vm327, %v399, %v401
      %v403 = vrot.slane %v270, 1
      %v404 = vrot.slane %v271, 1
      %v405 = vsel %vm327, %v403, %v404
      %v406 = vrot.slane %v272, 1
      %v407 = vsel %vm327, %v404, %v406
      %vm408 = vcmask 1045504
      %v409 = vrot.slane %v225, 2
      %v410 = vrot.slane %v226, 2
      %v411 = vsel %vm408, %v409, %v410
      %v412 = vrot.slane %v227, 2
      %v413 = vsel %vm408, %v410, %v412
      %v414 = vrot.slane %v228, 2
      %v415 = vrot.slane %v229, 2
      %v416 = vsel %vm408, %v414, %v415
      %v417 = vrot.slane %v230, 2
      %v418 = vsel %vm408, %v415, %v417
      %v419 = vrot.slane %v231, 2
      %v420 = vrot.slane %v232, 2
      %v421 = vsel %vm408, %v419, %v420
      %v422 = vrot.slane %v233, 2
      %v423 = vsel %vm408, %v420, %v422
      %v424 = vrot.slane %v234, 2
      %v425 = vrot.slane %v235, 2
      %v426 = vsel %vm408, %v424, %v425
      %v427 = vrot.slane %v236, 2
      %v428 = vsel %vm408, %v425, %v427
      %v429 = vrot.slane %v237, 2
      %v430 = vrot.slane %v238, 2
      %v431 = vsel %vm408, %v429, %v430
      %v432 = vrot.slane %v239, 2
      %v433 = vsel %vm408, %v430, %v432
      %v434 = vrot.slane %v240, 2
      %v435 = vrot.slane %v241, 2
      %v436 = vsel %vm408, %v434, %v435
      %v437 = vrot.slane %v242, 2
      %v438 = vsel %vm408, %v435, %v437
      %v439 = vrot.slane %v243, 2
      %v440 = vrot.slane %v244, 2
      %v441 = vsel %vm408, %v439, %v440
      %v442 = vrot.slane %v245, 2
      %v443 = vsel %vm408, %v440, %v442
      %v444 = vrot.slane %v246, 2
      %v445 = vrot.slane %v247, 2
      %v446 = vsel %vm408, %v444, %v445
      %v447 = vrot.slane %v248, 2
      %v448 = vsel %vm408, %v445, %v447
      %v449 = vrot.slane %v249, 2
      %v450 = vrot.slane %v250, 2
      %v451 = vsel %vm408, %v449, %v450
      %v452 = vrot.slane %v251, 2
      %v453 = vsel %vm408, %v450, %v452
      %v454 = vrot.slane %v252, 2
      %v455 = vrot.slane %v253, 2
      %v456 = vsel %vm408, %v454, %v455
      %v457 = vrot.slane %v254, 2
      %v458 = vsel %vm408, %v455, %v457
      %v459 = vrot.slane %v255, 2
      %v460 = vrot.slane %v256, 2
      %v461 = vsel %vm408, %v459, %v460
      %v462 = vrot.slane %v257, 2
      %v463 = vsel %vm408, %v460, %v462
      %v464 = vrot.slane %v258, 2
      %v465 = vrot.slane %v259, 2
      %v466 = vsel %vm408, %v464, %v465
      %v467 = vrot.slane %v260, 2
      %v468 = vsel %vm408, %v465, %v467
      %v469 = vrot.slane %v261, 2
      %v470 = vrot.slane %v262, 2
      %v471 = vsel %vm408, %v469, %v470
      %v472 = vrot.slane %v263, 2
      %v473 = vsel %vm408, %v470, %v472
      %v474 = vrot.slane %v264, 2
      %v475 = vrot.slane %v265, 2
      %v476 = vsel %vm408, %v474, %v475
      %v477 = vrot.slane %v266, 2
      %v478 = vsel %vm408, %v475, %v477
      %v479 = vrot.slane %v267, 2
      %v480 = vrot.slane %v268, 2
      %v481 = vsel %vm408, %v479, %v480
      %v482 = vrot.slane %v269, 2
      %v483 = vsel %vm408, %v480, %v482
      %v484 = vrot.slane %v270, 2
      %v485 = vrot.slane %v271, 2
      %v486 = vsel %vm408, %v484, %v485
      %v487 = vrot.slane %v272, 2
      %v488 = vsel %vm408, %v485, %v487
      %v492 = vrot.slane %v273, 1
      %v493 = vrot.slane %v274, 1
      %v494 = vsel %vm327, %v492, %v493
      %v495 = vrot.slane %v275, 1
      %v496 = vsel %vm327, %v493, %v495
      %v497 = vrot.slane %v273, 2
      %v498 = vrot.slane %v274, 2
      %v499 = vsel %vm408, %v497, %v498
      %v500 = vrot.slane %v275, 2
      %v501 = vsel %vm408, %v498, %v500
      %v505 = vrot.slane %v276, 1
      %v506 = vrot.slane %v277, 1
      %v507 = vsel %vm327, %v505, %v506
      %v508 = vrot.slane %v278, 1
      %v509 = vsel %vm327, %v506, %v508
      %v510 = vrot.slane %v276, 2
      %v511 = vrot.slane %v277, 2
      %v512 = vsel %vm408, %v510, %v511
      %v513 = vrot.slane %v278, 2
      %v514 = vsel %vm408, %v511, %v513
      %515 = vrot.lane.b32.xlu0 %v330, 4
      %v516 = vpop.permute.xlu0 %515
      %517 = vrot.lane.b32.xlu0 %v332, 4
      %v518 = vpop.permute.xlu0 %517
      %519 = vrot.lane.b32.xlu0 %v335, 4
      %v520 = vpop.permute.xlu0 %519
      %521 = vrot.lane.b32.xlu0 %v337, 4
      %v522 = vpop.permute.xlu0 %521
      %523 = vrot.lane.b32.xlu0 %v340, 4
      %v524 = vpop.permute.xlu0 %523
      %525 = vrot.lane.b32.xlu0 %v342, 4
      %v526 = vpop.permute.xlu0 %525
      %527 = vrot.lane.b32.xlu0 %v345, 4
      %v528 = vpop.permute.xlu0 %527
      %529 = vrot.lane.b32.xlu0 %v347, 4
      %v530 = vpop.permute.xlu0 %529
      %531 = vrot.lane.b32.xlu0 %v350, 4
      %v532 = vpop.permute.xlu0 %531
      %533 = vrot.lane.b32.xlu0 %v352, 4
      %v534 = vpop.permute.xlu0 %533
      %535 = vrot.lane.b32.xlu0 %v355, 4
      %v536 = vpop.permute.xlu0 %535
      %537 = vrot.lane.b32.xlu0 %v357, 4
      %v538 = vpop.permute.xlu0 %537
      %539 = vrot.lane.b32.xlu0 %v360, 4
      %v540 = vpop.permute.xlu0 %539
      %541 = vrot.lane.b32.xlu0 %v362, 4
      %v542 = vpop.permute.xlu0 %541
      %543 = vrot.lane.b32.xlu0 %v365, 4
      %v544 = vpop.permute.xlu0 %543
      %545 = vrot.lane.b32.xlu0 %v367, 4
      %v546 = vpop.permute.xlu0 %545
      %547 = vrot.lane.b32.xlu0 %v370, 4
      %v548 = vpop.permute.xlu0 %547
      %549 = vrot.lane.b32.xlu0 %v372, 4
      %v550 = vpop.permute.xlu0 %549
      %551 = vrot.lane.b32.xlu0 %v375, 4
      %v552 = vpop.permute.xlu0 %551
      %553 = vrot.lane.b32.xlu0 %v377, 4
      %v554 = vpop.permute.xlu0 %553
      %555 = vrot.lane.b32.xlu0 %v380, 4
      %v556 = vpop.permute.xlu0 %555
      %557 = vrot.lane.b32.xlu0 %v382, 4
      %v558 = vpop.permute.xlu0 %557
      %559 = vrot.lane.b32.xlu0 %v385, 4
      %v560 = vpop.permute.xlu0 %559
      %561 = vrot.lane.b32.xlu0 %v387, 4
      %v562 = vpop.permute.xlu0 %561
      %563 = vrot.lane.b32.xlu0 %v390, 4
      %v564 = vpop.permute.xlu0 %563
      %565 = vrot.lane.b32.xlu0 %v392, 4
      %v566 = vpop.permute.xlu0 %565
      %567 = vrot.lane.b32.xlu0 %v395, 4
      %v568 = vpop.permute.xlu0 %567
      %569 = vrot.lane.b32.xlu0 %v397, 4
      %v570 = vpop.permute.xlu0 %569
      %571 = vrot.lane.b32.xlu0 %v400, 4
      %v572 = vpop.permute.xlu0 %571
      %573 = vrot.lane.b32.xlu0 %v402, 4
      %v574 = vpop.permute.xlu0 %573
      %575 = vrot.lane.b32.xlu0 %v405, 4
      %v576 = vpop.permute.xlu0 %575
      %577 = vrot.lane.b32.xlu0 %v407, 4
      %v578 = vpop.permute.xlu0 %577
      %611 = vrot.lane.b32.xlu0 %v411, 8
      %v612 = vpop.permute.xlu0 %611
      %613 = vrot.lane.b32.xlu0 %v413, 8
      %v614 = vpop.permute.xlu0 %613
      %615 = vrot.lane.b32.xlu0 %v416, 8
      %v616 = vpop.permute.xlu0 %615
      %617 = vrot.lane.b32.xlu0 %v418, 8
      %v618 = vpop.permute.xlu0 %617
      %619 = vrot.lane.b32.xlu0 %v421, 8
      %v620 = vpop.permute.xlu0 %619
      %621 = vrot.lane.b32.xlu0 %v423, 8
      %v622 = vpop.permute.xlu0 %621
      %623 = vrot.lane.b32.xlu0 %v426, 8
      %v624 = vpop.permute.xlu0 %623
      %625 = vrot.lane.b32.xlu0 %v428, 8
      %v626 = vpop.permute.xlu0 %625
      %627 = vrot.lane.b32.xlu0 %v431, 8
      %v628 = vpop.permute.xlu0 %627
      %629 = vrot.lane.b32.xlu0 %v433, 8
      %v630 = vpop.permute.xlu0 %629
      %631 = vrot.lane.b32.xlu0 %v436, 8
      %v632 = vpop.permute.xlu0 %631
      %633 = vrot.lane.b32.xlu0 %v438, 8
      %v634 = vpop.permute.xlu0 %633
      %635 = vrot.lane.b32.xlu0 %v441, 8
      %v636 = vpop.permute.xlu0 %635
      %637 = vrot.lane.b32.xlu0 %v443, 8
      %v638 = vpop.permute.xlu0 %637
      %639 = vrot.lane.b32.xlu0 %v446, 8
      %v640 = vpop.permute.xlu0 %639
      %641 = vrot.lane.b32.xlu0 %v448, 8
      %v642 = vpop.permute.xlu0 %641
      %643 = vrot.lane.b32.xlu0 %v451, 8
      %v644 = vpop.permute.xlu0 %643
      %645 = vrot.lane.b32.xlu0 %v453, 8
      %v646 = vpop.permute.xlu0 %645
      %647 = vrot.lane.b32.xlu0 %v456, 8
      %v648 = vpop.permute.xlu0 %647
      %649 = vrot.lane.b32.xlu0 %v458, 8
      %v650 = vpop.permute.xlu0 %649
      %651 = vrot.lane.b32.xlu0 %v461, 8
      %v652 = vpop.permute.xlu0 %651
      %653 = vrot.lane.b32.xlu0 %v463, 8
      %v654 = vpop.permute.xlu0 %653
      %655 = vrot.lane.b32.xlu0 %v466, 8
      %v656 = vpop.permute.xlu0 %655
      %657 = vrot.lane.b32.xlu0 %v468, 8
      %v658 = vpop.permute.xlu0 %657
      %659 = vrot.lane.b32.xlu0 %v471, 8
      %v660 = vpop.permute.xlu0 %659
      %661 = vrot.lane.b32.xlu0 %v473, 8
      %v662 = vpop.permute.xlu0 %661
      %663 = vrot.lane.b32.xlu0 %v476, 8
      %v664 = vpop.permute.xlu0 %663
      %665 = vrot.lane.b32.xlu0 %v478, 8
      %v666 = vpop.permute.xlu0 %665
      %667 = vrot.lane.b32.xlu0 %v481, 8
      %v668 = vpop.permute.xlu0 %667
      %669 = vrot.lane.b32.xlu0 %v483, 8
      %v670 = vpop.permute.xlu0 %669
      %671 = vrot.lane.b32.xlu0 %v486, 8
      %v672 = vpop.permute.xlu0 %671
      %673 = vrot.lane.b32.xlu0 %v488, 8
      %v674 = vpop.permute.xlu0 %673
      %707 = vrot.lane.b32.xlu0 %v228, 12
      %v708 = vpop.permute.xlu0 %707
      %709 = vrot.lane.b32.xlu0 %v229, 12
      %v710 = vpop.permute.xlu0 %709
      %711 = vrot.lane.b32.xlu0 %v231, 12
      %v712 = vpop.permute.xlu0 %711
      %713 = vrot.lane.b32.xlu0 %v232, 12
      %v714 = vpop.permute.xlu0 %713
      %715 = vrot.lane.b32.xlu0 %v234, 12
      %v716 = vpop.permute.xlu0 %715
      %717 = vrot.lane.b32.xlu0 %v235, 12
      %v718 = vpop.permute.xlu0 %717
      %719 = vrot.lane.b32.xlu0 %v237, 12
      %v720 = vpop.permute.xlu0 %719
      %721 = vrot.lane.b32.xlu0 %v238, 12
      %v722 = vpop.permute.xlu0 %721
      %723 = vrot.lane.b32.xlu0 %v240, 12
      %v724 = vpop.permute.xlu0 %723
      %725 = vrot.lane.b32.xlu0 %v241, 12
      %v726 = vpop.permute.xlu0 %725
      %727 = vrot.lane.b32.xlu0 %v243, 12
      %v728 = vpop.permute.xlu0 %727
      %729 = vrot.lane.b32.xlu0 %v244, 12
      %v730 = vpop.permute.xlu0 %729
      %731 = vrot.lane.b32.xlu0 %v246, 12
      %v732 = vpop.permute.xlu0 %731
      %733 = vrot.lane.b32.xlu0 %v247, 12
      %v734 = vpop.permute.xlu0 %733
      %735 = vrot.lane.b32.xlu0 %v249, 12
      %v736 = vpop.permute.xlu0 %735
      %737 = vrot.lane.b32.xlu0 %v250, 12
      %v738 = vpop.permute.xlu0 %737
      %739 = vrot.lane.b32.xlu0 %v252, 12
      %v740 = vpop.permute.xlu0 %739
      %741 = vrot.lane.b32.xlu0 %v253, 12
      %v742 = vpop.permute.xlu0 %741
      %743 = vrot.lane.b32.xlu0 %v255, 12
      %v744 = vpop.permute.xlu0 %743
      %745 = vrot.lane.b32.xlu0 %v256, 12
      %v746 = vpop.permute.xlu0 %745
      %747 = vrot.lane.b32.xlu0 %v258, 12
      %v748 = vpop.permute.xlu0 %747
      %749 = vrot.lane.b32.xlu0 %v259, 12
      %v750 = vpop.permute.xlu0 %749
      %751 = vrot.lane.b32.xlu0 %v261, 12
      %v752 = vpop.permute.xlu0 %751
      %753 = vrot.lane.b32.xlu0 %v262, 12
      %v754 = vpop.permute.xlu0 %753
      %755 = vrot.lane.b32.xlu0 %v264, 12
      %v756 = vpop.permute.xlu0 %755
      %757 = vrot.lane.b32.xlu0 %v265, 12
      %v758 = vpop.permute.xlu0 %757
      %759 = vrot.lane.b32.xlu0 %v267, 12
      %v760 = vpop.permute.xlu0 %759
      %761 = vrot.lane.b32.xlu0 %v268, 12
      %v762 = vpop.permute.xlu0 %761
      %763 = vrot.lane.b32.xlu0 %v270, 12
      %v764 = vpop.permute.xlu0 %763
      %765 = vrot.lane.b32.xlu0 %v271, 12
      %v766 = vpop.permute.xlu0 %765
      %767 = vrot.lane.b32.xlu0 %v273, 12
      %v768 = vpop.permute.xlu0 %767
      %769 = vrot.lane.b32.xlu0 %v274, 12
      %v770 = vpop.permute.xlu0 %769
      %803 = vrot.lane.b32.xlu0 %v335, 16
      %v804 = vpop.permute.xlu0 %803
      %805 = vrot.lane.b32.xlu0 %v337, 16
      %v806 = vpop.permute.xlu0 %805
      %807 = vrot.lane.b32.xlu0 %v340, 16
      %v808 = vpop.permute.xlu0 %807
      %809 = vrot.lane.b32.xlu0 %v342, 16
      %v810 = vpop.permute.xlu0 %809
      %811 = vrot.lane.b32.xlu0 %v345, 16
      %v812 = vpop.permute.xlu0 %811
      %813 = vrot.lane.b32.xlu0 %v347, 16
      %v814 = vpop.permute.xlu0 %813
      %815 = vrot.lane.b32.xlu0 %v350, 16
      %v816 = vpop.permute.xlu0 %815
      %817 = vrot.lane.b32.xlu0 %v352, 16
      %v818 = vpop.permute.xlu0 %817
      %819 = vrot.lane.b32.xlu0 %v355, 16
      %v820 = vpop.permute.xlu0 %819
      %821 = vrot.lane.b32.xlu0 %v357, 16
      %v822 = vpop.permute.xlu0 %821
      %823 = vrot.lane.b32.xlu0 %v360, 16
      %v824 = vpop.permute.xlu0 %823
      %825 = vrot.lane.b32.xlu0 %v362, 16
      %v826 = vpop.permute.xlu0 %825
      %827 = vrot.lane.b32.xlu0 %v365, 16
      %v828 = vpop.permute.xlu0 %827
      %829 = vrot.lane.b32.xlu0 %v367, 16
      %v830 = vpop.permute.xlu0 %829
      %831 = vrot.lane.b32.xlu0 %v370, 16
      %v832 = vpop.permute.xlu0 %831
      %833 = vrot.lane.b32.xlu0 %v372, 16
      %v834 = vpop.permute.xlu0 %833
      %835 = vrot.lane.b32.xlu0 %v375, 16
      %v836 = vpop.permute.xlu0 %835
      %837 = vrot.lane.b32.xlu0 %v377, 16
      %v838 = vpop.permute.xlu0 %837
      %839 = vrot.lane.b32.xlu0 %v380, 16
      %v840 = vpop.permute.xlu0 %839
      %841 = vrot.lane.b32.xlu0 %v382, 16
      %v842 = vpop.permute.xlu0 %841
      %843 = vrot.lane.b32.xlu0 %v385, 16
      %v844 = vpop.permute.xlu0 %843
      %845 = vrot.lane.b32.xlu0 %v387, 16
      %v846 = vpop.permute.xlu0 %845
      %847 = vrot.lane.b32.xlu0 %v390, 16
      %v848 = vpop.permute.xlu0 %847
      %849 = vrot.lane.b32.xlu0 %v392, 16
      %v850 = vpop.permute.xlu0 %849
      %851 = vrot.lane.b32.xlu0 %v395, 16
      %v852 = vpop.permute.xlu0 %851
      %853 = vrot.lane.b32.xlu0 %v397, 16
      %v854 = vpop.permute.xlu0 %853
      %855 = vrot.lane.b32.xlu0 %v400, 16
      %v856 = vpop.permute.xlu0 %855
      %857 = vrot.lane.b32.xlu0 %v402, 16
      %v858 = vpop.permute.xlu0 %857
      %859 = vrot.lane.b32.xlu0 %v405, 16
      %v860 = vpop.permute.xlu0 %859
      %861 = vrot.lane.b32.xlu0 %v407, 16
      %v862 = vpop.permute.xlu0 %861
      %863 = vrot.lane.b32.xlu0 %v494, 16
      %v864 = vpop.permute.xlu0 %863
      %865 = vrot.lane.b32.xlu0 %v496, 16
      %v866 = vpop.permute.xlu0 %865
      %899 = vrot.lane.b32.xlu0 %v416, 20
      %v900 = vpop.permute.xlu0 %899
      %901 = vrot.lane.b32.xlu0 %v418, 20
      %v902 = vpop.permute.xlu0 %901
      %903 = vrot.lane.b32.xlu0 %v421, 20
      %v904 = vpop.permute.xlu0 %903
      %905 = vrot.lane.b32.xlu0 %v423, 20
      %v906 = vpop.permute.xlu0 %905
      %907 = vrot.lane.b32.xlu0 %v426, 20
      %v908 = vpop.permute.xlu0 %907
      %909 = vrot.lane.b32.xlu0 %v428, 20
      %v910 = vpop.permute.xlu0 %909
      %911 = vrot.lane.b32.xlu0 %v431, 20
      %v912 = vpop.permute.xlu0 %911
      %913 = vrot.lane.b32.xlu0 %v433, 20
      %v914 = vpop.permute.xlu0 %913
      %915 = vrot.lane.b32.xlu0 %v436, 20
      %v916 = vpop.permute.xlu0 %915
      %917 = vrot.lane.b32.xlu0 %v438, 20
      %v918 = vpop.permute.xlu0 %917
      %919 = vrot.lane.b32.xlu0 %v441, 20
      %v920 = vpop.permute.xlu0 %919
      %921 = vrot.lane.b32.xlu0 %v443, 20
      %v922 = vpop.permute.xlu0 %921
      %923 = vrot.lane.b32.xlu0 %v446, 20
      %v924 = vpop.permute.xlu0 %923
      %925 = vrot.lane.b32.xlu0 %v448, 20
      %v926 = vpop.permute.xlu0 %925
      %927 = vrot.lane.b32.xlu0 %v451, 20
      %v928 = vpop.permute.xlu0 %927
      %929 = vrot.lane.b32.xlu0 %v453, 20
      %v930 = vpop.permute.xlu0 %929
      %931 = vrot.lane.b32.xlu0 %v456, 20
      %v932 = vpop.permute.xlu0 %931
      %933 = vrot.lane.b32.xlu0 %v458, 20
      %v934 = vpop.permute.xlu0 %933
      %935 = vrot.lane.b32.xlu0 %v461, 20
      %v936 = vpop.permute.xlu0 %935
      %937 = vrot.lane.b32.xlu0 %v463, 20
      %v938 = vpop.permute.xlu0 %937
      %939 = vrot.lane.b32.xlu0 %v466, 20
      %v940 = vpop.permute.xlu0 %939
      %941 = vrot.lane.b32.xlu0 %v468, 20
      %v942 = vpop.permute.xlu0 %941
      %943 = vrot.lane.b32.xlu0 %v471, 20
      %v944 = vpop.permute.xlu0 %943
      %945 = vrot.lane.b32.xlu0 %v473, 20
      %v946 = vpop.permute.xlu0 %945
      %947 = vrot.lane.b32.xlu0 %v476, 20
      %v948 = vpop.permute.xlu0 %947
      %949 = vrot.lane.b32.xlu0 %v478, 20
      %v950 = vpop.permute.xlu0 %949
      %951 = vrot.lane.b32.xlu0 %v481, 20
      %v952 = vpop.permute.xlu0 %951
      %953 = vrot.lane.b32.xlu0 %v483, 20
      %v954 = vpop.permute.xlu0 %953
      %955 = vrot.lane.b32.xlu0 %v486, 20
      %v956 = vpop.permute.xlu0 %955
      %957 = vrot.lane.b32.xlu0 %v488, 20
      %v958 = vpop.permute.xlu0 %957
      %959 = vrot.lane.b32.xlu0 %v499, 20
      %v960 = vpop.permute.xlu0 %959
      %961 = vrot.lane.b32.xlu0 %v501, 20
      %v962 = vpop.permute.xlu0 %961
      %995 = vrot.lane.b32.xlu0 %v231, 24
      %v996 = vpop.permute.xlu0 %995
      %997 = vrot.lane.b32.xlu0 %v232, 24
      %v998 = vpop.permute.xlu0 %997
      %999 = vrot.lane.b32.xlu0 %v234, 24
      %v1000 = vpop.permute.xlu0 %999
      %1001 = vrot.lane.b32.xlu0 %v235, 24
      %v1002 = vpop.permute.xlu0 %1001
      %1003 = vrot.lane.b32.xlu0 %v237, 24
      %v1004 = vpop.permute.xlu0 %1003
      %1005 = vrot.lane.b32.xlu0 %v238, 24
      %v1006 = vpop.permute.xlu0 %1005
      %1007 = vrot.lane.b32.xlu0 %v240, 24
      %v1008 = vpop.permute.xlu0 %1007
      %1009 = vrot.lane.b32.xlu0 %v241, 24
      %v1010 = vpop.permute.xlu0 %1009
      %1011 = vrot.lane.b32.xlu0 %v243, 24
      %v1012 = vpop.permute.xlu0 %1011
      %1013 = vrot.lane.b32.xlu0 %v244, 24
      %v1014 = vpop.permute.xlu0 %1013
      %1015 = vrot.lane.b32.xlu0 %v246, 24
      %v1016 = vpop.permute.xlu0 %1015
      %1017 = vrot.lane.b32.xlu0 %v247, 24
      %v1018 = vpop.permute.xlu0 %1017
      %1019 = vrot.lane.b32.xlu0 %v249, 24
      %v1020 = vpop.permute.xlu0 %1019
      %1021 = vrot.lane.b32.xlu0 %v250, 24
      %v1022 = vpop.permute.xlu0 %1021
      %1023 = vrot.lane.b32.xlu0 %v252, 24
      %v1024 = vpop.permute.xlu0 %1023
      %1025 = vrot.lane.b32.xlu0 %v253, 24
      %v1026 = vpop.permute.xlu0 %1025
      %1027 = vrot.lane.b32.xlu0 %v255, 24
      %v1028 = vpop.permute.xlu0 %1027
      %1029 = vrot.lane.b32.xlu0 %v256, 24
      %v1030 = vpop.permute.xlu0 %1029
      %1031 = vrot.lane.b32.xlu0 %v258, 24
      %v1032 = vpop.permute.xlu0 %1031
      %1033 = vrot.lane.b32.xlu0 %v259, 24
      %v1034 = vpop.permute.xlu0 %1033
      %1035 = vrot.lane.b32.xlu0 %v261, 24
      %v1036 = vpop.permute.xlu0 %1035
      %1037 = vrot.lane.b32.xlu0 %v262, 24
      %v1038 = vpop.permute.xlu0 %1037
      %1039 = vrot.lane.b32.xlu0 %v264, 24
      %v1040 = vpop.permute.xlu0 %1039
      %1041 = vrot.lane.b32.xlu0 %v265, 24
      %v1042 = vpop.permute.xlu0 %1041
      %1043 = vrot.lane.b32.xlu0 %v267, 24
      %v1044 = vpop.permute.xlu0 %1043
      %1045 = vrot.lane.b32.xlu0 %v268, 24
      %v1046 = vpop.permute.xlu0 %1045
      %1047 = vrot.lane.b32.xlu0 %v270, 24
      %v1048 = vpop.permute.xlu0 %1047
      %1049 = vrot.lane.b32.xlu0 %v271, 24
      %v1050 = vpop.permute.xlu0 %1049
      %1051 = vrot.lane.b32.xlu0 %v273, 24
      %v1052 = vpop.permute.xlu0 %1051
      %1053 = vrot.lane.b32.xlu0 %v274, 24
      %v1054 = vpop.permute.xlu0 %1053
      %1055 = vrot.lane.b32.xlu0 %v276, 24
      %v1056 = vpop.permute.xlu0 %1055
      %1057 = vrot.lane.b32.xlu0 %v277, 24
      %v1058 = vpop.permute.xlu0 %1057
      %1091 = vrot.lane.b32.xlu0 %v340, 28
      %v1092 = vpop.permute.xlu0 %1091
      %1093 = vrot.lane.b32.xlu0 %v342, 28
      %v1094 = vpop.permute.xlu0 %1093
      %1095 = vrot.lane.b32.xlu0 %v345, 28
      %v1096 = vpop.permute.xlu0 %1095
      %1097 = vrot.lane.b32.xlu0 %v347, 28
      %v1098 = vpop.permute.xlu0 %1097
      %1099 = vrot.lane.b32.xlu0 %v350, 28
      %v1100 = vpop.permute.xlu0 %1099
      %1101 = vrot.lane.b32.xlu0 %v352, 28
      %v1102 = vpop.permute.xlu0 %1101
      %1103 = vrot.lane.b32.xlu0 %v355, 28
      %v1104 = vpop.permute.xlu0 %1103
      %1105 = vrot.lane.b32.xlu0 %v357, 28
      %v1106 = vpop.permute.xlu0 %1105
      %1107 = vrot.lane.b32.xlu0 %v360, 28
      %v1108 = vpop.permute.xlu0 %1107
      %1109 = vrot.lane.b32.xlu0 %v362, 28
      %v1110 = vpop.permute.xlu0 %1109
      %1111 = vrot.lane.b32.xlu0 %v365, 28
      %v1112 = vpop.permute.xlu0 %1111
      %1113 = vrot.lane.b32.xlu0 %v367, 28
      %v1114 = vpop.permute.xlu0 %1113
      %1115 = vrot.lane.b32.xlu0 %v370, 28
      %v1116 = vpop.permute.xlu0 %1115
      %1117 = vrot.lane.b32.xlu0 %v372, 28
      %v1118 = vpop.permute.xlu0 %1117
      %1119 = vrot.lane.b32.xlu0 %v375, 28
      %v1120 = vpop.permute.xlu0 %1119
      %1121 = vrot.lane.b32.xlu0 %v377, 28
      %v1122 = vpop.permute.xlu0 %1121
      %1123 = vrot.lane.b32.xlu0 %v380, 28
      %v1124 = vpop.permute.xlu0 %1123
      %1125 = vrot.lane.b32.xlu0 %v382, 28
      %v1126 = vpop.permute.xlu0 %1125
      %1127 = vrot.lane.b32.xlu0 %v385, 28
      %v1128 = vpop.permute.xlu0 %1127
      %1129 = vrot.lane.b32.xlu0 %v387, 28
      %v1130 = vpop.permute.xlu0 %1129
      %1131 = vrot.lane.b32.xlu0 %v390, 28
      %v1132 = vpop.permute.xlu0 %1131
      %1133 = vrot.lane.b32.xlu0 %v392, 28
      %v1134 = vpop.permute.xlu0 %1133
      %1135 = vrot.lane.b32.xlu0 %v395, 28
      %v1136 = vpop.permute.xlu0 %1135
      %1137 = vrot.lane.b32.xlu0 %v397, 28
      %v1138 = vpop.permute.xlu0 %1137
      %1139 = vrot.lane.b32.xlu0 %v400, 28
      %v1140 = vpop.permute.xlu0 %1139
      %1141 = vrot.lane.b32.xlu0 %v402, 28
      %v1142 = vpop.permute.xlu0 %1141
      %1143 = vrot.lane.b32.xlu0 %v405, 28
      %v1144 = vpop.permute.xlu0 %1143
      %1145 = vrot.lane.b32.xlu0 %v407, 28
      %v1146 = vpop.permute.xlu0 %1145
      %1147 = vrot.lane.b32.xlu0 %v494, 28
      %v1148 = vpop.permute.xlu0 %1147
      %1149 = vrot.lane.b32.xlu0 %v496, 28
      %v1150 = vpop.permute.xlu0 %1149
      %1151 = vrot.lane.b32.xlu0 %v507, 28
      %v1152 = vpop.permute.xlu0 %1151
      %1153 = vrot.lane.b32.xlu0 %v509, 28
      %v1154 = vpop.permute.xlu0 %1153
      %1187 = vrot.lane.b32.xlu0 %v421, 32
      %v1188 = vpop.permute.xlu0 %1187
      %1189 = vrot.lane.b32.xlu0 %v423, 32
      %v1190 = vpop.permute.xlu0 %1189
      %1191 = vrot.lane.b32.xlu0 %v426, 32
      %v1192 = vpop.permute.xlu0 %1191
      %1193 = vrot.lane.b32.xlu0 %v428, 32
      %v1194 = vpop.permute.xlu0 %1193
      %1195 = vrot.lane.b32.xlu0 %v431, 32
      %v1196 = vpop.permute.xlu0 %1195
      %1197 = vrot.lane.b32.xlu0 %v433, 32
      %v1198 = vpop.permute.xlu0 %1197
      %1199 = vrot.lane.b32.xlu0 %v436, 32
      %v1200 = vpop.permute.xlu0 %1199
      %1201 = vrot.lane.b32.xlu0 %v438, 32
      %v1202 = vpop.permute.xlu0 %1201
      %1203 = vrot.lane.b32.xlu0 %v441, 32
      %v1204 = vpop.permute.xlu0 %1203
      %1205 = vrot.lane.b32.xlu0 %v443, 32
      %v1206 = vpop.permute.xlu0 %1205
      %1207 = vrot.lane.b32.xlu0 %v446, 32
      %v1208 = vpop.permute.xlu0 %1207
      %1209 = vrot.lane.b32.xlu0 %v448, 32
      %v1210 = vpop.permute.xlu0 %1209
      %1211 = vrot.lane.b32.xlu0 %v451, 32
      %v1212 = vpop.permute.xlu0 %1211
      %1213 = vrot.lane.b32.xlu0 %v453, 32
      %v1214 = vpop.permute.xlu0 %1213
      %1215 = vrot.lane.b32.xlu0 %v456, 32
      %v1216 = vpop.permute.xlu0 %1215
      %1217 = vrot.lane.b32.xlu0 %v458, 32
      %v1218 = vpop.permute.xlu0 %1217
      %1219 = vrot.lane.b32.xlu0 %v461, 32
      %v1220 = vpop.permute.xlu0 %1219
      %1221 = vrot.lane.b32.xlu0 %v463, 32
      %v1222 = vpop.permute.xlu0 %1221
      %1223 = vrot.lane.b32.xlu0 %v466, 32
      %v1224 = vpop.permute.xlu0 %1223
      %1225 = vrot.lane.b32.xlu0 %v468, 32
      %v1226 = vpop.permute.xlu0 %1225
      %1227 = vrot.lane.b32.xlu0 %v471, 32
      %v1228 = vpop.permute.xlu0 %1227
      %1229 = vrot.lane.b32.xlu0 %v473, 32
      %v1230 = vpop.permute.xlu0 %1229
      %1231 = vrot.lane.b32.xlu0 %v476, 32
      %v1232 = vpop.permute.xlu0 %1231
      %1233 = vrot.lane.b32.xlu0 %v478, 32
      %v1234 = vpop.permute.xlu0 %1233
      %1235 = vrot.lane.b32.xlu0 %v481, 32
      %v1236 = vpop.permute.xlu0 %1235
      %1237 = vrot.lane.b32.xlu0 %v483, 32
      %v1238 = vpop.permute.xlu0 %1237
      %1239 = vrot.lane.b32.xlu0 %v486, 32
      %v1240 = vpop.permute.xlu0 %1239
      %1241 = vrot.lane.b32.xlu0 %v488, 32
      %v1242 = vpop.permute.xlu0 %1241
      %1243 = vrot.lane.b32.xlu0 %v499, 32
      %v1244 = vpop.permute.xlu0 %1243
      %1245 = vrot.lane.b32.xlu0 %v501, 32
      %v1246 = vpop.permute.xlu0 %1245
      %1247 = vrot.lane.b32.xlu0 %v512, 32
      %v1248 = vpop.permute.xlu0 %1247
      %1249 = vrot.lane.b32.xlu0 %v514, 32
      %v1250 = vpop.permute.xlu0 %1249
      %vm1283 = vcmask 31744
      %v1284 = vsel %vm1283, %v225, %v516
      %v1285 = vsel %vm1283, %v226, %v518
      %v1286 = vsel %vm1283, %v228, %v520
      %v1287 = vsel %vm1283, %v229, %v522
      %v1288 = vsel %vm1283, %v231, %v524
      %v1289 = vsel %vm1283, %v232, %v526
      %v1290 = vsel %vm1283, %v234, %v528
      %v1291 = vsel %vm1283, %v235, %v530
      %v1292 = vsel %vm1283, %v237, %v532
      %v1293 = vsel %vm1283, %v238, %v534
      %v1294 = vsel %vm1283, %v240, %v536
      %v1295 = vsel %vm1283, %v241, %v538
      %v1296 = vsel %vm1283, %v243, %v540
      %v1297 = vsel %vm1283, %v244, %v542
      %v1298 = vsel %vm1283, %v246, %v544
      %v1299 = vsel %vm1283, %v247, %v546
      %v1300 = vsel %vm1283, %v249, %v548
      %v1301 = vsel %vm1283, %v250, %v550
      %v1302 = vsel %vm1283, %v252, %v552
      %v1303 = vsel %vm1283, %v253, %v554
      %v1304 = vsel %vm1283, %v255, %v556
      %v1305 = vsel %vm1283, %v256, %v558
      %v1306 = vsel %vm1283, %v258, %v560
      %v1307 = vsel %vm1283, %v259, %v562
      %v1308 = vsel %vm1283, %v261, %v564
      %v1309 = vsel %vm1283, %v262, %v566
      %v1310 = vsel %vm1283, %v264, %v568
      %v1311 = vsel %vm1283, %v265, %v570
      %v1312 = vsel %vm1283, %v267, %v572
      %v1313 = vsel %vm1283, %v268, %v574
      %v1314 = vsel %vm1283, %v270, %v576
      %v1315 = vsel %vm1283, %v271, %v578
      %vm1316 = vcmask 64512
      %v1317 = vsel %vm1316, %v1284, %v612
      %v1318 = vsel %vm1316, %v1285, %v614
      %v1319 = vsel %vm1316, %v1286, %v616
      %v1320 = vsel %vm1316, %v1287, %v618
      %v1321 = vsel %vm1316, %v1288, %v620
      %v1322 = vsel %vm1316, %v1289, %v622
      %v1323 = vsel %vm1316, %v1290, %v624
      %v1324 = vsel %vm1316, %v1291, %v626
      %v1325 = vsel %vm1316, %v1292, %v628
      %v1326 = vsel %vm1316, %v1293, %v630
      %v1327 = vsel %vm1316, %v1294, %v632
      %v1328 = vsel %vm1316, %v1295, %v634
      %v1329 = vsel %vm1316, %v1296, %v636
      %v1330 = vsel %vm1316, %v1297, %v638
      %v1331 = vsel %vm1316, %v1298, %v640
      %v1332 = vsel %vm1316, %v1299, %v642
      %v1333 = vsel %vm1316, %v1300, %v644
      %v1334 = vsel %vm1316, %v1301, %v646
      %v1335 = vsel %vm1316, %v1302, %v648
      %v1336 = vsel %vm1316, %v1303, %v650
      %v1337 = vsel %vm1316, %v1304, %v652
      %v1338 = vsel %vm1316, %v1305, %v654
      %v1339 = vsel %vm1316, %v1306, %v656
      %v1340 = vsel %vm1316, %v1307, %v658
      %v1341 = vsel %vm1316, %v1308, %v660
      %v1342 = vsel %vm1316, %v1309, %v662
      %v1343 = vsel %vm1316, %v1310, %v664
      %v1344 = vsel %vm1316, %v1311, %v666
      %v1345 = vsel %vm1316, %v1312, %v668
      %v1346 = vsel %vm1316, %v1313, %v670
      %v1347 = vsel %vm1316, %v1314, %v672
      %v1348 = vsel %vm1316, %v1315, %v674
      %vm1349 = vcmask 97280
      %v1350 = vsel %vm1349, %v1317, %v708
      %v1351 = vsel %vm1349, %v1318, %v710
      %v1352 = vsel %vm1349, %v1319, %v712
      %v1353 = vsel %vm1349, %v1320, %v714
      %v1354 = vsel %vm1349, %v1321, %v716
      %v1355 = vsel %vm1349, %v1322, %v718
      %v1356 = vsel %vm1349, %v1323, %v720
      %v1357 = vsel %vm1349, %v1324, %v722
      %v1358 = vsel %vm1349, %v1325, %v724
      %v1359 = vsel %vm1349, %v1326, %v726
      %v1360 = vsel %vm1349, %v1327, %v728
      %v1361 = vsel %vm1349, %v1328, %v730
      %v1362 = vsel %vm1349, %v1329, %v732
      %v1363 = vsel %vm1349, %v1330, %v734
      %v1364 = vsel %vm1349, %v1331, %v736
      %v1365 = vsel %vm1349, %v1332, %v738
      %v1366 = vsel %vm1349, %v1333, %v740
      %v1367 = vsel %vm1349, %v1334, %v742
      %v1368 = vsel %vm1349, %v1335, %v744
      %v1369 = vsel %vm1349, %v1336, %v746
      %v1370 = vsel %vm1349, %v1337, %v748
      %v1371 = vsel %vm1349, %v1338, %v750
      %v1372 = vsel %vm1349, %v1339, %v752
      %v1373 = vsel %vm1349, %v1340, %v754
      %v1374 = vsel %vm1349, %v1341, %v756
      %v1375 = vsel %vm1349, %v1342, %v758
      %v1376 = vsel %vm1349, %v1343, %v760
      %v1377 = vsel %vm1349, %v1344, %v762
      %v1378 = vsel %vm1349, %v1345, %v764
      %v1379 = vsel %vm1349, %v1346, %v766
      %v1380 = vsel %vm1349, %v1347, %v768
      %v1381 = vsel %vm1349, %v1348, %v770
      %vm1382 = vcmask 130048
      %v1383 = vsel %vm1382, %v1350, %v804
      %v1384 = vsel %vm1382, %v1351, %v806
      %v1385 = vsel %vm1382, %v1352, %v808
      %v1386 = vsel %vm1382, %v1353, %v810
      %v1387 = vsel %vm1382, %v1354, %v812
      %v1388 = vsel %vm1382, %v1355, %v814
      %v1389 = vsel %vm1382, %v1356, %v816
      %v1390 = vsel %vm1382, %v1357, %v818
      %v1391 = vsel %vm1382, %v1358, %v820
      %v1392 = vsel %vm1382, %v1359, %v822
      %v1393 = vsel %vm1382, %v1360, %v824
      %v1394 = vsel %vm1382, %v1361, %v826
      %v1395 = vsel %vm1382, %v1362, %v828
      %v1396 = vsel %vm1382, %v1363, %v830
      %v1397 = vsel %vm1382, %v1364, %v832
      %v1398 = vsel %vm1382, %v1365, %v834
      %v1399 = vsel %vm1382, %v1366, %v836
      %v1400 = vsel %vm1382, %v1367, %v838
      %v1401 = vsel %vm1382, %v1368, %v840
      %v1402 = vsel %vm1382, %v1369, %v842
      %v1403 = vsel %vm1382, %v1370, %v844
      %v1404 = vsel %vm1382, %v1371, %v846
      %v1405 = vsel %vm1382, %v1372, %v848
      %v1406 = vsel %vm1382, %v1373, %v850
      %v1407 = vsel %vm1382, %v1374, %v852
      %v1408 = vsel %vm1382, %v1375, %v854
      %v1409 = vsel %vm1382, %v1376, %v856
      %v1410 = vsel %vm1382, %v1377, %v858
      %v1411 = vsel %vm1382, %v1378, %v860
      %v1412 = vsel %vm1382, %v1379, %v862
      %v1413 = vsel %vm1382, %v1380, %v864
      %v1414 = vsel %vm1382, %v1381, %v866
      %vm1415 = vcmask 162816
      %v1416 = vsel %vm1415, %v1383, %v900
      %v1417 = vsel %vm1415, %v1384, %v902
      %v1418 = vsel %vm1415, %v1385, %v904
      %v1419 = vsel %vm1415, %v1386, %v906
      %v1420 = vsel %vm1415, %v1387, %v908
      %v1421 = vsel %vm1415, %v1388, %v910
      %v1422 = vsel %vm1415, %v1389, %v912
      %v1423 = vsel %vm1415, %v1390, %v914
      %v1424 = vsel %vm1415, %v1391, %v916
      %v1425 = vsel %vm1415, %v1392, %v918
      %v1426 = vsel %vm1415, %v1393, %v920
      %v1427 = vsel %vm1415, %v1394, %v922
      %v1428 = vsel %vm1415, %v1395, %v924
      %v1429 = vsel %vm1415, %v1396, %v926
      %v1430 = vsel %vm1415, %v1397, %v928
      %v1431 = vsel %vm1415, %v1398, %v930
      %v1432 = vsel %vm1415, %v1399, %v932
      %v1433 = vsel %vm1415, %v1400, %v934
      %v1434 = vsel %vm1415, %v1401, %v936
      %v1435 = vsel %vm1415, %v1402, %v938
      %v1436 = vsel %vm1415, %v1403, %v940
      %v1437 = vsel %vm1415, %v1404, %v942
      %v1438 = vsel %vm1415, %v1405, %v944
      %v1439 = vsel %vm1415, %v1406, %v946
      %v1440 = vsel %vm1415, %v1407, %v948
      %v1441 = vsel %vm1415, %v1408, %v950
      %v1442 = vsel %vm1415, %v1409, %v952
      %v1443 = vsel %vm1415, %v1410, %v954
      %v1444 = vsel %vm1415, %v1411, %v956
      %v1445 = vsel %vm1415, %v1412, %v958
      %v1446 = vsel %vm1415, %v1413, %v960
      %v1447 = vsel %vm1415, %v1414, %v962
      %vm1448 = vcmask 195584
      %v1449 = vsel %vm1448, %v1416, %v996
      %v1450 = vsel %vm1448, %v1417, %v998
      %v1451 = vsel %vm1448, %v1418, %v1000
      %v1452 = vsel %vm1448, %v1419, %v1002
      %v1453 = vsel %vm1448, %v1420, %v1004
      %v1454 = vsel %vm1448, %v1421, %v1006
      %v1455 = vsel %vm1448, %v1422, %v1008
      %v1456 = vsel %vm1448, %v1423, %v1010
      %v1457 = vsel %vm1448, %v1424, %v1012
      %v1458 = vsel %vm1448, %v1425, %v1014
      %v1459 = vsel %vm1448, %v1426, %v1016
      %v1460 = vsel %vm1448, %v1427, %v1018
      %v1461 = vsel %vm1448, %v1428, %v1020
      %v1462 = vsel %vm1448, %v1429, %v1022
      %v1463 = vsel %vm1448, %v1430, %v1024
      %v1464 = vsel %vm1448, %v1431, %v1026
      %v1465 = vsel %vm1448, %v1432, %v1028
      %v1466 = vsel %vm1448, %v1433, %v1030
      %v1467 = vsel %vm1448, %v1434, %v1032
      %v1468 = vsel %vm1448, %v1435, %v1034
      %v1469 = vsel %vm1448, %v1436, %v1036
      %v1470 = vsel %vm1448, %v1437, %v1038
      %v1471 = vsel %vm1448, %v1438, %v1040
      %v1472 = vsel %vm1448, %v1439, %v1042
      %v1473 = vsel %vm1448, %v1440, %v1044
      %v1474 = vsel %vm1448, %v1441, %v1046
      %v1475 = vsel %vm1448, %v1442, %v1048
      %v1476 = vsel %vm1448, %v1443, %v1050
      %v1477 = vsel %vm1448, %v1444, %v1052
      %v1478 = vsel %vm1448, %v1445, %v1054
      %v1479 = vsel %vm1448, %v1446, %v1056
      %v1480 = vsel %vm1448, %v1447, %v1058
      %vm1481 = vcmask 228352
      %v1482 = vsel %vm1481, %v1449, %v1092
      %v1483 = vsel %vm1481, %v1450, %v1094
      %v1484 = vsel %vm1481, %v1451, %v1096
      %v1485 = vsel %vm1481, %v1452, %v1098
      %v1486 = vsel %vm1481, %v1453, %v1100
      %v1487 = vsel %vm1481, %v1454, %v1102
      %v1488 = vsel %vm1481, %v1455, %v1104
      %v1489 = vsel %vm1481, %v1456, %v1106
      %v1490 = vsel %vm1481, %v1457, %v1108
      %v1491 = vsel %vm1481, %v1458, %v1110
      %v1492 = vsel %vm1481, %v1459, %v1112
      %v1493 = vsel %vm1481, %v1460, %v1114
      %v1494 = vsel %vm1481, %v1461, %v1116
      %v1495 = vsel %vm1481, %v1462, %v1118
      %v1496 = vsel %vm1481, %v1463, %v1120
      %v1497 = vsel %vm1481, %v1464, %v1122
      %v1498 = vsel %vm1481, %v1465, %v1124
      %v1499 = vsel %vm1481, %v1466, %v1126
      %v1500 = vsel %vm1481, %v1467, %v1128
      %v1501 = vsel %vm1481, %v1468, %v1130
      %v1502 = vsel %vm1481, %v1469, %v1132
      %v1503 = vsel %vm1481, %v1470, %v1134
      %v1504 = vsel %vm1481, %v1471, %v1136
      %v1505 = vsel %vm1481, %v1472, %v1138
      %v1506 = vsel %vm1481, %v1473, %v1140
      %v1507 = vsel %vm1481, %v1474, %v1142
      %v1508 = vsel %vm1481, %v1475, %v1144
      %v1509 = vsel %vm1481, %v1476, %v1146
      %v1510 = vsel %vm1481, %v1477, %v1148
      %v1511 = vsel %vm1481, %v1478, %v1150
      %v1512 = vsel %vm1481, %v1479, %v1152
      %v1513 = vsel %vm1481, %v1480, %v1154
      %vm1514 = vcmask 261120
      %v1515 = vsel %vm1514, %v1482, %v1188
      %v1516 = vsel %vm1514, %v1483, %v1190
      %v1517 = vsel %vm1514, %v1484, %v1192
      %v1518 = vsel %vm1514, %v1485, %v1194
      %v1519 = vsel %vm1514, %v1486, %v1196
      %v1520 = vsel %vm1514, %v1487, %v1198
      %v1521 = vsel %vm1514, %v1488, %v1200
      %v1522 = vsel %vm1514, %v1489, %v1202
      %v1523 = vsel %vm1514, %v1490, %v1204
      %v1524 = vsel %vm1514, %v1491, %v1206
      %v1525 = vsel %vm1514, %v1492, %v1208
      %v1526 = vsel %vm1514, %v1493, %v1210
      %v1527 = vsel %vm1514, %v1494, %v1212
      %v1528 = vsel %vm1514, %v1495, %v1214
      %v1529 = vsel %vm1514, %v1496, %v1216
      %v1530 = vsel %vm1514, %v1497, %v1218
      %v1531 = vsel %vm1514, %v1498, %v1220
      %v1532 = vsel %vm1514, %v1499, %v1222
      %v1533 = vsel %vm1514, %v1500, %v1224
      %v1534 = vsel %vm1514, %v1501, %v1226
      %v1535 = vsel %vm1514, %v1502, %v1228
      %v1536 = vsel %vm1514, %v1503, %v1230
      %v1537 = vsel %vm1514, %v1504, %v1232
      %v1538 = vsel %vm1514, %v1505, %v1234
      %v1539 = vsel %vm1514, %v1506, %v1236
      %v1540 = vsel %vm1514, %v1507, %v1238
      %v1541 = vsel %vm1514, %v1508, %v1240
      %v1542 = vsel %vm1514, %v1509, %v1242
      %v1543 = vsel %vm1514, %v1510, %v1244
      %v1544 = vsel %vm1514, %v1511, %v1246
      %v1545 = vsel %vm1514, %v1512, %v1248
      %v1546 = vsel %vm1514, %v1513, %v1250
      %v1547 = vld [vmem:[%s1] sm:$0xff]
      %v1548 = vld [vmem:[%s1 + $0x8] sm:$0xff]
      %v1549 = vld [vmem:[%s1 + $0x10] sm:$0xff]
      %v1550 = vld [vmem:[%s1 + $0x18] sm:$0xff]
      %v1551 = vld [vmem:[%s1 + $0x20] sm:$0xf]
      %v1552 = vld [vmem:[%s2] sm:$0x1]
      %v1554 = vlaneseq
      %v1555 = vshrl.u32 %v1554, 7
      %v1556 = vsub.s32 0, %v1555
      %v1557 = vrot.slane %v1552, %v1556
      %vm1559 = vcmask 293888
      %v1561 = vsel %vm1559, %v1515, 0
      %v1564 = vsel %vm1559, %v1516, 0
      %v1567 = vsel %vm1559, %v1517, 0
      %v1570 = vsel %vm1559, %v1518, 0
      %v1573 = vsel %vm1559, %v1519, 0
      %v1576 = vsel %vm1559, %v1520, 0
      %v1579 = vsel %vm1559, %v1521, 0
      %v1582 = vsel %vm1559, %v1522, 0
      %v1585 = vsel %vm1559, %v1523, 0
      %v1588 = vsel %vm1559, %v1524, 0
      %v1591 = vsel %vm1559, %v1525, 0
      %v1594 = vsel %vm1559, %v1526, 0
      %v1597 = vsel %vm1559, %v1527, 0
      %v1600 = vsel %vm1559, %v1528, 0
      %v1603 = vsel %vm1559, %v1529, 0
      %v1606 = vsel %vm1559, %v1530, 0
      %v1609 = vsel %vm1559, %v1531, 0
      %v1612 = vsel %vm1559, %v1532, 0
      %v1615 = vsel %vm1559, %v1533, 0
      %v1618 = vsel %vm1559, %v1534, 0
      %v1621 = vsel %vm1559, %v1535, 0
      %v1624 = vsel %vm1559, %v1536, 0
      %v1627 = vsel %vm1559, %v1537, 0
      %v1630 = vsel %vm1559, %v1538, 0
      %v1633 = vsel %vm1559, %v1539, 0
      %v1636 = vsel %vm1559, %v1540, 0
      %v1639 = vsel %vm1559, %v1541, 0
      %v1642 = vsel %vm1559, %v1542, 0
      %v1645 = vsel %vm1559, %v1543, 0
      %v1648 = vsel %vm1559, %v1544, 0
      %v1651 = vsel %vm1559, %v1545, 0
      %v1654 = vsel %vm1559, %v1546, 0
      %vm1656 = vcmask 1043456
      %v1658 = vsel %vm1656, %v1551, 0
      %1660 = vmatprep.subr.mxu0 0.0
      %1661 = vmatpush1.msra.mxu0 %v1547
      %1662 = vmatprep.subr.mxu0 0.0
      %1663 = vmatpush1.msra.mxu0 %v1548
      %1664 = vmatprep.subr.mxu0 0.0
      %1665 = vmatpush1.msra.mxu0 %v1549
      %1666 = vmatprep.subr.mxu0 0.0
      %1667 = vmatpush1.msra.mxu0 %v1550
      %1668 = vmatprep.subr.mxu0 0.0
      %1669 = vmatpush1.msra.mxu0 %v1658
      %1670 = vmatprep.subr.mxu0 0.0
      %1671 = vmatpush1.msra.mxu0 0.0
      %1672 = vmatprep.subr.mxu0 0.0
      %1673 = vmatpush1.msra.mxu0 0.0
      %1674 = vmatprep.subr.mxu0 0.0
      %1675 = vmatpush1.msra.mxu0 0.0
      %1676 = vmatprep.subr.mxu0 0.0
      %1677 = vmatpush1.msra.mxu0 0.0
      %1678 = vmatprep.subr.mxu0 0.0
      %1679 = vmatpush1.msra.mxu0 0.0
      %1680 = vmatprep.subr.mxu0 0.0
      %1681 = vmatpush1.msra.mxu0 0.0
      %1682 = vmatprep.subr.mxu0 0.0
      %1683 = vmatpush1.msra.mxu0 0.0
      %1684 = vmatprep.subr.mxu0 0.0
      %1685 = vmatpush1.msra.mxu0 0.0
      %1686 = vmatprep.subr.mxu0 0.0
      %1687 = vmatpush1.msra.mxu0 0.0
      %1688 = vmatprep.subr.mxu0 0.0
      %1689 = vmatpush1.msra.mxu0 0.0
      %1690 = vmatprep.subr.mxu0 0.0
      %1691 = vmatpush1.msra.mxu0 0.0
      %1692 = vmatprep.subr.mxu0 0.0
      %1693 = vmatpush1.msra.mxu0 0.0
      %1694 = vmatprep.subr.mxu0 0.0
      %1695 = vmatpush1.msra.mxu0 0.0
      %1696 = vmatprep.subr.mxu0 0.0
      %1697 = vmatpush1.msra.mxu0 0.0
      %1698 = vmatprep.subr.mxu0 0.0
      %1699 = vmatpush1.msra.mxu0 0.0
      %1700 = vmatprep.subr.mxu0 0.0
      %1701 = vmatpush1.msra.mxu0 0.0
      %1702 = vmatprep.subr.mxu0 0.0
      %1703 = vmatpush1.msra.mxu0 0.0
      %1704 = vmatprep.subr.mxu0 0.0
      %1705 = vmatpush1.msra.mxu0 0.0
      %1706 = vmatprep.subr.mxu0 0.0
      %1707 = vmatpush1.msra.mxu0 0.0
      %1708 = vmatprep.subr.mxu0 0.0
      %1709 = vmatpush1.msra.mxu0 0.0
      %1710 = vmatprep.subr.mxu0 0.0
      %1711 = vmatpush1.msra.mxu0 0.0
      %1712 = vmatprep.subr.mxu0 0.0
      %1713 = vmatpush1.msra.mxu0 0.0
      %1714 = vmatprep.subr.mxu0 0.0
      %1715 = vmatpush1.msra.mxu0 0.0
      %1716 = vmatprep.subr.mxu0 0.0
      %1717 = vmatpush1.msra.mxu0 0.0
      %1718 = vmatprep.subr.mxu0 0.0
      %1719 = vmatpush1.msra.mxu0 0.0
      %1720 = vmatprep.subr.mxu0 0.0
      %1721 = vmatpush1.msra.mxu0 0.0
      %1722 = vmatprep.subr.mxu0 0.0
      %1723 = vmatpush1.msra.mxu0 0.0
      %1724 = vmatprep.mubr.f32.mxu0 0.0
      %1725 = vmatmul.mubr.f32.gmra.mrb[0].mxu0 %v1561
      %v1726 = vpop.f32.mrb[0].mxu0
      %v1727 = vadd.f32 %v1557, %v1726
      %v1728 = vpop.f32.mrb[0].mxu0
      %1729 = vmatprep.mubr.f32.mxu0 0.0
      %1730 = vmatmul.mubr.f32.gmra.mrb[0].mxu0 %v1564
      %v1731 = vpop.f32.mrb[0].mxu0
      %v1732 = vadd.f32 %v1557, %v1731
      %v1733 = vpop.f32.mrb[0].mxu0
      %1734 = vmatprep.mubr.f32.mxu0 0.0
      %1735 = vmatmul.mubr.f32.gmra.mrb[0].mxu0 %v1567
      %v1736 = vpop.f32.mrb[0].mxu0
      %v1737 = vadd.f32 %v1557, %v1736
      %v1738 = vpop.f32.mrb[0].mxu0
      %1739 = vmatprep.mubr.f32.mxu0 0.0
      %1740 = vmatmul.mubr.f32.gmra.mrb[0].mxu0 %v1570
      %v1741 = vpop.f32.mrb[0].mxu0
      %v1742 = vadd.f32 %v1557, %v1741
      %v1743 = vpop.f32.mrb[0].mxu0
      %1744 = vmatprep.mubr.f32.mxu0 0.0
      %1745 = vmatmul.mubr.f32.gmra.mrb[0].mxu0 %v1573
      %v1746 = vpop.f32.mrb[0].mxu0
      %v1747 = vadd.f32 %v1557, %v1746
      %v1748 = vpop.f32.mrb[0].mxu0
      %1749 = vmatprep.mubr.f32.mxu0 0.0
      %1750 = vmatmul.mubr.f32.gmra.mrb[0].mxu0 %v1576
      %v1751 = vpop.f32.mrb[0].mxu0
      %v1752 = vadd.f32 %v1557, %v1751
      %v1753 = vpop.f32.mrb[0].mxu0
      %1754 = vmatprep.mubr.f32.mxu0 0.0
      %1755 = vmatmul.mubr.f32.gmra.mrb[0].mxu0 %v1579
      %v1756 = vpop.f32.mrb[0].mxu0
      %v1757 = vadd.f32 %v1557, %v1756
      %v1758 = vpop.f32.mrb[0].mxu0
      %1759 = vmatprep.mubr.f32.mxu0 0.0
      %1760 = vmatmul.mubr.f32.gmra.mrb[0].mxu0 %v1582
      %v1761 = vpop.f32.mrb[0].mxu0
      %v1762 = vadd.f32 %v1557, %v1761
      %v1763 = vpop.f32.mrb[0].mxu0
      %1764 = vmatprep.mubr.f32.mxu0 0.0
      %1765 = vmatmul.mubr.f32.gmra.mrb[0].mxu0 %v1585
      %v1766 = vpop.f32.mrb[0].mxu0
      %v1767 = vadd.f32 %v1557, %v1766
      %v1768 = vpop.f32.mrb[0].mxu0
      %1769 = vmatprep.mubr.f32.mxu0 0.0
      %1770 = vmatmul.mubr.f32.gmra.mrb[0].mxu0 %v1588
      %v1771 = vpop.f32.mrb[0].mxu0
      %v1772 = vadd.f32 %v1557, %v1771
      %v1773 = vpop.f32.mrb[0].mxu0
      %1774 = vmatprep.mubr.f32.mxu0 0.0
      %1775 = vmatmul.mubr.f32.gmra.mrb[0].mxu0 %v1591
      %v1776 = vpop.f32.mrb[0].mxu0
      %v1777 = vadd.f32 %v1557, %v1776
      %v1778 = vpop.f32.mrb[0].mxu0
      %1779 = vmatprep.mubr.f32.mxu0 0.0
      %1780 = vmatmul.mubr.f32.gmra.mrb[0].mxu0 %v1594
      %v1781 = vpop.f32.mrb[0].mxu0
      %v1782 = vadd.f32 %v1557, %v1781
      %v1783 = vpop.f32.mrb[0].mxu0
      %1784 = vmatprep.mubr.f32.mxu0 0.0
      %1785 = vmatmul.mubr.f32.gmra.mrb[0].mxu0 %v1597
      %v1786 = vpop.f32.mrb[0].mxu0
      %v1787 = vadd.f32 %v1557, %v1786
      %v1788 = vpop.f32.mrb[0].mxu0
      %1789 = vmatprep.mubr.f32.mxu0 0.0
      %1790 = vmatmul.mubr.f32.gmra.mrb[0].mxu0 %v1600
      %v1791 = vpop.f32.mrb[0].mxu0
      %v1792 = vadd.f32 %v1557, %v1791
      %v1793 = vpop.f32.mrb[0].mxu0
      %1794 = vmatprep.mubr.f32.mxu0 0.0
      %1795 = vmatmul.mubr.f32.gmra.mrb[0].mxu0 %v1603
      %v1796 = vpop.f32.mrb[0].mxu0
      %v1797 = vadd.f32 %v1557, %v1796
      %v1798 = vpop.f32.mrb[0].mxu0
      %1799 = vmatprep.mubr.f32.mxu0 0.0
      %1800 = vmatmul.mubr.f32.gmra.mrb[0].mxu0 %v1606
      %v1801 = vpop.f32.mrb[0].mxu0
      %v1802 = vadd.f32 %v1557, %v1801
      %v1803 = vpop.f32.mrb[0].mxu0
      %1804 = vmatprep.mubr.f32.mxu0 0.0
      %1805 = vmatmul.mubr.f32.gmra.mrb[0].mxu0 %v1609
      %v1806 = vpop.f32.mrb[0].mxu0
      %v1807 = vadd.f32 %v1557, %v1806
      %v1808 = vpop.f32.mrb[0].mxu0
      %1809 = vmatprep.mubr.f32.mxu0 0.0
      %1810 = vmatmul.mubr.f32.gmra.mrb[0].mxu0 %v1612
      %v1811 = vpop.f32.mrb[0].mxu0
      %v1812 = vadd.f32 %v1557, %v1811
      %v1813 = vpop.f32.mrb[0].mxu0
      %1814 = vmatprep.mubr.f32.mxu0 0.0
      %1815 = vmatmul.mubr.f32.gmra.mrb[0].mxu0 %v1615
      %v1816 = vpop.f32.mrb[0].mxu0
      %v1817 = vadd.f32 %v1557, %v1816
      %v1818 = vpop.f32.mrb[0].mxu0
      %1819 = vmatprep.mubr.f32.mxu0 0.0
      %1820 = vmatmul.mubr.f32.gmra.mrb[0].mxu0 %v1618
      %v1821 = vpop.f32.mrb[0].mxu0
      %v1822 = vadd.f32 %v1557, %v1821
      %v1823 = vpop.f32.mrb[0].mxu0
      %1824 = vmatprep.mubr.f32.mxu0 0.0
      %1825 = vmatmul.mubr.f32.gmra.mrb[0].mxu0 %v1621
      %v1826 = vpop.f32.mrb[0].mxu0
      %v1827 = vadd.f32 %v1557, %v1826
      %v1828 = vpop.f32.mrb[0].mxu0
      %1829 = vmatprep.mubr.f32.mxu0 0.0
      %1830 = vmatmul.mubr.f32.gmra.mrb[0].mxu0 %v1624
      %v1831 = vpop.f32.mrb[0].mxu0
      %v1832 = vadd.f32 %v1557, %v1831
      %v1833 = vpop.f32.mrb[0].mxu0
      %1834 = vmatprep.mubr.f32.mxu0 0.0
      %1835 = vmatmul.mubr.f32.gmra.mrb[0].mxu0 %v1627
      %v1836 = vpop.f32.mrb[0].mxu0
      %v1837 = vadd.f32 %v1557, %v1836
      %v1838 = vpop.f32.mrb[0].mxu0
      %1839 = vmatprep.mubr.f32.mxu0 0.0
      %1840 = vmatmul.mubr.f32.gmra.mrb[0].mxu0 %v1630
      %v1841 = vpop.f32.mrb[0].mxu0
      %v1842 = vadd.f32 %v1557, %v1841
      %v1843 = vpop.f32.mrb[0].mxu0
      %1844 = vmatprep.mubr.f32.mxu0 0.0
      %1845 = vmatmul.mubr.f32.gmra.mrb[0].mxu0 %v1633
      %v1846 = vpop.f32.mrb[0].mxu0
      %v1847 = vadd.f32 %v1557, %v1846
      %v1848 = vpop.f32.mrb[0].mxu0
      %1849 = vmatprep.mubr.f32.mxu0 0.0
      %1850 = vmatmul.mubr.f32.gmra.mrb[0].mxu0 %v1636
      %v1851 = vpop.f32.mrb[0].mxu0
      %v1852 = vadd.f32 %v1557, %v1851
      %v1853 = vpop.f32.mrb[0].mxu0
      %1854 = vmatprep.mubr.f32.mxu0 0.0
      %1855 = vmatmul.mubr.f32.gmra.mrb[0].mxu0 %v1639
      %v1856 = vpop.f32.mrb[0].mxu0
      %v1857 = vadd.f32 %v1557, %v1856
      %v1858 = vpop.f32.mrb[0].mxu0
      %1859 = vmatprep.mubr.f32.mxu0 0.0
      %1860 = vmatmul.mubr.f32.gmra.mrb[0].mxu0 %v1642
      %v1861 = vpop.f32.mrb[0].mxu0
      %v1862 = vadd.f32 %v1557, %v1861
      %v1863 = vpop.f32.mrb[0].mxu0
      %1864 = vmatprep.mubr.f32.mxu0 0.0
      %1865 = vmatmul.mubr.f32.gmra.mrb[0].mxu0 %v1645
      %v1866 = vpop.f32.mrb[0].mxu0
      %v1867 = vadd.f32 %v1557, %v1866
      %v1868 = vpop.f32.mrb[0].mxu0
      %1869 = vmatprep.mubr.f32.mxu0 0.0
      %1870 = vmatmul.mubr.f32.gmra.mrb[0].mxu0 %v1648
      %v1871 = vpop.f32.mrb[0].mxu0
      %v1872 = vadd.f32 %v1557, %v1871
      %v1873 = vpop.f32.mrb[0].mxu0
      %1874 = vmatprep.mubr.f32.mxu0 0.0
      %1875 = vmatmul.mubr.f32.gmra.mrb[0].mxu0 %v1651
      %v1876 = vpop.f32.mrb[0].mxu0
      %v1877 = vadd.f32 %v1557, %v1876
      %v1878 = vpop.f32.mrb[0].mxu0
      %1879 = vmatprep.mubr.f32.mxu0 0.0
      %1880 = vmatmul.mubr.f32.gmra.mrb[0].mxu0 %v1654
      %v1881 = vpop.f32.mrb[0].mxu0
      %v1882 = vadd.f32 %v1557, %v1881
      %v1883 = vpop.f32.mrb[0].mxu0
      %1884 = vdwg.mxu0
      %v1885 = vmax.f32 %v1727, 0.0
      %v1886 = vmax.f32 %v1732, 0.0
      %v1887 = vmax.f32 %v1737, 0.0
      %v1888 = vmax.f32 %v1742, 0.0
      %v1889 = vmax.f32 %v1747, 0.0
      %v1890 = vmax.f32 %v1752, 0.0
      %v1891 = vmax.f32 %v1757, 0.0
      %v1892 = vmax.f32 %v1762, 0.0
      %v1893 = vmax.f32 %v1767, 0.0
      %v1894 = vmax.f32 %v1772, 0.0
      %v1895 = vmax.f32 %v1777, 0.0
      %v1896 = vmax.f32 %v1782, 0.0
      %v1897 = vmax.f32 %v1787, 0.0
      %v1898 = vmax.f32 %v1792, 0.0
      %v1899 = vmax.f32 %v1797, 0.0
      %v1900 = vmax.f32 %v1802, 0.0
      %v1901 = vmax.f32 %v1807, 0.0
      %v1902 = vmax.f32 %v1812, 0.0
      %v1903 = vmax.f32 %v1817, 0.0
      %v1904 = vmax.f32 %v1822, 0.0
      %v1905 = vmax.f32 %v1827, 0.0
      %v1906 = vmax.f32 %v1832, 0.0
      %v1907 = vmax.f32 %v1837, 0.0
      %v1908 = vmax.f32 %v1842, 0.0
      %v1909 = vmax.f32 %v1847, 0.0
      %v1910 = vmax.f32 %v1852, 0.0
      %v1911 = vmax.f32 %v1857, 0.0
      %v1912 = vmax.f32 %v1862, 0.0
      %v1913 = vmax.f32 %v1867, 0.0
      %v1914 = vmax.f32 %v1872, 0.0
      %v1915 = vmax.f32 %v1877, 0.0
      %v1916 = vmax.f32 %v1882, 0.0
      %1917 = vst [vmem:[#allocation2] sm:$0xff] 0.0
      %1918 = vst [vmem:[#allocation2 + $0x8] sm:$0xff] 0.0
      %1919 = vst [vmem:[#allocation2 + $0x10] sm:$0x3] 0.0
      %1920 = vst [vmem:[#allocation2 + $0x18] sm:$0xff] 0.0
      %1921 = vst [vmem:[#allocation2 + $0x20] sm:$0xff] 0.0
      %1922 = vst [vmem:[#allocation2 + $0x28] sm:$0x3] 0.0
      %1923 = vst [vmem:[#allocation2 + $0x30] sm:$0xff] 0.0
      %1924 = vst [vmem:[#allocation2 + $0x38] sm:$0xff] 0.0
      %1925 = vst [vmem:[#allocation2 + $0x40] sm:$0x3] 0.0
      %1926 = vst [vmem:[#allocation2 + $0x48] sm:$0xff] 0.0
      %1927 = vst [vmem:[#allocation2 + $0x50] sm:$0xff] 0.0
      %1928 = vst [vmem:[#allocation2 + $0x58] sm:$0x3] 0.0
      %1929 = vst [vmem:[#allocation2 + $0x60] sm:$0xff] 0.0
      %1930 = vst [vmem:[#allocation2 + $0x68] sm:$0xff] 0.0
      %1931 = vst [vmem:[#allocation2 + $0x70] sm:$0x3] 0.0
      %1932 = vst [vmem:[#allocation2 + $0x78] sm:$0xff] 0.0
      %1933 = vst [vmem:[#allocation2 + $0x80] sm:$0xff] 0.0
      %1934 = vst [vmem:[#allocation2 + $0x88] sm:$0x3] 0.0
      %1935 = vst [vmem:[#allocation2 + $0x90] sm:$0xff] 0.0
      %1936 = vst [vmem:[#allocation2 + $0x98] sm:$0xff] 0.0
      %1937 = vst [vmem:[#allocation2 + $0xa0] sm:$0x3] 0.0
      %1938 = vst [vmem:[#allocation2 + $0xa8] sm:$0xff] 0.0
      %1939 = vst [vmem:[#allocation2 + $0xb0] sm:$0xff] 0.0
      %1940 = vst [vmem:[#allocation2 + $0xb8] sm:$0x3] 0.0
      %1941 = vst [vmem:[#allocation2 + $0xc0] sm:$0xff] 0.0
      %1942 = vst [vmem:[#allocation2 + $0xc8] sm:$0xff] 0.0
      %1943 = vst [vmem:[#allocation2 + $0xd0] sm:$0x3] 0.0
      %1944 = vst [vmem:[#allocation2 + $0xd8] sm:$0xff] 0.0
      %1945 = vst [vmem:[#allocation2 + $0xe0] sm:$0xff] 0.0
      %1946 = vst [vmem:[#allocation2 + $0xe8] sm:$0x3] 0.0
      %1947 = vst [vmem:[#allocation2 + $0xf0] sm:$0xff] 0.0
      %1948 = vst [vmem:[#allocation2 + $0xf8] sm:$0xff] 0.0
      %1949 = vst [vmem:[#allocation2 + $0x100] sm:$0x3] 0.0
      %1950 = vst [vmem:[#allocation2 + $0x108] sm:$0xff] 0.0
      %1951 = vst [vmem:[#allocation2 + $0x110] sm:$0xff] 0.0
      %1952 = vst [vmem:[#allocation2 + $0x118] sm:$0x3] 0.0
      %1953 = vst [vmem:[#allocation2 + $0x120] sm:$0xff] 0.0
      %1954 = vst [vmem:[#allocation2 + $0x128] sm:$0xff] 0.0
      %1955 = vst [vmem:[#allocation2 + $0x130] sm:$0x3] 0.0
      %1956 = vst [vmem:[#allocation2 + $0x138] sm:$0xff] 0.0
      %1957 = vst [vmem:[#allocation2 + $0x140] sm:$0xff] 0.0
      %1958 = vst [vmem:[#allocation2 + $0x148] sm:$0x3] 0.0
      %1959 = vst [vmem:[#allocation2 + $0x150] sm:$0xff] 0.0
      %1960 = vst [vmem:[#allocation2 + $0x158] sm:$0xff] 0.0
      %1961 = vst [vmem:[#allocation2 + $0x160] sm:$0x3] 0.0
      %1962 = vst [vmem:[#allocation2 + $0x168] sm:$0xff] 0.0
      %1963 = vst [vmem:[#allocation2 + $0x170] sm:$0xff] 0.0
      %1964 = vst [vmem:[#allocation2 + $0x178] sm:$0x3] 0.0
      %1965 = vst [vmem:[#allocation2 + $0x180] sm:$0xff] 0.0
      %1966 = vst [vmem:[#allocation2 + $0x188] sm:$0xff] 0.0
      %1967 = vst [vmem:[#allocation2 + $0x190] sm:$0x3] 0.0
      %1968 = vst [vmem:[#allocation2 + $0x198] sm:$0xff] 0.0
      %1969 = vst [vmem:[#allocation2 + $0x1a0] sm:$0xff] 0.0
      %1970 = vst [vmem:[#allocation2 + $0x1a8] sm:$0x3] 0.0
      %s1971 = scalar_lea.vmem [#allocation2], 24
      %1972 = vst [vmem:[%s1971 + $0x1] sm:$0xff] %v1885
      %1973 = vst [vmem:[%s1971 + $0x9] sm:$0xff] %v1886
      %1974 = vst [vmem:[%s1971 + $0x19] sm:$0xff] %v1887
      %1975 = vst [vmem:[%s1971 + $0x21] sm:$0xff] %v1888
      %1976 = vst [vmem:[%s1971 + $0x31] sm:$0xff] %v1889
      %1977 = vst [vmem:[%s1971 + $0x39] sm:$0xff] %v1890
      %1978 = vst [vmem:[%s1971 + $0x49] sm:$0xff] %v1891
      %1979 = vst [vmem:[%s1971 + $0x51] sm:$0xff] %v1892
      %1980 = vst [vmem:[%s1971 + $0x61] sm:$0xff] %v1893
      %1981 = vst [vmem:[%s1971 + $0x69] sm:$0xff] %v1894
      %1982 = vst [vmem:[%s1971 + $0x79] sm:$0xff] %v1895
      %1983 = vst [vmem:[%s1971 + $0x81] sm:$0xff] %v1896
      %1984 = vst [vmem:[%s1971 + $0x91] sm:$0xff] %v1897
      %1985 = vst [vmem:[%s1971 + $0x99] sm:$0xff] %v1898
      %1986 = vst [vmem:[%s1971 + $0xa9] sm:$0xff] %v1899
      %1987 = vst [vmem:[%s1971 + $0xb1] sm:$0xff] %v1900
      %1988 = vst [vmem:[%s1971 + $0xc1] sm:$0xff] %v1901
      %1989 = vst [vmem:[%s1971 + $0xc9] sm:$0xff] %v1902
      %1990 = vst [vmem:[%s1971 + $0xd9] sm:$0xff] %v1903
      %1991 = vst [vmem:[%s1971 + $0xe1] sm:$0xff] %v1904
      %1992 = vst [vmem:[%s1971 + $0xf1] sm:$0xff] %v1905
      %1993 = vst [vmem:[%s1971 + $0xf9] sm:$0xff] %v1906
      %1994 = vst [vmem:[%s1971 + $0x109] sm:$0xff] %v1907
      %1995 = vst [vmem:[%s1971 + $0x111] sm:$0xff] %v1908
      %1996 = vst [vmem:[%s1971 + $0x121] sm:$0xff] %v1909
      %1997 = vst [vmem:[%s1971 + $0x129] sm:$0xff] %v1910
      %1998 = vst [vmem:[%s1971 + $0x139] sm:$0xff] %v1911
      %1999 = vst [vmem:[%s1971 + $0x141] sm:$0xff] %v1912
      %2000 = vst [vmem:[%s1971 + $0x151] sm:$0xff] %v1913
      %2001 = vst [vmem:[%s1971 + $0x159] sm:$0xff] %v1914
      %2002 = vst [vmem:[%s1971 + $0x169] sm:$0xff] %v1915
      %2003 = vst [vmem:[%s1971 + $0x171] sm:$0xff] %v1916
      %v2004 = vld [vmem:[#allocation2] sm:$0xff]
      %v2005 = vld [vmem:[#allocation2 + $0x8] sm:$0xff]
      %v2006 = vld [vmem:[#allocation2 + $0x18] sm:$0xff]
      %v2007 = vld [vmem:[#allocation2 + $0x20] sm:$0xff]
      %v2008 = vld [vmem:[#allocation2 + $0x30] sm:$0xff]
      %v2009 = vld [vmem:[#allocation2 + $0x38] sm:$0xff]
      %v2010 = vld [vmem:[#allocation2 + $0x48] sm:$0xff]
      %v2011 = vld [vmem:[#allocation2 + $0x50] sm:$0xff]
      %v2012 = vld [vmem:[#allocation2 + $0x60] sm:$0xff]
      %v2013 = vld [vmem:[#allocation2 + $0x68] sm:$0xff]
      %v2014 = vld [vmem:[#allocation2 + $0x78] sm:$0xff]
      %v2015 = vld [vmem:[#allocation2 + $0x80] sm:$0xff]
      %v2016 = vld [vmem:[#allocation2 + $0x90] sm:$0xff]
      %v2017 = vld [vmem:[#allocation2 + $0x98] sm:$0xff]
      %v2018 = vld [vmem:[#allocation2 + $0xa8] sm:$0xff]
      %v2019 = vld [vmem:[#allocation2 + $0xb0] sm:$0xff]
      %v2020 = vld [vmem:[#allocation2 + $0xc0] sm:$0xff]
      %v2021 = vld [vmem:[#allocation2 + $0xc8] sm:$0xff]
      %v2022 = vld [vmem:[#allocation2 + $0xd8] sm:$0xff]
      %v2023 = vld [vmem:[#allocation2 + $0xe0] sm:$0xff]
      %v2024 = vld [vmem:[#allocation2 + $0xf0] sm:$0xff]
      %v2025 = vld [vmem:[#allocation2 + $0xf8] sm:$0xff]
      %v2026 = vld [vmem:[#allocation2 + $0x108] sm:$0xff]
      %v2027 = vld [vmem:[#allocation2 + $0x110] sm:$0xff]
      %v2028 = vld [vmem:[#allocation2 + $0x120] sm:$0xff]
      %v2029 = vld [vmem:[#allocation2 + $0x128] sm:$0xff]
      %v2030 = vld [vmem:[#allocation2 + $0x138] sm:$0xff]
      %v2031 = vld [vmem:[#allocation2 + $0x140] sm:$0xff]
      %v2032 = vld [vmem:[#allocation2 + $0x150] sm:$0xff]
      %v2033 = vld [vmem:[#allocation2 + $0x158] sm:$0xff]
      %v2034 = vld [vmem:[#allocation2 + $0x168] sm:$0xff]
      %v2035 = vld [vmem:[#allocation2 + $0x170] sm:$0xff]
      %v2036 = vld [vmem:[%s3] sm:$0xff]
      %v2037 = vld [vmem:[%s3 + $0x8] sm:$0xff]
      %v2038 = vld [vmem:[%s3 + $0x10] sm:$0xff]
      %v2039 = vld [vmem:[%s3 + $0x18] sm:$0xff]
      %v2040 = vld [vmem:[%s3 + $0x20] sm:$0xff]
      %v2041 = vld [vmem:[%s3 + $0x28] sm:$0xff]
      %v2042 = vld [vmem:[%s3 + $0x30] sm:$0xff]
      %v2043 = vld [vmem:[%s3 + $0x38] sm:$0xff]
      %v2044 = vld [vmem:[%s3 + $0x40] sm:$0xff]
      %v2045 = vld [vmem:[%s3 + $0x48] sm:$0xff]
      %v2046 = vld [vmem:[%s3 + $0x50] sm:$0xff]
      %v2047 = vld [vmem:[%s3 + $0x58] sm:$0xff]
      %v2048 = vld [vmem:[%s3 + $0x60] sm:$0xff]
      %v2049 = vld [vmem:[%s3 + $0x68] sm:$0xff]
      %v2050 = vld [vmem:[%s3 + $0x70] sm:$0xff]
      %v2051 = vld [vmem:[%s3 + $0x78] sm:$0xff]
      %v2052 = vld [vmem:[#allocation2 + $0x1] sm:$0xff]
      %v2053 = vld [vmem:[#allocation2 + $0x9] sm:$0xff]
      %v2054 = vld [vmem:[#allocation2 + $0x19] sm:$0xff]
      %v2055 = vld [vmem:[#allocation2 + $0x21] sm:$0xff]
      %v2056 = vld [vmem:[#allocation2 + $0x31] sm:$0xff]
      %v2057 = vld [vmem:[#allocation2 + $0x39] sm:$0xff]
      %v2058 = vld [vmem:[#allocation2 + $0x49] sm:$0xff]
      %v2059 = vld [vmem:[#allocation2 + $0x51] sm:$0xff]
      %v2060 = vld [vmem:[#allocation2 + $0x61] sm:$0xff]
      %v2061 = vld [vmem:[#allocation2 + $0x69] sm:$0xff]
      %v2062 = vld [vmem:[#allocation2 + $0x79] sm:$0xff]
      %v2063 = vld [vmem:[#allocation2 + $0x81] sm:$0xff]
      %v2064 = vld [vmem:[#allocation2 + $0x91] sm:$0xff]
      %v2065 = vld [vmem:[#allocation2 + $0x99] sm:$0xff]
      %v2066 = vld [vmem:[#allocation2 + $0xa9] sm:$0xff]
      %v2067 = vld [vmem:[#allocation2 + $0xb1] sm:$0xff]
      %v2068 = vld [vmem:[#allocation2 + $0xc1] sm:$0xff]
      %v2069 = vld [vmem:[#allocation2 + $0xc9] sm:$0xff]
      %v2070 = vld [vmem:[#allocation2 + $0xd9] sm:$0xff]
      %v2071 = vld [vmem:[#allocation2 + $0xe1] sm:$0xff]
      %v2072 = vld [vmem:[#allocation2 + $0xf1] sm:$0xff]
      %v2073 = vld [vmem:[#allocation2 + $0xf9] sm:$0xff]
      %v2074 = vld [vmem:[#allocation2 + $0x109] sm:$0xff]
      %v2075 = vld [vmem:[#allocation2 + $0x111] sm:$0xff]
      %v2076 = vld [vmem:[#allocation2 + $0x121] sm:$0xff]
      %v2077 = vld [vmem:[#allocation2 + $0x129] sm:$0xff]
      %v2078 = vld [vmem:[#allocation2 + $0x139] sm:$0xff]
      %v2079 = vld [vmem:[#allocation2 + $0x141] sm:$0xff]
      %v2080 = vld [vmem:[#allocation2 + $0x151] sm:$0xff]
      %v2081 = vld [vmem:[#allocation2 + $0x159] sm:$0xff]
      %v2082 = vld [vmem:[#allocation2 + $0x169] sm:$0xff]
      %v2083 = vld [vmem:[#allocation2 + $0x171] sm:$0xff]
      %s2084 = scalar_lea.vmem %s3, 128
      %v2085 = vld [vmem:[%s2084] sm:$0xff]
      %v2086 = vld [vmem:[%s2084 + $0x8] sm:$0xff]
      %v2087 = vld [vmem:[%s2084 + $0x10] sm:$0xff]
      %v2088 = vld [vmem:[%s2084 + $0x18] sm:$0xff]
      %v2089 = vld [vmem:[%s2084 + $0x20] sm:$0xff]
      %v2090 = vld [vmem:[%s2084 + $0x28] sm:$0xff]
      %v2091 = vld [vmem:[%s2084 + $0x30] sm:$0xff]
      %v2092 = vld [vmem:[%s2084 + $0x38] sm:$0xff]
      %v2093 = vld [vmem:[%s2084 + $0x40] sm:$0xff]
      %v2094 = vld [vmem:[%s2084 + $0x48] sm:$0xff]
      %v2095 = vld [vmem:[%s2084 + $0x50] sm:$0xff]
      %v2096 = vld [vmem:[%s2084 + $0x58] sm:$0xff]
      %v2097 = vld [vmem:[%s2084 + $0x60] sm:$0xff]
      %v2098 = vld [vmem:[%s2084 + $0x68] sm:$0xff]
      %v2099 = vld [vmem:[%s2084 + $0x70] sm:$0xff]
      %v2100 = vld [vmem:[%s2084 + $0x78] sm:$0xff]
      %2101 = vmatprep.subr.mxu0 0.0
      %2102 = vmatpush1.msra.mxu0 %v2085
      %2103 = vmatprep.subr.mxu0 0.0
      %2104 = vmatpush1.msra.mxu0 %v2086
      %2105 = vmatprep.subr.mxu0 0.0
      %2106 = vmatpush1.msra.mxu0 %v2087
      %2107 = vmatprep.subr.mxu0 0.0
      %2108 = vmatpush1.msra.mxu0 %v2088
      %2109 = vmatprep.subr.mxu0 0.0
      %2110 = vmatpush1.msra.mxu0 %v2089
      %2111 = vmatprep.subr.mxu0 0.0
      %2112 = vmatpush1.msra.mxu0 %v2090
      %2113 = vmatprep.subr.mxu0 0.0
      %2114 = vmatpush1.msra.mxu0 %v2091
      %2115 = vmatprep.subr.mxu0 0.0
      %2116 = vmatpush1.msra.mxu0 %v2092
      %2117 = vmatprep.subr.mxu0 0.0
      %2118 = vmatpush1.msra.mxu0 %v2093
      %2119 = vmatprep.subr.mxu0 0.0
      %2120 = vmatpush1.msra.mxu0 %v2094
      %2121 = vmatprep.subr.mxu0 0.0
      %2122 = vmatpush1.msra.mxu0 %v2095
      %2123 = vmatprep.subr.mxu0 0.0
      %2124 = vmatpush1.msra.mxu0 %v2096
      %2125 = vmatprep.subr.mxu0 0.0
      %2126 = vmatpush1.msra.mxu0 %v2097
      %2127 = vmatprep.subr.mxu0 0.0
      %2128 = vmatpush1.msra.mxu0 %v2098
      %2129 = vmatprep.subr.mxu0 0.0
      %2130 = vmatpush1.msra.mxu0 %v2099
      %2131 = vmatprep.subr.mxu0 0.0
      %2132 = vmatpush1.msra.mxu0 %v2100
      %2133 = vmatprep.subr.mxu0 0.0
      %2134 = vmatpush1.msra.mxu0 0.0
      %2135 = vmatprep.subr.mxu0 0.0
      %2136 = vmatpush1.msra.mxu0 0.0
      %2137 = vmatprep.subr.mxu0 0.0
      %2138 = vmatpush1.msra.mxu0 0.0
      %2139 = vmatprep.subr.mxu0 0.0
      %2140 = vmatpush1.msra.mxu0 0.0
      %2141 = vmatprep.subr.mxu0 0.0
      %2142 = vmatpush1.msra.mxu0 0.0
      %2143 = vmatprep.subr.mxu0 0.0
      %2144 = vmatpush1.msra.mxu0 0.0
      %2145 = vmatprep.subr.mxu0 0.0
      %2146 = vmatpush1.msra.mxu0 0.0
      %2147 = vmatprep.subr.mxu0 0.0
      %2148 = vmatpush1.msra.mxu0 0.0
      %2149 = vmatprep.subr.mxu0 0.0
      %2150 = vmatpush1.msra.mxu0 0.0
      %2151 = vmatprep.subr.mxu0 0.0
      %2152 = vmatpush1.msra.mxu0 0.0
      %2153 = vmatprep.subr.mxu0 0.0
      %2154 = vmatpush1.msra.mxu0 0.0
      %2155 = vmatprep.subr.mxu0 0.0
      %2156 = vmatpush1.msra.mxu0 0.0
      %2157 = vmatprep.subr.mxu0 0.0
      %2158 = vmatpush1.msra.mxu0 0.0
      %2159 = vmatprep.subr.mxu0 0.0
      %2160 = vmatpush1.msra.mxu0 0.0
      %2161 = vmatprep.subr.mxu0 0.0
      %2162 = vmatpush1.msra.mxu0 0.0
      %2163 = vmatprep.subr.mxu0 0.0
      %2164 = vmatpush1.msra.mxu0 0.0
      %2165 = vmatprep.mubr.f32.mxu0 0.0
      %2166 = vmatmul.mubr.f32.gmra.mrb[0].mxu0 %v2052
      %v2167 = vpop.f32.mrb[0].mxu0
      %v2168 = vadd.f32 0.0, %v2167
      %v2169 = vpop.f32.mrb[0].mxu0
      %2170 = vmatprep.mubr.f32.mxu0 0.0
      %2171 = vmatmul.mubr.f32.gmra.mrb[0].mxu0 %v2053
      %v2172 = vpop.f32.mrb[0].mxu0
      %v2173 = vadd.f32 0.0, %v2172
      %v2174 = vpop.f32.mrb[0].mxu0
      %2175 = vmatprep.mubr.f32.mxu0 0.0
      %2176 = vmatmul.mubr.f32.gmra.mrb[0].mxu0 %v2054
      %v2177 = vpop.f32.mrb[0].mxu0
      %v2178 = vadd.f32 0.0, %v2177
      %v2179 = vpop.f32.mrb[0].mxu0
      %2180 = vmatprep.mubr.f32.mxu0 0.0
      %2181 = vmatmul.mubr.f32.gmra.mrb[0].mxu0 %v2055
      %v2182 = vpop.f32.mrb[0].mxu0
      %v2183 = vadd.f32 0.0, %v2182
      %v2184 = vpop.f32.mrb[0].mxu0
      %2185 = vmatprep.mubr.f32.mxu0 0.0
      %2186 = vmatmul.mubr.f32.gmra.mrb[0].mxu0 %v2056
      %v2187 = vpop.f32.mrb[0].mxu0
      %v2188 = vadd.f32 0.0, %v2187
      %v2189 = vpop.f32.mrb[0].mxu0
      %2190 = vmatprep.mubr.f32.mxu0 0.0
      %2191 = vmatmul.mubr.f32.gmra.mrb[0].mxu0 %v2057
      %v2192 = vpop.f32.mrb[0].mxu0
      %v2193 = vadd.f32 0.0, %v2192
      %v2194 = vpop.f32.mrb[0].mxu0
      %2195 = vmatprep.mubr.f32.mxu0 0.0
      %2196 = vmatmul.mubr.f32.gmra.mrb[0].mxu0 %v2058
      %v2197 = vpop.f32.mrb[0].mxu0
      %v2198 = vadd.f32 0.0, %v2197
      %v2199 = vpop.f32.mrb[0].mxu0
      %2200 = vmatprep.mubr.f32.mxu0 0.0
      %2201 = vmatmul.mubr.f32.gmra.mrb[0].mxu0 %v2059
      %v2202 = vpop.f32.mrb[0].mxu0
      %v2203 = vadd.f32 0.0, %v2202
      %v2204 = vpop.f32.mrb[0].mxu0
      %2205 = vmatprep.mubr.f32.mxu0 0.0
      %2206 = vmatmul.mubr.f32.gmra.mrb[0].mxu0 %v2060
      %v2207 = vpop.f32.mrb[0].mxu0
      %v2208 = vadd.f32 0.0, %v2207
      %v2209 = vpop.f32.mrb[0].mxu0
      %2210 = vmatprep.mubr.f32.mxu0 0.0
      %2211 = vmatmul.mubr.f32.gmra.mrb[0].mxu0 %v2061
      %v2212 = vpop.f32.mrb[0].mxu0
      %v2213 = vadd.f32 0.0, %v2212
      %v2214 = vpop.f32.mrb[0].mxu0
      %2215 = vmatprep.mubr.f32.mxu0 0.0
      %2216 = vmatmul.mubr.f32.gmra.mrb[0].mxu0 %v2062
      %v2217 = vpop.f32.mrb[0].mxu0
      %v2218 = vadd.f32 0.0, %v2217
      %v2219 = vpop.f32.mrb[0].mxu0
      %2220 = vmatprep.mubr.f32.mxu0 0.0
      %2221 = vmatmul.mubr.f32.gmra.mrb[0].mxu0 %v2063
      %v2222 = vpop.f32.mrb[0].mxu0
      %v2223 = vadd.f32 0.0, %v2222
      %v2224 = vpop.f32.mrb[0].mxu0
      %2225 = vmatprep.mubr.f32.mxu0 0.0
      %2226 = vmatmul.mubr.f32.gmra.mrb[0].mxu0 %v2064
      %v2227 = vpop.f32.mrb[0].mxu0
      %v2228 = vadd.f32 0.0, %v2227
      %v2229 = vpop.f32.mrb[0].mxu0
      %2230 = vmatprep.mubr.f32.mxu0 0.0
      %2231 = vmatmul.mubr.f32.gmra.mrb[0].mxu0 %v2065
      %v2232 = vpop.f32.mrb[0].mxu0
      %v2233 = vadd.f32 0.0, %v2232
      %v2234 = vpop.f32.mrb[0].mxu0
      %2235 = vmatprep.mubr.f32.mxu0 0.0
      %2236 = vmatmul.mubr.f32.gmra.mrb[0].mxu0 %v2066
      %v2237 = vpop.f32.mrb[0].mxu0
      %v2238 = vadd.f32 0.0, %v2237
      %v2239 = vpop.f32.mrb[0].mxu0
      %2240 = vmatprep.mubr.f32.mxu0 0.0
      %2241 = vmatmul.mubr.f32.gmra.mrb[0].mxu0 %v2067
      %v2242 = vpop.f32.mrb[0].mxu0
      %v2243 = vadd.f32 0.0, %v2242
      %v2244 = vpop.f32.mrb[0].mxu0
      %2245 = vmatprep.mubr.f32.mxu0 0.0
      %2246 = vmatmul.mubr.f32.gmra.mrb[0].mxu0 %v2068
      %v2247 = vpop.f32.mrb[0].mxu0
      %v2248 = vadd.f32 0.0, %v2247
      %v2249 = vpop.f32.mrb[0].mxu0
      %2250 = vmatprep.mubr.f32.mxu0 0.0
      %2251 = vmatmul.mubr.f32.gmra.mrb[0].mxu0 %v2069
      %v2252 = vpop.f32.mrb[0].mxu0
      %v2253 = vadd.f32 0.0, %v2252
      %v2254 = vpop.f32.mrb[0].mxu0
      %2255 = vmatprep.mubr.f32.mxu0 0.0
      %2256 = vmatmul.mubr.f32.gmra.mrb[0].mxu0 %v2070
      %v2257 = vpop.f32.mrb[0].mxu0
      %v2258 = vadd.f32 0.0, %v2257
      %v2259 = vpop.f32.mrb[0].mxu0
      %2260 = vmatprep.mubr.f32.mxu0 0.0
      %2261 = vmatmul.mubr.f32.gmra.mrb[0].mxu0 %v2071
      %v2262 = vpop.f32.mrb[0].mxu0
      %v2263 = vadd.f32 0.0, %v2262
      %v2264 = vpop.f32.mrb[0].mxu0
      %2265 = vmatprep.mubr.f32.mxu0 0.0
      %2266 = vmatmul.mubr.f32.gmra.mrb[0].mxu0 %v2072
      %v2267 = vpop.f32.mrb[0].mxu0
      %v2268 = vadd.f32 0.0, %v2267
      %v2269 = vpop.f32.mrb[0].mxu0
      %2270 = vmatprep.mubr.f32.mxu0 0.0
      %2271 = vmatmul.mubr.f32.gmra.mrb[0].mxu0 %v2073
      %v2272 = vpop.f32.mrb[0].mxu0
      %v2273 = vadd.f32 0.0, %v2272
      %v2274 = vpop.f32.mrb[0].mxu0
      %2275 = vmatprep.mubr.f32.mxu0 0.0
      %2276 = vmatmul.mubr.f32.gmra.mrb[0].mxu0 %v2074
      %v2277 = vpop.f32.mrb[0].mxu0
      %v2278 = vadd.f32 0.0, %v2277
      %v2279 = vpop.f32.mrb[0].mxu0
      %2280 = vmatprep.mubr.f32.mxu0 0.0
      %2281 = vmatmul.mubr.f32.gmra.mrb[0].mxu0 %v2075
      %v2282 = vpop.f32.mrb[0].mxu0
      %v2283 = vadd.f32 0.0, %v2282
      %v2284 = vpop.f32.mrb[0].mxu0
      %2285 = vmatprep.mubr.f32.mxu0 0.0
      %2286 = vmatmul.mubr.f32.gmra.mrb[0].mxu0 %v2076
      %v2287 = vpop.f32.mrb[0].mxu0
      %v2288 = vadd.f32 0.0, %v2287
      %v2289 = vpop.f32.mrb[0].mxu0
      %2290 = vmatprep.mubr.f32.mxu0 0.0
      %2291 = vmatmul.mubr.f32.gmra.mrb[0].mxu0 %v2077
      %v2292 = vpop.f32.mrb[0].mxu0
      %v2293 = vadd.f32 0.0, %v2292
      %v2294 = vpop.f32.mrb[0].mxu0
      %2295 = vmatprep.mubr.f32.mxu0 0.0
      %2296 = vmatmul.mubr.f32.gmra.mrb[0].mxu0 %v2078
      %v2297 = vpop.f32.mrb[0].mxu0
      %v2298 = vadd.f32 0.0, %v2297
      %v2299 = vpop.f32.mrb[0].mxu0
      %2300 = vmatprep.mubr.f32.mxu0 0.0
      %2301 = vmatmul.mubr.f32.gmra.mrb[0].mxu0 %v2079
      %v2302 = vpop.f32.mrb[0].mxu0
      %v2303 = vadd.f32 0.0, %v2302
      %v2304 = vpop.f32.mrb[0].mxu0
      %2305 = vmatprep.mubr.f32.mxu0 0.0
      %2306 = vmatmul.mubr.f32.gmra.mrb[0].mxu0 %v2080
      %v2307 = vpop.f32.mrb[0].mxu0
      %v2308 = vadd.f32 0.0, %v2307
      %v2309 = vpop.f32.mrb[0].mxu0
      %2310 = vmatprep.mubr.f32.mxu0 0.0
      %2311 = vmatmul.mubr.f32.gmra.mrb[0].mxu0 %v2081
      %v2312 = vpop.f32.mrb[0].mxu0
      %v2313 = vadd.f32 0.0, %v2312
      %v2314 = vpop.f32.mrb[0].mxu0
      %2315 = vmatprep.mubr.f32.mxu0 0.0
      %2316 = vmatmul.mubr.f32.gmra.mrb[0].mxu0 %v2082
      %v2317 = vpop.f32.mrb[0].mxu0
      %v2318 = vadd.f32 0.0, %v2317
      %v2319 = vpop.f32.mrb[0].mxu0
      %2320 = vmatprep.mubr.f32.mxu0 0.0
      %2321 = vmatmul.mubr.f32.gmra.mrb[0].mxu0 %v2083
      %v2322 = vpop.f32.mrb[0].mxu0
      %v2323 = vadd.f32 0.0, %v2322
      %v2324 = vpop.f32.mrb[0].mxu0
      %2325 = vdwg.mxu0
      %2326 = vmatprep.subr.mxu0 0.0
      %2327 = vmatpush1.msra.mxu0 %v2036
      %2328 = vmatprep.subr.mxu0 0.0
      %2329 = vmatpush1.msra.mxu0 %v2037
      %2330 = vmatprep.subr.mxu0 0.0
      %2331 = vmatpush1.msra.mxu0 %v2038
      %2332 = vmatprep.subr.mxu0 0.0
      %2333 = vmatpush1.msra.mxu0 %v2039
      %2334 = vmatprep.subr.mxu0 0.0
      %2335 = vmatpush1.msra.mxu0 %v2040
      %2336 = vmatprep.subr.mxu0 0.0
      %2337 = vmatpush1.msra.mxu0 %v2041
      %2338 = vmatprep.subr.mxu0 0.0
      %2339 = vmatpush1.msra.mxu0 %v2042
      %2340 = vmatprep.subr.mxu0 0.0
      %2341 = vmatpush1.msra.mxu0 %v2043
      %2342 = vmatprep.subr.mxu0 0.0
      %2343 = vmatpush1.msra.mxu0 %v2044
      %2344 = vmatprep.subr.mxu0 0.0
      %2345 = vmatpush1.msra.mxu0 %v2045
      %2346 = vmatprep.subr.mxu0 0.0
      %2347 = vmatpush1.msra.mxu0 %v2046
      %2348 = vmatprep.subr.mxu0 0.0
      %2349 = vmatpush1.msra.mxu0 %v2047
      %2350 = vmatprep.subr.mxu0 0.0
      %2351 = vmatpush1.msra.mxu0 %v2048
      %2352 = vmatprep.subr.mxu0 0.0
      %2353 = vmatpush1.msra.mxu0 %v2049
      %2354 = vmatprep.subr.mxu0 0.0
      %2355 = vmatpush1.msra.mxu0 %v2050
      %2356 = vmatprep.subr.mxu0 0.0
      %2357 = vmatpush1.msra.mxu0 %v2051
      %2358 = vmatprep.subr.mxu0 0.0
      %2359 = vmatpush1.msra.mxu0 0.0
      %2360 = vmatprep.subr.mxu0 0.0
      %2361 = vmatpush1.msra.mxu0 0.0
      %2362 = vmatprep.subr.mxu0 0.0
      %2363 = vmatpush1.msra.mxu0 0.0
      %2364 = vmatprep.subr.mxu0 0.0
      %2365 = vmatpush1.msra.mxu0 0.0
      %2366 = vmatprep.subr.mxu0 0.0
      %2367 = vmatpush1.msra.mxu0 0.0
      %2368 = vmatprep.subr.mxu0 0.0
      %2369 = vmatpush1.msra.mxu0 0.0
      %2370 = vmatprep.subr.mxu0 0.0
      %2371 = vmatpush1.msra.mxu0 0.0
      %2372 = vmatprep.subr.mxu0 0.0
      %2373 = vmatpush1.msra.mxu0 0.0
      %2374 = vmatprep.subr.mxu0 0.0
      %2375 = vmatpush1.msra.mxu0 0.0
      %2376 = vmatprep.subr.mxu0 0.0
      %2377 = vmatpush1.msra.mxu0 0.0
      %2378 = vmatprep.subr.mxu0 0.0
      %2379 = vmatpush1.msra.mxu0 0.0
      %2380 = vmatprep.subr.mxu0 0.0
      %2381 = vmatpush1.msra.mxu0 0.0
      %2382 = vmatprep.subr.mxu0 0.0
      %2383 = vmatpush1.msra.mxu0 0.0
      %2384 = vmatprep.subr.mxu0 0.0
      %2385 = vmatpush1.msra.mxu0 0.0
      %2386 = vmatprep.subr.mxu0 0.0
      %2387 = vmatpush1.msra.mxu0 0.0
      %2388 = vmatprep.subr.mxu0 0.0
      %2389 = vmatpush1.msra.mxu0 0.0
      %2390 = vmatprep.mubr.f32.mxu0 0.0
      %2391 = vmatmul.mubr.f32.gmra.mrb[0].mxu0 %v2004
      %v2392 = vpop.f32.mrb[0].mxu0
      %v2393 = vadd.f32 %v2168, %v2392
      %v2394 = vpop.f32.mrb[0].mxu0
      %2395 = vmatprep.mubr.f32.mxu0 0.0
      %2396 = vmatmul.mubr.f32.gmra.mrb[0].mxu0 %v2005
      %v2397 = vpop.f32.mrb[0].mxu0
      %v2398 = vadd.f32 %v2173, %v2397
      %v2399 = vpop.f32.mrb[0].mxu0
      %2400 = vmatprep.mubr.f32.mxu0 0.0
      %2401 = vmatmul.mubr.f32.gmra.mrb[0].mxu0 %v2006
      %v2402 = vpop.f32.mrb[0].mxu0
      %v2403 = vadd.f32 %v2178, %v2402
      %v2404 = vpop.f32.mrb[0].mxu0
      %2405 = vmatprep.mubr.f32.mxu0 0.0
      %2406 = vmatmul.mubr.f32.gmra.mrb[0].mxu0 %v2007
      %v2407 = vpop.f32.mrb[0].mxu0
      %v2408 = vadd.f32 %v2183, %v2407
      %v2409 = vpop.f32.mrb[0].mxu0
      %2410 = vmatprep.mubr.f32.mxu0 0.0
      %2411 = vmatmul.mubr.f32.gmra.mrb[0].mxu0 %v2008
      %v2412 = vpop.f32.mrb[0].mxu0
      %v2413 = vadd.f32 %v2188, %v2412
      %v2414 = vpop.f32.mrb[0].mxu0
      %2415 = vmatprep.mubr.f32.mxu0 0.0
      %2416 = vmatmul.mubr.f32.gmra.mrb[0].mxu0 %v2009
      %v2417 = vpop.f32.mrb[0].mxu0
      %v2418 = vadd.f32 %v2193, %v2417
      %v2419 = vpop.f32.mrb[0].mxu0
      %2420 = vmatprep.mubr.f32.mxu0 0.0
      %2421 = vmatmul.mubr.f32.gmra.mrb[0].mxu0 %v2010
      %v2422 = vpop.f32.mrb[0].mxu0
      %v2423 = vadd.f32 %v2198, %v2422
      %v2424 = vpop.f32.mrb[0].mxu0
      %2425 = vmatprep.mubr.f32.mxu0 0.0
      %2426 = vmatmul.mubr.f32.gmra.mrb[0].mxu0 %v2011
      %v2427 = vpop.f32.mrb[0].mxu0
      %v2428 = vadd.f32 %v2203, %v2427
      %v2429 = vpop.f32.mrb[0].mxu0
      %2430 = vmatprep.mubr.f32.mxu0 0.0
      %2431 = vmatmul.mubr.f32.gmra.mrb[0].mxu0 %v2012
      %v2432 = vpop.f32.mrb[0].mxu0
      %v2433 = vadd.f32 %v2208, %v2432
      %v2434 = vpop.f32.mrb[0].mxu0
      %2435 = vmatprep.mubr.f32.mxu0 0.0
      %2436 = vmatmul.mubr.f32.gmra.mrb[0].mxu0 %v2013
      %v2437 = vpop.f32.mrb[0].mxu0
      %v2438 = vadd.f32 %v2213, %v2437
      %v2439 = vpop.f32.mrb[0].mxu0
      %2440 = vmatprep.mubr.f32.mxu0 0.0
      %2441 = vmatmul.mubr.f32.gmra.mrb[0].mxu0 %v2014
      %v2442 = vpop.f32.mrb[0].mxu0
      %v2443 = vadd.f32 %v2218, %v2442
      %v2444 = vpop.f32.mrb[0].mxu0
      %2445 = vmatprep.mubr.f32.mxu0 0.0
      %2446 = vmatmul.mubr.f32.gmra.mrb[0].mxu0 %v2015
      %v2447 = vpop.f32.mrb[0].mxu0
      %v2448 = vadd.f32 %v2223, %v2447
      %v2449 = vpop.f32.mrb[0].mxu0
      %2450 = vmatprep.mubr.f32.mxu0 0.0
      %2451 = vmatmul.mubr.f32.gmra.mrb[0].mxu0 %v2016
      %v2452 = vpop.f32.mrb[0].mxu0
      %v2453 = vadd.f32 %v2228, %v2452
      %v2454 = vpop.f32.mrb[0].mxu0
      %2455 = vmatprep.mubr.f32.mxu0 0.0
      %2456 = vmatmul.mubr.f32.gmra.mrb[0].mxu0 %v2017
      %v2457 = vpop.f32.mrb[0].mxu0
      %v2458 = vadd.f32 %v2233, %v2457
      %v2459 = vpop.f32.mrb[0].mxu0
      %2460 = vmatprep.mubr.f32.mxu0 0.0
      %2461 = vmatmul.mubr.f32.gmra.mrb[0].mxu0 %v2018
      %v2462 = vpop.f32.mrb[0].mxu0
      %v2463 = vadd.f32 %v2238, %v2462
      %v2464 = vpop.f32.mrb[0].mxu0
      %2465 = vmatprep.mubr.f32.mxu0 0.0
      %2466 = vmatmul.mubr.f32.gmra.mrb[0].mxu0 %v2019
      %v2467 = vpop.f32.mrb[0].mxu0
      %v2468 = vadd.f32 %v2243, %v2467
      %v2469 = vpop.f32.mrb[0].mxu0
      %2470 = vmatprep.mubr.f32.mxu0 0.0
      %2471 = vmatmul.mubr.f32.gmra.mrb[0].mxu0 %v2020
      %v2472 = vpop.f32.mrb[0].mxu0
      %v2473 = vadd.f32 %v2248, %v2472
      %v2474 = vpop.f32.mrb[0].mxu0
      %2475 = vmatprep.mubr.f32.mxu0 0.0
      %2476 = vmatmul.mubr.f32.gmra.mrb[0].mxu0 %v2021
      %v2477 = vpop.f32.mrb[0].mxu0
      %v2478 = vadd.f32 %v2253, %v2477
      %v2479 = vpop.f32.mrb[0].mxu0
      %2480 = vmatprep.mubr.f32.mxu0 0.0
      %2481 = vmatmul.mubr.f32.gmra.mrb[0].mxu0 %v2022
      %v2482 = vpop.f32.mrb[0].mxu0
      %v2483 = vadd.f32 %v2258, %v2482
      %v2484 = vpop.f32.mrb[0].mxu0
      %2485 = vmatprep.mubr.f32.mxu0 0.0
      %2486 = vmatmul.mubr.f32.gmra.mrb[0].mxu0 %v2023
      %v2487 = vpop.f32.mrb[0].mxu0
      %v2488 = vadd.f32 %v2263, %v2487
      %v2489 = vpop.f32.mrb[0].mxu0
      %2490 = vmatprep.mubr.f32.mxu0 0.0
      %2491 = vmatmul.mubr.f32.gmra.mrb[0].mxu0 %v2024
      %v2492 = vpop.f32.mrb[0].mxu0
      %v2493 = vadd.f32 %v2268, %v2492
      %v2494 = vpop.f32.mrb[0].mxu0
      %2495 = vmatprep.mubr.f32.mxu0 0.0
      %2496 = vmatmul.mubr.f32.gmra.mrb[0].mxu0 %v2025
      %v2497 = vpop.f32.mrb[0].mxu0
      %v2498 = vadd.f32 %v2273, %v2497
      %v2499 = vpop.f32.mrb[0].mxu0
      %2500 = vmatprep.mubr.f32.mxu0 0.0
      %2501 = vmatmul.mubr.f32.gmra.mrb[0].mxu0 %v2026
      %v2502 = vpop.f32.mrb[0].mxu0
      %v2503 = vadd.f32 %v2278, %v2502
      %v2504 = vpop.f32.mrb[0].mxu0
      %2505 = vmatprep.mubr.f32.mxu0 0.0
      %2506 = vmatmul.mubr.f32.gmra.mrb[0].mxu0 %v2027
      %v2507 = vpop.f32.mrb[0].mxu0
      %v2508 = vadd.f32 %v2283, %v2507
      %v2509 = vpop.f32.mrb[0].mxu0
      %2510 = vmatprep.mubr.f32.mxu0 0.0
      %2511 = vmatmul.mubr.f32.gmra.mrb[0].mxu0 %v2028
      %v2512 = vpop.f32.mrb[0].mxu0
      %v2513 = vadd.f32 %v2288, %v2512
      %v2514 = vpop.f32.mrb[0].mxu0
      %2515 = vmatprep.mubr.f32.mxu0 0.0
      %2516 = vmatmul.mubr.f32.gmra.mrb[0].mxu0 %v2029
      %v2517 = vpop.f32.mrb[0].mxu0
      %v2518 = vadd.f32 %v2293, %v2517
      %v2519 = vpop.f32.mrb[0].mxu0
      %2520 = vmatprep.mubr.f32.mxu0 0.0
      %2521 = vmatmul.mubr.f32.gmra.mrb[0].mxu0 %v2030
      %v2522 = vpop.f32.mrb[0].mxu0
      %v2523 = vadd.f32 %v2298, %v2522
      %v2524 = vpop.f32.mrb[0].mxu0
      %2525 = vmatprep.mubr.f32.mxu0 0.0
      %2526 = vmatmul.mubr.f32.gmra.mrb[0].mxu0 %v2031
      %v2527 = vpop.f32.mrb[0].mxu0
      %v2528 = vadd.f32 %v2303, %v2527
      %v2529 = vpop.f32.mrb[0].mxu0
      %2530 = vmatprep.mubr.f32.mxu0 0.0
      %2531 = vmatmul.mubr.f32.gmra.mrb[0].mxu0 %v2032
      %v2532 = vpop.f32.mrb[0].mxu0
      %v2533 = vadd.f32 %v2308, %v2532
      %v2534 = vpop.f32.mrb[0].mxu0
      %2535 = vmatprep.mubr.f32.mxu0 0.0
      %2536 = vmatmul.mubr.f32.gmra.mrb[0].mxu0 %v2033
      %v2537 = vpop.f32.mrb[0].mxu0
      %v2538 = vadd.f32 %v2313, %v2537
      %v2539 = vpop.f32.mrb[0].mxu0
      %2540 = vmatprep.mubr.f32.mxu0 0.0
      %2541 = vmatmul.mubr.f32.gmra.mrb[0].mxu0 %v2034
      %v2542 = vpop.f32.mrb[0].mxu0
      %v2543 = vadd.f32 %v2318, %v2542
      %v2544 = vpop.f32.mrb[0].mxu0
      %2545 = vmatprep.mubr.f32.mxu0 0.0
      %2546 = vmatmul.mubr.f32.gmra.mrb[0].mxu0 %v2035
      %v2547 = vpop.f32.mrb[0].mxu0
      %v2548 = vadd.f32 %v2323, %v2547
      %v2549 = vpop.f32.mrb[0].mxu0
      %2550 = vdwg.mxu0
      %v2551 = vld [vmem:[#allocation2 + $0x2] sm:$0xff]
      %v2552 = vld [vmem:[#allocation2 + $0xa] sm:$0xff]
      %v2553 = vld [vmem:[#allocation2 + $0x1a] sm:$0xff]
      %v2554 = vld [vmem:[#allocation2 + $0x22] sm:$0xff]
      %v2555 = vld [vmem:[#allocation2 + $0x32] sm:$0xff]
      %v2556 = vld [vmem:[#allocation2 + $0x3a] sm:$0xff]
      %v2557 = vld [vmem:[#allocation2 + $0x4a] sm:$0xff]
      %v2558 = vld [vmem:[#allocation2 + $0x52] sm:$0xff]
      %v2559 = vld [vmem:[#allocation2 + $0x62] sm:$0xff]
      %v2560 = vld [vmem:[#allocation2 + $0x6a] sm:$0xff]
      %v2561 = vld [vmem:[#allocation2 + $0x7a] sm:$0xff]
      %v2562 = vld [vmem:[#allocation2 + $0x82] sm:$0xff]
      %v2563 = vld [vmem:[#allocation2 + $0x92] sm:$0xff]
      %v2564 = vld [vmem:[#allocation2 + $0x9a] sm:$0xff]
      %v2565 = vld [vmem:[#allocation2 + $0xaa] sm:$0xff]
      %v2566 = vld [vmem:[#allocation2 + $0xb2] sm:$0xff]
      %v2567 = vld [vmem:[#allocation2 + $0xc2] sm:$0xff]
      %v2568 = vld [vmem:[#allocation2 + $0xca] sm:$0xff]
      %v2569 = vld [vmem:[#allocation2 + $0xda] sm:$0xff]
      %v2570 = vld [vmem:[#allocation2 + $0xe2] sm:$0xff]
      %v2571 = vld [vmem:[#allocation2 + $0xf2] sm:$0xff]
      %v2572 = vld [vmem:[#allocation2 + $0xfa] sm:$0xff]
      %v2573 = vld [vmem:[#allocation2 + $0x10a] sm:$0xff]
      %v2574 = vld [vmem:[#allocation2 + $0x112] sm:$0xff]
      %v2575 = vld [vmem:[#allocation2 + $0x122] sm:$0xff]
      %v2576 = vld [vmem:[#allocation2 + $0x12a] sm:$0xff]
      %v2577 = vld [vmem:[#allocation2 + $0x13a] sm:$0xff]
      %v2578 = vld [vmem:[#allocation2 + $0x142] sm:$0xff]
      %v2579 = vld [vmem:[#allocation2 + $0x152] sm:$0xff]
      %v2580 = vld [vmem:[#allocation2 + $0x15a] sm:$0xff]
      %v2581 = vld [vmem:[#allocation2 + $0x16a] sm:$0xff]
      %v2582 = vld [vmem:[#allocation2 + $0x172] sm:$0xff]
      %s2583 = scalar_lea.vmem %s3, 256
      %v2584 = vld [vmem:[%s2583] sm:$0xff]
      %v2585 = vld [vmem:[%s2583 + $0x8] sm:$0xff]
      %v2586 = vld [vmem:[%s2583 + $0x10] sm:$0xff]
      %v2587 = vld [vmem:[%s2583 + $0x18] sm:$0xff]
      %v2588 = vld [vmem:[%s2583 + $0x20] sm:$0xff]
      %v2589 = vld [vmem:[%s2583 + $0x28] sm:$0xff]
      %v2590 = vld [vmem:[%s2583 + $0x30] sm:$0xff]
      %v2591 = vld [vmem:[%s2583 + $0x38] sm:$0xff]
      %v2592 = vld [vmem:[%s2583 + $0x40] sm:$0xff]
      %v2593 = vld [vmem:[%s2583 + $0x48] sm:$0xff]
      %v2594 = vld [vmem:[%s2583 + $0x50] sm:$0xff]
      %v2595 = vld [vmem:[%s2583 + $0x58] sm:$0xff]
      %v2596 = vld [vmem:[%s2583 + $0x60] sm:$0xff]
      %v2597 = vld [vmem:[%s2583 + $0x68] sm:$0xff]
      %v2598 = vld [vmem:[%s2583 + $0x70] sm:$0xff]
      %v2599 = vld [vmem:[%s2583 + $0x78] sm:$0xff]
      %2600 = vmatprep.subr.mxu0 0.0
      %2601 = vmatpush1.msra.mxu0 %v2584
      %2602 = vmatprep.subr.mxu0 0.0
      %2603 = vmatpush1.msra.mxu0 %v2585
      %2604 = vmatprep.subr.mxu0 0.0
      %2605 = vmatpush1.msra.mxu0 %v2586
      %2606 = vmatprep.subr.mxu0 0.0
      %2607 = vmatpush1.msra.mxu0 %v2587
      %2608 = vmatprep.subr.mxu0 0.0
      %2609 = vmatpush1.msra.mxu0 %v2588
      %2610 = vmatprep.subr.mxu0 0.0
      %2611 = vmatpush1.msra.mxu0 %v2589
      %2612 = vmatprep.subr.mxu0 0.0
      %2613 = vmatpush1.msra.mxu0 %v2590
      %2614 = vmatprep.subr.mxu0 0.0
      %2615 = vmatpush1.msra.mxu0 %v2591
      %2616 = vmatprep.subr.mxu0 0.0
      %2617 = vmatpush1.msra.mxu0 %v2592
      %2618 = vmatprep.subr.mxu0 0.0
      %2619 = vmatpush1.msra.mxu0 %v2593
      %2620 = vmatprep.subr.mxu0 0.0
      %2621 = vmatpush1.msra.mxu0 %v2594
      %2622 = vmatprep.subr.mxu0 0.0
      %2623 = vmatpush1.msra.mxu0 %v2595
      %2624 = vmatprep.subr.mxu0 0.0
      %2625 = vmatpush1.msra.mxu0 %v2596
      %2626 = vmatprep.subr.mxu0 0.0
      %2627 = vmatpush1.msra.mxu0 %v2597
      %2628 = vmatprep.subr.mxu0 0.0
      %2629 = vmatpush1.msra.mxu0 %v2598
      %2630 = vmatprep.subr.mxu0 0.0
      %2631 = vmatpush1.msra.mxu0 %v2599
      %2632 = vmatprep.subr.mxu0 0.0
      %2633 = vmatpush1.msra.mxu0 0.0
      %2634 = vmatprep.subr.mxu0 0.0
      %2635 = vmatpush1.msra.mxu0 0.0
      %2636 = vmatprep.subr.mxu0 0.0
      %2637 = vmatpush1.msra.mxu0 0.0
      %2638 = vmatprep.subr.mxu0 0.0
      %2639 = vmatpush1.msra.mxu0 0.0
      %2640 = vmatprep.subr.mxu0 0.0
      %2641 = vmatpush1.msra.mxu0 0.0
      %2642 = vmatprep.subr.mxu0 0.0
      %2643 = vmatpush1.msra.mxu0 0.0
      %2644 = vmatprep.subr.mxu0 0.0
      %2645 = vmatpush1.msra.mxu0 0.0
      %2646 = vmatprep.subr.mxu0 0.0
      %2647 = vmatpush1.msra.mxu0 0.0
      %2648 = vmatprep.subr.mxu0 0.0
      %2649 = vmatpush1.msra.mxu0 0.0
      %2650 = vmatprep.subr.mxu0 0.0
      %2651 = vmatpush1.msra.mxu0 0.0
      %2652 = vmatprep.subr.mxu0 0.0
      %2653 = vmatpush1.msra.mxu0 0.0
      %2654 = vmatprep.subr.mxu0 0.0
      %2655 = vmatpush1.msra.mxu0 0.0
      %2656 = vmatprep.subr.mxu0 0.0
      %2657 = vmatpush1.msra.mxu0 0.0
      %2658 = vmatprep.subr.mxu0 0.0
      %2659 = vmatpush1.msra.mxu0 0.0
      %2660 = vmatprep.subr.mxu0 0.0
      %2661 = vmatpush1.msra.mxu0 0.0
      %2662 = vmatprep.subr.mxu0 0.0
      %2663 = vmatpush1.msra.mxu0 0.0
      %2664 = vmatprep.mubr.f32.mxu0 0.0
      %2665 = vmatmul.mubr.f32.gmra.mrb[0].mxu0 %v2551
      %v2666 = vpop.f32.mrb[0].mxu0
      %v2667 = vadd.f32 0.0, %v2666
      %v2668 = vpop.f32.mrb[0].mxu0
      %2669 = vmatprep.mubr.f32.mxu0 0.0
      %2670 = vmatmul.mubr.f32.gmra.mrb[0].mxu0 %v2552
      %v2671 = vpop.f32.mrb[0].mxu0
      %v2672 = vadd.f32 0.0, %v2671
      %v2673 = vpop.f32.mrb[0].mxu0
      %2674 = vmatprep.mubr.f32.mxu0 0.0
      %2675 = vmatmul.mubr.f32.gmra.mrb[0].mxu0 %v2553
      %v2676 = vpop.f32.mrb[0].mxu0
      %v2677 = vadd.f32 0.0, %v2676
      %v2678 = vpop.f32.mrb[0].mxu0
      %2679 = vmatprep.mubr.f32.mxu0 0.0
      %2680 = vmatmul.mubr.f32.gmra.mrb[0].mxu0 %v2554
      %v2681 = vpop.f32.mrb[0].mxu0
      %v2682 = vadd.f32 0.0, %v2681
      %v2683 = vpop.f32.mrb[0].mxu0
      %2684 = vmatprep.mubr.f32.mxu0 0.0
      %2685 = vmatmul.mubr.f32.gmra.mrb[0].mxu0 %v2555
      %v2686 = vpop.f32.mrb[0].mxu0
      %v2687 = vadd.f32 0.0, %v2686
      %v2688 = vpop.f32.mrb[0].mxu0
      %2689 = vmatprep.mubr.f32.mxu0 0.0
      %2690 = vmatmul.mubr.f32.gmra.mrb[0].mxu0 %v2556
      %v2691 = vpop.f32.mrb[0].mxu0
      %v2692 = vadd.f32 0.0, %v2691
      %v2693 = vpop.f32.mrb[0].mxu0
      %2694 = vmatprep.mubr.f32.mxu0 0.0
      %2695 = vmatmul.mubr.f32.gmra.mrb[0].mxu0 %v2557
      %v2696 = vpop.f32.mrb[0].mxu0
      %v2697 = vadd.f32 0.0, %v2696
      %v2698 = vpop.f32.mrb[0].mxu0
      %2699 = vmatprep.mubr.f32.mxu0 0.0
      %2700 = vmatmul.mubr.f32.gmra.mrb[0].mxu0 %v2558
      %v2701 = vpop.f32.mrb[0].mxu0
      %v2702 = vadd.f32 0.0, %v2701
      %v2703 = vpop.f32.mrb[0].mxu0
      %2704 = vmatprep.mubr.f32.mxu0 0.0
      %2705 = vmatmul.mubr.f32.gmra.mrb[0].mxu0 %v2559
      %v2706 = vpop.f32.mrb[0].mxu0
      %v2707 = vadd.f32 0.0, %v2706
      %v2708 = vpop.f32.mrb[0].mxu0
      %2709 = vmatprep.mubr.f32.mxu0 0.0
      %2710 = vmatmul.mubr.f32.gmra.mrb[0].mxu0 %v2560
      %v2711 = vpop.f32.mrb[0].mxu0
      %v2712 = vadd.f32 0.0, %v2711
      %v2713 = vpop.f32.mrb[0].mxu0
      %2714 = vmatprep.mubr.f32.mxu0 0.0
      %2715 = vmatmul.mubr.f32.gmra.mrb[0].mxu0 %v2561
      %v2716 = vpop.f32.mrb[0].mxu0
      %v2717 = vadd.f32 0.0, %v2716
      %v2718 = vpop.f32.mrb[0].mxu0
      %2719 = vmatprep.mubr.f32.mxu0 0.0
      %2720 = vmatmul.mubr.f32.gmra.mrb[0].mxu0 %v2562
      %v2721 = vpop.f32.mrb[0].mxu0
      %v2722 = vadd.f32 0.0, %v2721
      %v2723 = vpop.f32.mrb[0].mxu0
      %2724 = vmatprep.mubr.f32.mxu0 0.0
      %2725 = vmatmul.mubr.f32.gmra.mrb[0].mxu0 %v2563
      %v2726 = vpop.f32.mrb[0].mxu0
      %v2727 = vadd.f32 0.0, %v2726
      %v2728 = vpop.f32.mrb[0].mxu0
      %2729 = vmatprep.mubr.f32.mxu0 0.0
      %2730 = vmatmul.mubr.f32.gmra.mrb[0].mxu0 %v2564
      %v2731 = vpop.f32.mrb[0].mxu0
      %v2732 = vadd.f32 0.0, %v2731
      %v2733 = vpop.f32.mrb[0].mxu0
      %2734 = vmatprep.mubr.f32.mxu0 0.0
      %2735 = vmatmul.mubr.f32.gmra.mrb[0].mxu0 %v2565
      %v2736 = vpop.f32.mrb[0].mxu0
      %v2737 = vadd.f32 0.0, %v2736
      %v2738 = vpop.f32.mrb[0].mxu0
      %2739 = vmatprep.mubr.f32.mxu0 0.0
      %2740 = vmatmul.mubr.f32.gmra.mrb[0].mxu0 %v2566
      %v2741 = vpop.f32.mrb[0].mxu0
      %v2742 = vadd.f32 0.0, %v2741
      %v2743 = vpop.f32.mrb[0].mxu0
      %2744 = vmatprep.mubr.f32.mxu0 0.0
      %2745 = vmatmul.mubr.f32.gmra.mrb[0].mxu0 %v2567
      %v2746 = vpop.f32.mrb[0].mxu0
      %v2747 = vadd.f32 0.0, %v2746
      %v2748 = vpop.f32.mrb[0].mxu0
      %2749 = vmatprep.mubr.f32.mxu0 0.0
      %2750 = vmatmul.mubr.f32.gmra.mrb[0].mxu0 %v2568
      %v2751 = vpop.f32.mrb[0].mxu0
      %v2752 = vadd.f32 0.0, %v2751
      %v2753 = vpop.f32.mrb[0].mxu0
      %2754 = vmatprep.mubr.f32.mxu0 0.0
      %2755 = vmatmul.mubr.f32.gmra.mrb[0].mxu0 %v2569
      %v2756 = vpop.f32.mrb[0].mxu0
      %v2757 = vadd.f32 0.0, %v2756
      %v2758 = vpop.f32.mrb[0].mxu0
      %2759 = vmatprep.mubr.f32.mxu0 0.0
      %2760 = vmatmul.mubr.f32.gmra.mrb[0].mxu0 %v2570
      %v2761 = vpop.f32.mrb[0].mxu0
      %v2762 = vadd.f32 0.0, %v2761
      %v2763 = vpop.f32.mrb[0].mxu0
      %2764 = vmatprep.mubr.f32.mxu0 0.0
      %2765 = vmatmul.mubr.f32.gmra.mrb[0].mxu0 %v2571
      %v2766 = vpop.f32.mrb[0].mxu0
      %v2767 = vadd.f32 0.0, %v2766
      %v2768 = vpop.f32.mrb[0].mxu0
      %2769 = vmatprep.mubr.f32.mxu0 0.0
      %2770 = vmatmul.mubr.f32.gmra.mrb[0].mxu0 %v2572
      %v2771 = vpop.f32.mrb[0].mxu0
      %v2772 = vadd.f32 0.0, %v2771
      %v2773 = vpop.f32.mrb[0].mxu0
      %2774 = vmatprep.mubr.f32.mxu0 0.0
      %2775 = vmatmul.mubr.f32.gmra.mrb[0].mxu0 %v2573
      %v2776 = vpop.f32.mrb[0].mxu0
      %v2777 = vadd.f32 0.0, %v2776
      %v2778 = vpop.f32.mrb[0].mxu0
      %2779 = vmatprep.mubr.f32.mxu0 0.0
      %2780 = vmatmul.mubr.f32.gmra.mrb[0].mxu0 %v2574
      %v2781 = vpop.f32.mrb[0].mxu0
      %v2782 = vadd.f32 0.0, %v2781
      %v2783 = vpop.f32.mrb[0].mxu0
      %2784 = vmatprep.mubr.f32.mxu0 0.0
      %2785 = vmatmul.mubr.f32.gmra.mrb[0].mxu0 %v2575
      %v2786 = vpop.f32.mrb[0].mxu0
      %v2787 = vadd.f32 0.0, %v2786
      %v2788 = vpop.f32.mrb[0].mxu0
      %2789 = vmatprep.mubr.f32.mxu0 0.0
      %2790 = vmatmul.mubr.f32.gmra.mrb[0].mxu0 %v2576
      %v2791 = vpop.f32.mrb[0].mxu0
      %v2792 = vadd.f32 0.0, %v2791
      %v2793 = vpop.f32.mrb[0].mxu0
      %2794 = vmatprep.mubr.f32.mxu0 0.0
      %2795 = vmatmul.mubr.f32.gmra.mrb[0].mxu0 %v2577
      %v2796 = vpop.f32.mrb[0].mxu0
      %v2797 = vadd.f32 0.0, %v2796
      %v2798 = vpop.f32.mrb[0].mxu0
      %2799 = vmatprep.mubr.f32.mxu0 0.0
      %2800 = vmatmul.mubr.f32.gmra.mrb[0].mxu0 %v2578
      %v2801 = vpop.f32.mrb[0].mxu0
      %v2802 = vadd.f32 0.0, %v2801
      %v2803 = vpop.f32.mrb[0].mxu0
      %2804 = vmatprep.mubr.f32.mxu0 0.0
      %2805 = vmatmul.mubr.f32.gmra.mrb[0].mxu0 %v2579
      %v2806 = vpop.f32.mrb[0].mxu0
      %v2807 = vadd.f32 0.0, %v2806
      %v2808 = vpop.f32.mrb[0].mxu0
      %2809 = vmatprep.mubr.f32.mxu0 0.0
      %2810 = vmatmul.mubr.f32.gmra.mrb[0].mxu0 %v2580
      %v2811 = vpop.f32.mrb[0].mxu0
      %v2812 = vadd.f32 0.0, %v2811
      %v2813 = vpop.f32.mrb[0].mxu0
      %2814 = vmatprep.mubr.f32.mxu0 0.0
      %2815 = vmatmul.mubr.f32.gmra.mrb[0].mxu0 %v2581
      %v2816 = vpop.f32.mrb[0].mxu0
      %v2817 = vadd.f32 0.0, %v2816
      %v2818 = vpop.f32.mrb[0].mxu0
      %2819 = vmatprep.mubr.f32.mxu0 0.0
      %2820 = vmatmul.mubr.f32.gmra.mrb[0].mxu0 %v2582
      %v2821 = vpop.f32.mrb[0].mxu0
      %v2822 = vadd.f32 0.0, %v2821
      %v2823 = vpop.f32.mrb[0].mxu0
      %2824 = vdwg.mxu0
      %v2825 = vadd.f32 %v2393, %v2667
      %v2826 = vadd.f32 %v2398, %v2672
      %v2827 = vadd.f32 %v2403, %v2677
      %v2828 = vadd.f32 %v2408, %v2682
      %v2829 = vadd.f32 %v2413, %v2687
      %v2830 = vadd.f32 %v2418, %v2692
      %v2831 = vadd.f32 %v2423, %v2697
      %v2832 = vadd.f32 %v2428, %v2702
      %v2833 = vadd.f32 %v2433, %v2707
      %v2834 = vadd.f32 %v2438, %v2712
      %v2835 = vadd.f32 %v2443, %v2717
      %v2836 = vadd.f32 %v2448, %v2722
      %v2837 = vadd.f32 %v2453, %v2727
      %v2838 = vadd.f32 %v2458, %v2732
      %v2839 = vadd.f32 %v2463, %v2737
      %v2840 = vadd.f32 %v2468, %v2742
      %v2841 = vadd.f32 %v2473, %v2747
      %v2842 = vadd.f32 %v2478, %v2752
      %v2843 = vadd.f32 %v2483, %v2757
      %v2844 = vadd.f32 %v2488, %v2762
      %v2845 = vadd.f32 %v2493, %v2767
      %v2846 = vadd.f32 %v2498, %v2772
      %v2847 = vadd.f32 %v2503, %v2777
      %v2848 = vadd.f32 %v2508, %v2782
      %v2849 = vadd.f32 %v2513, %v2787
      %v2850 = vadd.f32 %v2518, %v2792
      %v2851 = vadd.f32 %v2523, %v2797
      %v2852 = vadd.f32 %v2528, %v2802
      %v2853 = vadd.f32 %v2533, %v2807
      %v2854 = vadd.f32 %v2538, %v2812
      %v2855 = vadd.f32 %v2543, %v2817
      %v2856 = vadd.f32 %v2548, %v2822
      %v2857 = vld [vmem:[%s1971] sm:$0xff]
      %v2858 = vld [vmem:[%s1971 + $0x8] sm:$0xff]
      %v2859 = vld [vmem:[%s1971 + $0x18] sm:$0xff]
      %v2860 = vld [vmem:[%s1971 + $0x20] sm:$0xff]
      %v2861 = vld [vmem:[%s1971 + $0x30] sm:$0xff]
      %v2862 = vld [vmem:[%s1971 + $0x38] sm:$0xff]
      %v2863 = vld [vmem:[%s1971 + $0x48] sm:$0xff]
      %v2864 = vld [vmem:[%s1971 + $0x50] sm:$0xff]
      %v2865 = vld [vmem:[%s1971 + $0x60] sm:$0xff]
      %v2866 = vld [vmem:[%s1971 + $0x68] sm:$0xff]
      %v2867 = vld [vmem:[%s1971 + $0x78] sm:$0xff]
      %v2868 = vld [vmem:[%s1971 + $0x80] sm:$0xff]
      %v2869 = vld [vmem:[%s1971 + $0x90] sm:$0xff]
      %v2870 = vld [vmem:[%s1971 + $0x98] sm:$0xff]
      %v2871 = vld [vmem:[%s1971 + $0xa8] sm:$0xff]
      %v2872 = vld [vmem:[%s1971 + $0xb0] sm:$0xff]
      %v2873 = vld [vmem:[%s1971 + $0xc0] sm:$0xff]
      %v2874 = vld [vmem:[%s1971 + $0xc8] sm:$0xff]
      %v2875 = vld [vmem:[%s1971 + $0xd8] sm:$0xff]
      %v2876 = vld [vmem:[%s1971 + $0xe0] sm:$0xff]
      %v2877 = vld [vmem:[%s1971 + $0xf0] sm:$0xff]
      %v2878 = vld [vmem:[%s1971 + $0xf8] sm:$0xff]
      %v2879 = vld [vmem:[%s1971 + $0x108] sm:$0xff]
      %v2880 = vld [vmem:[%s1971 + $0x110] sm:$0xff]
      %v2881 = vld [vmem:[%s1971 + $0x120] sm:$0xff]
      %v2882 = vld [vmem:[%s1971 + $0x128] sm:$0xff]
      %v2883 = vld [vmem:[%s1971 + $0x138] sm:$0xff]
      %v2884 = vld [vmem:[%s1971 + $0x140] sm:$0xff]
      %v2885 = vld [vmem:[%s1971 + $0x150] sm:$0xff]
      %v2886 = vld [vmem:[%s1971 + $0x158] sm:$0xff]
      %v2887 = vld [vmem:[%s1971 + $0x168] sm:$0xff]
      %v2888 = vld [vmem:[%s1971 + $0x170] sm:$0xff]
      %s2889 = scalar_lea.vmem %s3, 384
      %v2890 = vld [vmem:[%s2889] sm:$0xff]
      %v2891 = vld [vmem:[%s2889 + $0x8] sm:$0xff]
      %v2892 = vld [vmem:[%s2889 + $0x10] sm:$0xff]
      %v2893 = vld [vmem:[%s2889 + $0x18] sm:$0xff]
      %v2894 = vld [vmem:[%s2889 + $0x20] sm:$0xff]
      %v2895 = vld [vmem:[%s2889 + $0x28] sm:$0xff]
      %v2896 = vld [vmem:[%s2889 + $0x30] sm:$0xff]
      %v2897 = vld [vmem:[%s2889 + $0x38] sm:$0xff]
      %v2898 = vld [vmem:[%s2889 + $0x40] sm:$0xff]
      %v2899 = vld [vmem:[%s2889 + $0x48] sm:$0xff]
      %v2900 = vld [vmem:[%s2889 + $0x50] sm:$0xff]
      %v2901 = vld [vmem:[%s2889 + $0x58] sm:$0xff]
      %v2902 = vld [vmem:[%s2889 + $0x60] sm:$0xff]
      %v2903 = vld [vmem:[%s2889 + $0x68] sm:$0xff]
      %v2904 = vld [vmem:[%s2889 + $0x70] sm:$0xff]
      %v2905 = vld [vmem:[%s2889 + $0x78] sm:$0xff]
      %2906 = vmatprep.subr.mxu0 0.0
      %2907 = vmatpush1.msra.mxu0 %v2890
      %2908 = vmatprep.subr.mxu0 0.0
      %2909 = vmatpush1.msra.mxu0 %v2891
      %2910 = vmatprep.subr.mxu0 0.0
      %2911 = vmatpush1.msra.mxu0 %v2892
      %2912 = vmatprep.subr.mxu0 0.0
      %2913 = vmatpush1.msra.mxu0 %v2893
      %2914 = vmatprep.subr.mxu0 0.0
      %2915 = vmatpush1.msra.mxu0 %v2894
      %2916 = vmatprep.subr.mxu0 0.0
      %2917 = vmatpush1.msra.mxu0 %v2895
      %2918 = vmatprep.subr.mxu0 0.0
      %2919 = vmatpush1.msra.mxu0 %v2896
      %2920 = vmatprep.subr.mxu0 0.0
      %2921 = vmatpush1.msra.mxu0 %v2897
      %2922 = vmatprep.subr.mxu0 0.0
      %2923 = vmatpush1.msra.mxu0 %v2898
      %2924 = vmatprep.subr.mxu0 0.0
      %2925 = vmatpush1.msra.mxu0 %v2899
      %2926 = vmatprep.subr.mxu0 0.0
      %2927 = vmatpush1.msra.mxu0 %v2900
      %2928 = vmatprep.subr.mxu0 0.0
      %2929 = vmatpush1.msra.mxu0 %v2901
      %2930 = vmatprep.subr.mxu0 0.0
      %2931 = vmatpush1.msra.mxu0 %v2902
      %2932 = vmatprep.subr.mxu0 0.0
      %2933 = vmatpush1.msra.mxu0 %v2903
      %2934 = vmatprep.subr.mxu0 0.0
      %2935 = vmatpush1.msra.mxu0 %v2904
      %2936 = vmatprep.subr.mxu0 0.0
      %2937 = vmatpush1.msra.mxu0 %v2905
      %2938 = vmatprep.subr.mxu0 0.0
      %2939 = vmatpush1.msra.mxu0 0.0
      %2940 = vmatprep.subr.mxu0 0.0
      %2941 = vmatpush1.msra.mxu0 0.0
      %2942 = vmatprep.subr.mxu0 0.0
      %2943 = vmatpush1.msra.mxu0 0.0
      %2944 = vmatprep.subr.mxu0 0.0
      %2945 = vmatpush1.msra.mxu0 0.0
      %2946 = vmatprep.subr.mxu0 0.0
      %2947 = vmatpush1.msra.mxu0 0.0
      %2948 = vmatprep.subr.mxu0 0.0
      %2949 = vmatpush1.msra.mxu0 0.0
      %2950 = vmatprep.subr.mxu0 0.0
      %2951 = vmatpush1.msra.mxu0 0.0
      %2952 = vmatprep.subr.mxu0 0.0
      %2953 = vmatpush1.msra.mxu0 0.0
      %2954 = vmatprep.subr.mxu0 0.0
      %2955 = vmatpush1.msra.mxu0 0.0
      %2956 = vmatprep.subr.mxu0 0.0
      %2957 = vmatpush1.msra.mxu0 0.0
      %2958 = vmatprep.subr.mxu0 0.0
      %2959 = vmatpush1.msra.mxu0 0.0
      %2960 = vmatprep.subr.mxu0 0.0
      %2961 = vmatpush1.msra.mxu0 0.0
      %2962 = vmatprep.subr.mxu0 0.0
      %2963 = vmatpush1.msra.mxu0 0.0
      %2964 = vmatprep.subr.mxu0 0.0
      %2965 = vmatpush1.msra.mxu0 0.0
      %2966 = vmatprep.subr.mxu0 0.0
      %2967 = vmatpush1.msra.mxu0 0.0
      %2968 = vmatprep.subr.mxu0 0.0
      %2969 = vmatpush1.msra.mxu0 0.0
      %2970 = vmatprep.mubr.f32.mxu0 0.0
      %2971 = vmatmul.mubr.f32.gmra.mrb[0].mxu0 %v2857
      %v2972 = vpop.f32.mrb[0].mxu0
      %v2973 = vadd.f32 0.0, %v2972
      %v2974 = vpop.f32.mrb[0].mxu0
      %2975 = vmatprep.mubr.f32.mxu0 0.0
      %2976 = vmatmul.mubr.f32.gmra.mrb[0].mxu0 %v2858
      %v2977 = vpop.f32.mrb[0].mxu0
      %v2978 = vadd.f32 0.0, %v2977
      %v2979 = vpop.f32.mrb[0].mxu0
      %2980 = vmatprep.mubr.f32.mxu0 0.0
      %2981 = vmatmul.mubr.f32.gmra.mrb[0].mxu0 %v2859
      %v2982 = vpop.f32.mrb[0].mxu0
      %v2983 = vadd.f32 0.0, %v2982
      %v2984 = vpop.f32.mrb[0].mxu0
      %2985 = vmatprep.mubr.f32.mxu0 0.0
      %2986 = vmatmul.mubr.f32.gmra.mrb[0].mxu0 %v2860
      %v2987 = vpop.f32.mrb[0].mxu0
      %v2988 = vadd.f32 0.0, %v2987
      %v2989 = vpop.f32.mrb[0].mxu0
      %2990 = vmatprep.mubr.f32.mxu0 0.0
      %2991 = vmatmul.mubr.f32.gmra.mrb[0].mxu0 %v2861
      %v2992 = vpop.f32.mrb[0].mxu0
      %v2993 = vadd.f32 0.0, %v2992
      %v2994 = vpop.f32.mrb[0].mxu0
      %2995 = vmatprep.mubr.f32.mxu0 0.0
      %2996 = vmatmul.mubr.f32.gmra.mrb[0].mxu0 %v2862
      %v2997 = vpop.f32.mrb[0].mxu0
      %v2998 = vadd.f32 0.0, %v2997
      %v2999 = vpop.f32.mrb[0].mxu0
      %3000 = vmatprep.mubr.f32.mxu0 0.0
      %3001 = vmatmul.mubr.f32.gmra.mrb[0].mxu0 %v2863
      %v3002 = vpop.f32.mrb[0].mxu0
      %v3003 = vadd.f32 0.0, %v3002
      %v3004 = vpop.f32.mrb[0].mxu0
      %3005 = vmatprep.mubr.f32.mxu0 0.0
      %3006 = vmatmul.mubr.f32.gmra.mrb[0].mxu0 %v2864
      %v3007 = vpop.f32.mrb[0].mxu0
      %v3008 = vadd.f32 0.0, %v3007
      %v3009 = vpop.f32.mrb[0].mxu0
      %3010 = vmatprep.mubr.f32.mxu0 0.0
      %3011 = vmatmul.mubr.f32.gmra.mrb[0].mxu0 %v2865
      %v3012 = vpop.f32.mrb[0].mxu0
      %v3013 = vadd.f32 0.0, %v3012
      %v3014 = vpop.f32.mrb[0].mxu0
      %3015 = vmatprep.mubr.f32.mxu0 0.0
      %3016 = vmatmul.mubr.f32.gmra.mrb[0].mxu0 %v2866
      %v3017 = vpop.f32.mrb[0].mxu0
      %v3018 = vadd.f32 0.0, %v3017
      %v3019 = vpop.f32.mrb[0].mxu0
      %3020 = vmatprep.mubr.f32.mxu0 0.0
      %3021 = vmatmul.mubr.f32.gmra.mrb[0].mxu0 %v2867
      %v3022 = vpop.f32.mrb[0].mxu0
      %v3023 = vadd.f32 0.0, %v3022
      %v3024 = vpop.f32.mrb[0].mxu0
      %3025 = vmatprep.mubr.f32.mxu0 0.0
      %3026 = vmatmul.mubr.f32.gmra.mrb[0].mxu0 %v2868
      %v3027 = vpop.f32.mrb[0].mxu0
      %v3028 = vadd.f32 0.0, %v3027
      %v3029 = vpop.f32.mrb[0].mxu0
      %3030 = vmatprep.mubr.f32.mxu0 0.0
      %3031 = vmatmul.mubr.f32.gmra.mrb[0].mxu0 %v2869
      %v3032 = vpop.f32.mrb[0].mxu0
      %v3033 = vadd.f32 0.0, %v3032
      %v3034 = vpop.f32.mrb[0].mxu0
      %3035 = vmatprep.mubr.f32.mxu0 0.0
      %3036 = vmatmul.mubr.f32.gmra.mrb[0].mxu0 %v2870
      %v3037 = vpop.f32.mrb[0].mxu0
      %v3038 = vadd.f32 0.0, %v3037
      %v3039 = vpop.f32.mrb[0].mxu0
      %3040 = vmatprep.mubr.f32.mxu0 0.0
      %3041 = vmatmul.mubr.f32.gmra.mrb[0].mxu0 %v2871
      %v3042 = vpop.f32.mrb[0].mxu0
      %v3043 = vadd.f32 0.0, %v3042
      %v3044 = vpop.f32.mrb[0].mxu0
      %3045 = vmatprep.mubr.f32.mxu0 0.0
      %3046 = vmatmul.mubr.f32.gmra.mrb[0].mxu0 %v2872
      %v3047 = vpop.f32.mrb[0].mxu0
      %v3048 = vadd.f32 0.0, %v3047
      %v3049 = vpop.f32.mrb[0].mxu0
      %3050 = vmatprep.mubr.f32.mxu0 0.0
      %3051 = vmatmul.mubr.f32.gmra.mrb[0].mxu0 %v2873
      %v3052 = vpop.f32.mrb[0].mxu0
      %v3053 = vadd.f32 0.0, %v3052
      %v3054 = vpop.f32.mrb[0].mxu0
      %3055 = vmatprep.mubr.f32.mxu0 0.0
      %3056 = vmatmul.mubr.f32.gmra.mrb[0].mxu0 %v2874
      %v3057 = vpop.f32.mrb[0].mxu0
      %v3058 = vadd.f32 0.0, %v3057
      %v3059 = vpop.f32.mrb[0].mxu0
      %3060 = vmatprep.mubr.f32.mxu0 0.0
      %3061 = vmatmul.mubr.f32.gmra.mrb[0].mxu0 %v2875
      %v3062 = vpop.f32.mrb[0].mxu0
      %v3063 = vadd.f32 0.0, %v3062
      %v3064 = vpop.f32.mrb[0].mxu0
      %3065 = vmatprep.mubr.f32.mxu0 0.0
      %3066 = vmatmul.mubr.f32.gmra.mrb[0].mxu0 %v2876
      %v3067 = vpop.f32.mrb[0].mxu0
      %v3068 = vadd.f32 0.0, %v3067
      %v3069 = vpop.f32.mrb[0].mxu0
      %3070 = vmatprep.mubr.f32.mxu0 0.0
      %3071 = vmatmul.mubr.f32.gmra.mrb[0].mxu0 %v2877
      %v3072 = vpop.f32.mrb[0].mxu0
      %v3073 = vadd.f32 0.0, %v3072
      %v3074 = vpop.f32.mrb[0].mxu0
      %3075 = vmatprep.mubr.f32.mxu0 0.0
      %3076 = vmatmul.mubr.f32.gmra.mrb[0].mxu0 %v2878
      %v3077 = vpop.f32.mrb[0].mxu0
      %v3078 = vadd.f32 0.0, %v3077
      %v3079 = vpop.f32.mrb[0].mxu0
      %3080 = vmatprep.mubr.f32.mxu0 0.0
      %3081 = vmatmul.mubr.f32.gmra.mrb[0].mxu0 %v2879
      %v3082 = vpop.f32.mrb[0].mxu0
      %v3083 = vadd.f32 0.0, %v3082
      %v3084 = vpop.f32.mrb[0].mxu0
      %3085 = vmatprep.mubr.f32.mxu0 0.0
      %3086 = vmatmul.mubr.f32.gmra.mrb[0].mxu0 %v2880
      %v3087 = vpop.f32.mrb[0].mxu0
      %v3088 = vadd.f32 0.0, %v3087
      %v3089 = vpop.f32.mrb[0].mxu0
      %3090 = vmatprep.mubr.f32.mxu0 0.0
      %3091 = vmatmul.mubr.f32.gmra.mrb[0].mxu0 %v2881
      %v3092 = vpop.f32.mrb[0].mxu0
      %v3093 = vadd.f32 0.0, %v3092
      %v3094 = vpop.f32.mrb[0].mxu0
      %3095 = vmatprep.mubr.f32.mxu0 0.0
      %3096 = vmatmul.mubr.f32.gmra.mrb[0].mxu0 %v2882
      %v3097 = vpop.f32.mrb[0].mxu0
      %v3098 = vadd.f32 0.0, %v3097
      %v3099 = vpop.f32.mrb[0].mxu0
      %3100 = vmatprep.mubr.f32.mxu0 0.0
      %3101 = vmatmul.mubr.f32.gmra.mrb[0].mxu0 %v2883
      %v3102 = vpop.f32.mrb[0].mxu0
      %v3103 = vadd.f32 0.0, %v3102
      %v3104 = vpop.f32.mrb[0].mxu0
      %3105 = vmatprep.mubr.f32.mxu0 0.0
      %3106 = vmatmul.mubr.f32.gmra.mrb[0].mxu0 %v2884
      %v3107 = vpop.f32.mrb[0].mxu0
      %v3108 = vadd.f32 0.0, %v3107
      %v3109 = vpop.f32.mrb[0].mxu0
      %3110 = vmatprep.mubr.f32.mxu0 0.0
      %3111 = vmatmul.mubr.f32.gmra.mrb[0].mxu0 %v2885
      %v3112 = vpop.f32.mrb[0].mxu0
      %v3113 = vadd.f32 0.0, %v3112
      %v3114 = vpop.f32.mrb[0].mxu0
      %3115 = vmatprep.mubr.f32.mxu0 0.0
      %3116 = vmatmul.mubr.f32.gmra.mrb[0].mxu0 %v2886
      %v3117 = vpop.f32.mrb[0].mxu0
      %v3118 = vadd.f32 0.0, %v3117
      %v3119 = vpop.f32.mrb[0].mxu0
      %3120 = vmatprep.mubr.f32.mxu0 0.0
      %3121 = vmatmul.mubr.f32.gmra.mrb[0].mxu0 %v2887
      %v3122 = vpop.f32.mrb[0].mxu0
      %v3123 = vadd.f32 0.0, %v3122
      %v3124 = vpop.f32.mrb[0].mxu0
      %3125 = vmatprep.mubr.f32.mxu0 0.0
      %3126 = vmatmul.mubr.f32.gmra.mrb[0].mxu0 %v2888
      %v3127 = vpop.f32.mrb[0].mxu0
      %v3128 = vadd.f32 0.0, %v3127
      %v3129 = vpop.f32.mrb[0].mxu0
      %3130 = vdwg.mxu0
      %v3131 = vadd.f32 %v2825, %v2973
      %v3132 = vadd.f32 %v2826, %v2978
      %v3133 = vadd.f32 %v2827, %v2983
      %v3134 = vadd.f32 %v2828, %v2988
      %v3135 = vadd.f32 %v2829, %v2993
      %v3136 = vadd.f32 %v2830, %v2998
      %v3137 = vadd.f32 %v2831, %v3003
      %v3138 = vadd.f32 %v2832, %v3008
      %v3139 = vadd.f32 %v2833, %v3013
      %v3140 = vadd.f32 %v2834, %v3018
      %v3141 = vadd.f32 %v2835, %v3023
      %v3142 = vadd.f32 %v2836, %v3028
      %v3143 = vadd.f32 %v2837, %v3033
      %v3144 = vadd.f32 %v2838, %v3038
      %v3145 = vadd.f32 %v2839, %v3043
      %v3146 = vadd.f32 %v2840, %v3048
      %v3147 = vadd.f32 %v2841, %v3053
      %v3148 = vadd.f32 %v2842, %v3058
      %v3149 = vadd.f32 %v2843, %v3063
      %v3150 = vadd.f32 %v2844, %v3068
      %v3151 = vadd.f32 %v2845, %v3073
      %v3152 = vadd.f32 %v2846, %v3078
      %v3153 = vadd.f32 %v2847, %v3083
      %v3154 = vadd.f32 %v2848, %v3088
      %v3155 = vadd.f32 %v2849, %v3093
      %v3156 = vadd.f32 %v2850, %v3098
      %v3157 = vadd.f32 %v2851, %v3103
      %v3158 = vadd.f32 %v2852, %v3108
      %v3159 = vadd.f32 %v2853, %v3113
      %v3160 = vadd.f32 %v2854, %v3118
      %v3161 = vadd.f32 %v2855, %v3123
      %v3162 = vadd.f32 %v2856, %v3128
      %v3163 = vld [vmem:[%s1971 + $0x1] sm:$0xff]
      %v3164 = vld [vmem:[%s1971 + $0x9] sm:$0xff]
      %v3165 = vld [vmem:[%s1971 + $0x19] sm:$0xff]
      %v3166 = vld [vmem:[%s1971 + $0x21] sm:$0xff]
      %v3167 = vld [vmem:[%s1971 + $0x31] sm:$0xff]
      %v3168 = vld [vmem:[%s1971 + $0x39] sm:$0xff]
      %v3169 = vld [vmem:[%s1971 + $0x49] sm:$0xff]
      %v3170 = vld [vmem:[%s1971 + $0x51] sm:$0xff]
      %v3171 = vld [vmem:[%s1971 + $0x61] sm:$0xff]
      %v3172 = vld [vmem:[%s1971 + $0x69] sm:$0xff]
      %v3173 = vld [vmem:[%s1971 + $0x79] sm:$0xff]
      %v3174 = vld [vmem:[%s1971 + $0x81] sm:$0xff]
      %v3175 = vld [vmem:[%s1971 + $0x91] sm:$0xff]
      %v3176 = vld [vmem:[%s1971 + $0x99] sm:$0xff]
      %v3177 = vld [vmem:[%s1971 + $0xa9] sm:$0xff]
      %v3178 = vld [vmem:[%s1971 + $0xb1] sm:$0xff]
      %v3179 = vld [vmem:[%s1971 + $0xc1] sm:$0xff]
      %v3180 = vld [vmem:[%s1971 + $0xc9] sm:$0xff]
      %v3181 = vld [vmem:[%s1971 + $0xd9] sm:$0xff]
      %v3182 = vld [vmem:[%s1971 + $0xe1] sm:$0xff]
      %v3183 = vld [vmem:[%s1971 + $0xf1] sm:$0xff]
      %v3184 = vld [vmem:[%s1971 + $0xf9] sm:$0xff]
      %v3185 = vld [vmem:[%s1971 + $0x109] sm:$0xff]
      %v3186 = vld [vmem:[%s1971 + $0x111] sm:$0xff]
      %v3187 = vld [vmem:[%s1971 + $0x121] sm:$0xff]
      %v3188 = vld [vmem:[%s1971 + $0x129] sm:$0xff]
      %v3189 = vld [vmem:[%s1971 + $0x139] sm:$0xff]
      %v3190 = vld [vmem:[%s1971 + $0x141] sm:$0xff]
      %v3191 = vld [vmem:[%s1971 + $0x151] sm:$0xff]
      %v3192 = vld [vmem:[%s1971 + $0x159] sm:$0xff]
      %v3193 = vld [vmem:[%s1971 + $0x169] sm:$0xff]
      %v3194 = vld [vmem:[%s1971 + $0x171] sm:$0xff]
      %s3195 = scalar_lea.vmem %s3, 512
      %v3196 = vld [vmem:[%s3195] sm:$0xff]
      %v3197 = vld [vmem:[%s3195 + $0x8] sm:$0xff]
      %v3198 = vld [vmem:[%s3195 + $0x10] sm:$0xff]
      %v3199 = vld [vmem:[%s3195 + $0x18] sm:$0xff]
      %v3200 = vld [vmem:[%s3195 + $0x20] sm:$0xff]
      %v3201 = vld [vmem:[%s3195 + $0x28] sm:$0xff]
      %v3202 = vld [vmem:[%s3195 + $0x30] sm:$0xff]
      %v3203 = vld [vmem:[%s3195 + $0x38] sm:$0xff]
      %v3204 = vld [vmem:[%s3195 + $0x40] sm:$0xff]
      %v3205 = vld [vmem:[%s3195 + $0x48] sm:$0xff]
      %v3206 = vld [vmem:[%s3195 + $0x50] sm:$0xff]
      %v3207 = vld [vmem:[%s3195 + $0x58] sm:$0xff]
      %v3208 = vld [vmem:[%s3195 + $0x60] sm:$0xff]
      %v3209 = vld [vmem:[%s3195 + $0x68] sm:$0xff]
      %v3210 = vld [vmem:[%s3195 + $0x70] sm:$0xff]
      %v3211 = vld [vmem:[%s3195 + $0x78] sm:$0xff]
      %3212 = vmatprep.subr.mxu0 0.0
      %3213 = vmatpush1.msra.mxu0 %v3196
      %3214 = vmatprep.subr.mxu0 0.0
      %3215 = vmatpush1.msra.mxu0 %v3197
      %3216 = vmatprep.subr.mxu0 0.0
      %3217 = vmatpush1.msra.mxu0 %v3198
      %3218 = vmatprep.subr.mxu0 0.0
      %3219 = vmatpush1.msra.mxu0 %v3199
      %3220 = vmatprep.subr.mxu0 0.0
      %3221 = vmatpush1.msra.mxu0 %v3200
      %3222 = vmatprep.subr.mxu0 0.0
      %3223 = vmatpush1.msra.mxu0 %v3201
      %3224 = vmatprep.subr.mxu0 0.0
      %3225 = vmatpush1.msra.mxu0 %v3202
      %3226 = vmatprep.subr.mxu0 0.0
      %3227 = vmatpush1.msra.mxu0 %v3203
      %3228 = vmatprep.subr.mxu0 0.0
      %3229 = vmatpush1.msra.mxu0 %v3204
      %3230 = vmatprep.subr.mxu0 0.0
      %3231 = vmatpush1.msra.mxu0 %v3205
      %3232 = vmatprep.subr.mxu0 0.0
      %3233 = vmatpush1.msra.mxu0 %v3206
      %3234 = vmatprep.subr.mxu0 0.0
      %3235 = vmatpush1.msra.mxu0 %v3207
      %3236 = vmatprep.subr.mxu0 0.0
      %3237 = vmatpush1.msra.mxu0 %v3208
      %3238 = vmatprep.subr.mxu0 0.0
      %3239 = vmatpush1.msra.mxu0 %v3209
      %3240 = vmatprep.subr.mxu0 0.0
      %3241 = vmatpush1.msra.mxu0 %v3210
      %3242 = vmatprep.subr.mxu0 0.0
      %3243 = vmatpush1.msra.mxu0 %v3211
      %3244 = vmatprep.subr.mxu0 0.0
      %3245 = vmatpush1.msra.mxu0 0.0
      %3246 = vmatprep.subr.mxu0 0.0
      %3247 = vmatpush1.msra.mxu0 0.0
      %3248 = vmatprep.subr.mxu0 0.0
      %3249 = vmatpush1.msra.mxu0 0.0
      %3250 = vmatprep.subr.mxu0 0.0
      %3251 = vmatpush1.msra.mxu0 0.0
      %3252 = vmatprep.subr.mxu0 0.0
      %3253 = vmatpush1.msra.mxu0 0.0
      %3254 = vmatprep.subr.mxu0 0.0
      %3255 = vmatpush1.msra.mxu0 0.0
      %3256 = vmatprep.subr.mxu0 0.0
      %3257 = vmatpush1.msra.mxu0 0.0
      %3258 = vmatprep.subr.mxu0 0.0
      %3259 = vmatpush1.msra.mxu0 0.0
      %3260 = vmatprep.subr.mxu0 0.0
      %3261 = vmatpush1.msra.mxu0 0.0
      %3262 = vmatprep.subr.mxu0 0.0
      %3263 = vmatpush1.msra.mxu0 0.0
      %3264 = vmatprep.subr.mxu0 0.0
      %3265 = vmatpush1.msra.mxu0 0.0
      %3266 = vmatprep.subr.mxu0 0.0
      %3267 = vmatpush1.msra.mxu0 0.0
      %3268 = vmatprep.subr.mxu0 0.0
      %3269 = vmatpush1.msra.mxu0 0.0
      %3270 = vmatprep.subr.mxu0 0.0
      %3271 = vmatpush1.msra.mxu0 0.0
      %3272 = vmatprep.subr.mxu0 0.0
      %3273 = vmatpush1.msra.mxu0 0.0
      %3274 = vmatprep.subr.mxu0 0.0
      %3275 = vmatpush1.msra.mxu0 0.0
      %3276 = vmatprep.mubr.f32.mxu0 0.0
      %3277 = vmatmul.mubr.f32.gmra.mrb[0].mxu0 %v3163
      %v3278 = vpop.f32.mrb[0].mxu0
      %v3279 = vadd.f32 0.0, %v3278
      %v3280 = vpop.f32.mrb[0].mxu0
      %3281 = vmatprep.mubr.f32.mxu0 0.0
      %3282 = vmatmul.mubr.f32.gmra.mrb[0].mxu0 %v3164
      %v3283 = vpop.f32.mrb[0].mxu0
      %v3284 = vadd.f32 0.0, %v3283
      %v3285 = vpop.f32.mrb[0].mxu0
      %3286 = vmatprep.mubr.f32.mxu0 0.0
      %3287 = vmatmul.mubr.f32.gmra.mrb[0].mxu0 %v3165
      %v3288 = vpop.f32.mrb[0].mxu0
      %v3289 = vadd.f32 0.0, %v3288
      %v3290 = vpop.f32.mrb[0].mxu0
      %3291 = vmatprep.mubr.f32.mxu0 0.0
      %3292 = vmatmul.mubr.f32.gmra.mrb[0].mxu0 %v3166
      %v3293 = vpop.f32.mrb[0].mxu0
      %v3294 = vadd.f32 0.0, %v3293
      %v3295 = vpop.f32.mrb[0].mxu0
      %3296 = vmatprep.mubr.f32.mxu0 0.0
      %3297 = vmatmul.mubr.f32.gmra.mrb[0].mxu0 %v3167
      %v3298 = vpop.f32.mrb[0].mxu0
      %v3299 = vadd.f32 0.0, %v3298
      %v3300 = vpop.f32.mrb[0].mxu0
      %3301 = vmatprep.mubr.f32.mxu0 0.0
      %3302 = vmatmul.mubr.f32.gmra.mrb[0].mxu0 %v3168
      %v3303 = vpop.f32.mrb[0].mxu0
      %v3304 = vadd.f32 0.0, %v3303
      %v3305 = vpop.f32.mrb[0].mxu0
      %3306 = vmatprep.mubr.f32.mxu0 0.0
      %3307 = vmatmul.mubr.f32.gmra.mrb[0].mxu0 %v3169
      %v3308 = vpop.f32.mrb[0].mxu0
      %v3309 = vadd.f32 0.0, %v3308
      %v3310 = vpop.f32.mrb[0].mxu0
      %3311 = vmatprep.mubr.f32.mxu0 0.0
      %3312 = vmatmul.mubr.f32.gmra.mrb[0].mxu0 %v3170
      %v3313 = vpop.f32.mrb[0].mxu0
      %v3314 = vadd.f32 0.0, %v3313
      %v3315 = vpop.f32.mrb[0].mxu0
      %3316 = vmatprep.mubr.f32.mxu0 0.0
      %3317 = vmatmul.mubr.f32.gmra.mrb[0].mxu0 %v3171
      %v3318 = vpop.f32.mrb[0].mxu0
      %v3319 = vadd.f32 0.0, %v3318
      %v3320 = vpop.f32.mrb[0].mxu0
      %3321 = vmatprep.mubr.f32.mxu0 0.0
      %3322 = vmatmul.mubr.f32.gmra.mrb[0].mxu0 %v3172
      %v3323 = vpop.f32.mrb[0].mxu0
      %v3324 = vadd.f32 0.0, %v3323
      %v3325 = vpop.f32.mrb[0].mxu0
      %3326 = vmatprep.mubr.f32.mxu0 0.0
      %3327 = vmatmul.mubr.f32.gmra.mrb[0].mxu0 %v3173
      %v3328 = vpop.f32.mrb[0].mxu0
      %v3329 = vadd.f32 0.0, %v3328
      %v3330 = vpop.f32.mrb[0].mxu0
      %3331 = vmatprep.mubr.f32.mxu0 0.0
      %3332 = vmatmul.mubr.f32.gmra.mrb[0].mxu0 %v3174
      %v3333 = vpop.f32.mrb[0].mxu0
      %v3334 = vadd.f32 0.0, %v3333
      %v3335 = vpop.f32.mrb[0].mxu0
      %3336 = vmatprep.mubr.f32.mxu0 0.0
      %3337 = vmatmul.mubr.f32.gmra.mrb[0].mxu0 %v3175
      %v3338 = vpop.f32.mrb[0].mxu0
      %v3339 = vadd.f32 0.0, %v3338
      %v3340 = vpop.f32.mrb[0].mxu0
      %3341 = vmatprep.mubr.f32.mxu0 0.0
      %3342 = vmatmul.mubr.f32.gmra.mrb[0].mxu0 %v3176
      %v3343 = vpop.f32.mrb[0].mxu0
      %v3344 = vadd.f32 0.0, %v3343
      %v3345 = vpop.f32.mrb[0].mxu0
      %3346 = vmatprep.mubr.f32.mxu0 0.0
      %3347 = vmatmul.mubr.f32.gmra.mrb[0].mxu0 %v3177
      %v3348 = vpop.f32.mrb[0].mxu0
      %v3349 = vadd.f32 0.0, %v3348
      %v3350 = vpop.f32.mrb[0].mxu0
      %3351 = vmatprep.mubr.f32.mxu0 0.0
      %3352 = vmatmul.mubr.f32.gmra.mrb[0].mxu0 %v3178
      %v3353 = vpop.f32.mrb[0].mxu0
      %v3354 = vadd.f32 0.0, %v3353
      %v3355 = vpop.f32.mrb[0].mxu0
      %3356 = vmatprep.mubr.f32.mxu0 0.0
      %3357 = vmatmul.mubr.f32.gmra.mrb[0].mxu0 %v3179
      %v3358 = vpop.f32.mrb[0].mxu0
      %v3359 = vadd.f32 0.0, %v3358
      %v3360 = vpop.f32.mrb[0].mxu0
      %3361 = vmatprep.mubr.f32.mxu0 0.0
      %3362 = vmatmul.mubr.f32.gmra.mrb[0].mxu0 %v3180
      %v3363 = vpop.f32.mrb[0].mxu0
      %v3364 = vadd.f32 0.0, %v3363
      %v3365 = vpop.f32.mrb[0].mxu0
      %3366 = vmatprep.mubr.f32.mxu0 0.0
      %3367 = vmatmul.mubr.f32.gmra.mrb[0].mxu0 %v3181
      %v3368 = vpop.f32.mrb[0].mxu0
      %v3369 = vadd.f32 0.0, %v3368
      %v3370 = vpop.f32.mrb[0].mxu0
      %3371 = vmatprep.mubr.f32.mxu0 0.0
      %3372 = vmatmul.mubr.f32.gmra.mrb[0].mxu0 %v3182
      %v3373 = vpop.f32.mrb[0].mxu0
      %v3374 = vadd.f32 0.0, %v3373
      %v3375 = vpop.f32.mrb[0].mxu0
      %3376 = vmatprep.mubr.f32.mxu0 0.0
      %3377 = vmatmul.mubr.f32.gmra.mrb[0].mxu0 %v3183
      %v3378 = vpop.f32.mrb[0].mxu0
      %v3379 = vadd.f32 0.0, %v3378
      %v3380 = vpop.f32.mrb[0].mxu0
      %3381 = vmatprep.mubr.f32.mxu0 0.0
      %3382 = vmatmul.mubr.f32.gmra.mrb[0].mxu0 %v3184
      %v3383 = vpop.f32.mrb[0].mxu0
      %v3384 = vadd.f32 0.0, %v3383
      %v3385 = vpop.f32.mrb[0].mxu0
      %3386 = vmatprep.mubr.f32.mxu0 0.0
      %3387 = vmatmul.mubr.f32.gmra.mrb[0].mxu0 %v3185
      %v3388 = vpop.f32.mrb[0].mxu0
      %v3389 = vadd.f32 0.0, %v3388
      %v3390 = vpop.f32.mrb[0].mxu0
      %3391 = vmatprep.mubr.f32.mxu0 0.0
      %3392 = vmatmul.mubr.f32.gmra.mrb[0].mxu0 %v3186
      %v3393 = vpop.f32.mrb[0].mxu0
      %v3394 = vadd.f32 0.0, %v3393
      %v3395 = vpop.f32.mrb[0].mxu0
      %3396 = vmatprep.mubr.f32.mxu0 0.0
      %3397 = vmatmul.mubr.f32.gmra.mrb[0].mxu0 %v3187
      %v3398 = vpop.f32.mrb[0].mxu0
      %v3399 = vadd.f32 0.0, %v3398
      %v3400 = vpop.f32.mrb[0].mxu0
      %3401 = vmatprep.mubr.f32.mxu0 0.0
      %3402 = vmatmul.mubr.f32.gmra.mrb[0].mxu0 %v3188
      %v3403 = vpop.f32.mrb[0].mxu0
      %v3404 = vadd.f32 0.0, %v3403
      %v3405 = vpop.f32.mrb[0].mxu0
      %3406 = vmatprep.mubr.f32.mxu0 0.0
      %3407 = vmatmul.mubr.f32.gmra.mrb[0].mxu0 %v3189
      %v3408 = vpop.f32.mrb[0].mxu0
      %v3409 = vadd.f32 0.0, %v3408
      %v3410 = vpop.f32.mrb[0].mxu0
      %3411 = vmatprep.mubr.f32.mxu0 0.0
      %3412 = vmatmul.mubr.f32.gmra.mrb[0].mxu0 %v3190
      %v3413 = vpop.f32.mrb[0].mxu0
      %v3414 = vadd.f32 0.0, %v3413
      %v3415 = vpop.f32.mrb[0].mxu0
      %3416 = vmatprep.mubr.f32.mxu0 0.0
      %3417 = vmatmul.mubr.f32.gmra.mrb[0].mxu0 %v3191
      %v3418 = vpop.f32.mrb[0].mxu0
      %v3419 = vadd.f32 0.0, %v3418
      %v3420 = vpop.f32.mrb[0].mxu0
      %3421 = vmatprep.mubr.f32.mxu0 0.0
      %3422 = vmatmul.mubr.f32.gmra.mrb[0].mxu0 %v3192
      %v3423 = vpop.f32.mrb[0].mxu0
      %v3424 = vadd.f32 0.0, %v3423
      %v3425 = vpop.f32.mrb[0].mxu0
      %3426 = vmatprep.mubr.f32.mxu0 0.0
      %3427 = vmatmul.mubr.f32.gmra.mrb[0].mxu0 %v3193
      %v3428 = vpop.f32.mrb[0].mxu0
      %v3429 = vadd.f32 0.0, %v3428
      %v3430 = vpop.f32.mrb[0].mxu0
      %3431 = vmatprep.mubr.f32.mxu0 0.0
      %3432 = vmatmul.mubr.f32.gmra.mrb[0].mxu0 %v3194
      %v3433 = vpop.f32.mrb[0].mxu0
      %v3434 = vadd.f32 0.0, %v3433
      %v3435 = vpop.f32.mrb[0].mxu0
      %3436 = vdwg.mxu0
      %v3437 = vadd.f32 %v3131, %v3279
      %v3438 = vadd.f32 %v3132, %v3284
      %v3439 = vadd.f32 %v3133, %v3289
      %v3440 = vadd.f32 %v3134, %v3294
      %v3441 = vadd.f32 %v3135, %v3299
      %v3442 = vadd.f32 %v3136, %v3304
      %v3443 = vadd.f32 %v3137, %v3309
      %v3444 = vadd.f32 %v3138, %v3314
      %v3445 = vadd.f32 %v3139, %v3319
      %v3446 = vadd.f32 %v3140, %v3324
      %v3447 = vadd.f32 %v3141, %v3329
      %v3448 = vadd.f32 %v3142, %v3334
      %v3449 = vadd.f32 %v3143, %v3339
      %v3450 = vadd.f32 %v3144, %v3344
      %v3451 = vadd.f32 %v3145, %v3349
      %v3452 = vadd.f32 %v3146, %v3354
      %v3453 = vadd.f32 %v3147, %v3359
      %v3454 = vadd.f32 %v3148, %v3364
      %v3455 = vadd.f32 %v3149, %v3369
      %v3456 = vadd.f32 %v3150, %v3374
      %v3457 = vadd.f32 %v3151, %v3379
      %v3458 = vadd.f32 %v3152, %v3384
      %v3459 = vadd.f32 %v3153, %v3389
      %v3460 = vadd.f32 %v3154, %v3394
      %v3461 = vadd.f32 %v3155, %v3399
      %v3462 = vadd.f32 %v3156, %v3404
      %v3463 = vadd.f32 %v3157, %v3409
      %v3464 = vadd.f32 %v3158, %v3414
      %v3465 = vadd.f32 %v3159, %v3419
      %v3466 = vadd.f32 %v3160, %v3424
      %v3467 = vadd.f32 %v3161, %v3429
      %v3468 = vadd.f32 %v3162, %v3434
      %v3469 = vld [vmem:[%s1971 + $0x2] sm:$0xff]
      %v3470 = vld [vmem:[%s1971 + $0xa] sm:$0xff]
      %v3471 = vld [vmem:[%s1971 + $0x1a] sm:$0xff]
      %v3472 = vld [vmem:[%s1971 + $0x22] sm:$0xff]
      %v3473 = vld [vmem:[%s1971 + $0x32] sm:$0xff]
      %v3474 = vld [vmem:[%s1971 + $0x3a] sm:$0xff]
      %v3475 = vld [vmem:[%s1971 + $0x4a] sm:$0xff]
      %v3476 = vld [vmem:[%s1971 + $0x52] sm:$0xff]
      %v3477 = vld [vmem:[%s1971 + $0x62] sm:$0xff]
      %v3478 = vld [vmem:[%s1971 + $0x6a] sm:$0xff]
      %v3479 = vld [vmem:[%s1971 + $0x7a] sm:$0xff]
      %v3480 = vld [vmem:[%s1971 + $0x82] sm:$0xff]
      %v3481 = vld [vmem:[%s1971 + $0x92] sm:$0xff]
      %v3482 = vld [vmem:[%s1971 + $0x9a] sm:$0xff]
      %v3483 = vld [vmem:[%s1971 + $0xaa] sm:$0xff]
      %v3484 = vld [vmem:[%s1971 + $0xb2] sm:$0xff]
      %v3485 = vld [vmem:[%s1971 + $0xc2] sm:$0xff]
      %v3486 = vld [vmem:[%s1971 + $0xca] sm:$0xff]
      %v3487 = vld [vmem:[%s1971 + $0xda] sm:$0xff]
      %v3488 = vld [vmem:[%s1971 + $0xe2] sm:$0xff]
      %v3489 = vld [vmem:[%s1971 + $0xf2] sm:$0xff]
      %v3490 = vld [vmem:[%s1971 + $0xfa] sm:$0xff]
      %v3491 = vld [vmem:[%s1971 + $0x10a] sm:$0xff]
      %v3492 = vld [vmem:[%s1971 + $0x112] sm:$0xff]
      %v3493 = vld [vmem:[%s1971 + $0x122] sm:$0xff]
      %v3494 = vld [vmem:[%s1971 + $0x12a] sm:$0xff]
      %v3495 = vld [vmem:[%s1971 + $0x13a] sm:$0xff]
      %v3496 = vld [vmem:[%s1971 + $0x142] sm:$0xff]
      %v3497 = vld [vmem:[%s1971 + $0x152] sm:$0xff]
      %v3498 = vld [vmem:[%s1971 + $0x15a] sm:$0xff]
      %v3499 = vld [vmem:[%s1971 + $0x16a] sm:$0xff]
      %v3500 = vld [vmem:[%s1971 + $0x172] sm:$0xff]
      %s3501 = scalar_lea.vmem %s3, 640
      %v3502 = vld [vmem:[%s3501] sm:$0xff]
      %v3503 = vld [vmem:[%s3501 + $0x8] sm:$0xff]
      %v3504 = vld [vmem:[%s3501 + $0x10] sm:$0xff]
      %v3505 = vld [vmem:[%s3501 + $0x18] sm:$0xff]
      %v3506 = vld [vmem:[%s3501 + $0x20] sm:$0xff]
      %v3507 = vld [vmem:[%s3501 + $0x28] sm:$0xff]
      %v3508 = vld [vmem:[%s3501 + $0x30] sm:$0xff]
      %v3509 = vld [vmem:[%s3501 + $0x38] sm:$0xff]
      %v3510 = vld [vmem:[%s3501 + $0x40] sm:$0xff]
      %v3511 = vld [vmem:[%s3501 + $0x48] sm:$0xff]
      %v3512 = vld [vmem:[%s3501 + $0x50] sm:$0xff]
      %v3513 = vld [vmem:[%s3501 + $0x58] sm:$0xff]
      %v3514 = vld [vmem:[%s3501 + $0x60] sm:$0xff]
      %v3515 = vld [vmem:[%s3501 + $0x68] sm:$0xff]
      %v3516 = vld [vmem:[%s3501 + $0x70] sm:$0xff]
      %v3517 = vld [vmem:[%s3501 + $0x78] sm:$0xff]
      %3518 = vmatprep.subr.mxu0 0.0
      %3519 = vmatpush1.msra.mxu0 %v3502
      %3520 = vmatprep.subr.mxu0 0.0
      %3521 = vmatpush1.msra.mxu0 %v3503
      %3522 = vmatprep.subr.mxu0 0.0
      %3523 = vmatpush1.msra.mxu0 %v3504
      %3524 = vmatprep.subr.mxu0 0.0
      %3525 = vmatpush1.msra.mxu0 %v3505
      %3526 = vmatprep.subr.mxu0 0.0
      %3527 = vmatpush1.msra.mxu0 %v3506
      %3528 = vmatprep.subr.mxu0 0.0
      %3529 = vmatpush1.msra.mxu0 %v3507
      %3530 = vmatprep.subr.mxu0 0.0
      %3531 = vmatpush1.msra.mxu0 %v3508
      %3532 = vmatprep.subr.mxu0 0.0
      %3533 = vmatpush1.msra.mxu0 %v3509
      %3534 = vmatprep.subr.mxu0 0.0
      %3535 = vmatpush1.msra.mxu0 %v3510
      %3536 = vmatprep.subr.mxu0 0.0
      %3537 = vmatpush1.msra.mxu0 %v3511
      %3538 = vmatprep.subr.mxu0 0.0
      %3539 = vmatpush1.msra.mxu0 %v3512
      %3540 = vmatprep.subr.mxu0 0.0
      %3541 = vmatpush1.msra.mxu0 %v3513
      %3542 = vmatprep.subr.mxu0 0.0
      %3543 = vmatpush1.msra.mxu0 %v3514
      %3544 = vmatprep.subr.mxu0 0.0
      %3545 = vmatpush1.msra.mxu0 %v3515
      %3546 = vmatprep.subr.mxu0 0.0
      %3547 = vmatpush1.msra.mxu0 %v3516
      %3548 = vmatprep.subr.mxu0 0.0
      %3549 = vmatpush1.msra.mxu0 %v3517
      %3550 = vmatprep.subr.mxu0 0.0
      %3551 = vmatpush1.msra.mxu0 0.0
      %3552 = vmatprep.subr.mxu0 0.0
      %3553 = vmatpush1.msra.mxu0 0.0
      %3554 = vmatprep.subr.mxu0 0.0
      %3555 = vmatpush1.msra.mxu0 0.0
      %3556 = vmatprep.subr.mxu0 0.0
      %3557 = vmatpush1.msra.mxu0 0.0
      %3558 = vmatprep.subr.mxu0 0.0
      %3559 = vmatpush1.msra.mxu0 0.0
      %3560 = vmatprep.subr.mxu0 0.0
      %3561 = vmatpush1.msra.mxu0 0.0
      %3562 = vmatprep.subr.mxu0 0.0
      %3563 = vmatpush1.msra.mxu0 0.0
      %3564 = vmatprep.subr.mxu0 0.0
      %3565 = vmatpush1.msra.mxu0 0.0
      %3566 = vmatprep.subr.mxu0 0.0
      %3567 = vmatpush1.msra.mxu0 0.0
      %3568 = vmatprep.subr.mxu0 0.0
      %3569 = vmatpush1.msra.mxu0 0.0
      %3570 = vmatprep.subr.mxu0 0.0
      %3571 = vmatpush1.msra.mxu0 0.0
      %3572 = vmatprep.subr.mxu0 0.0
      %3573 = vmatpush1.msra.mxu0 0.0
      %3574 = vmatprep.subr.mxu0 0.0
      %3575 = vmatpush1.msra.mxu0 0.0
      %3576 = vmatprep.subr.mxu0 0.0
      %3577 = vmatpush1.msra.mxu0 0.0
      %3578 = vmatprep.subr.mxu0 0.0
      %3579 = vmatpush1.msra.mxu0 0.0
      %3580 = vmatprep.subr.mxu0 0.0
      %3581 = vmatpush1.msra.mxu0 0.0
      %3582 = vmatprep.mubr.f32.mxu0 0.0
      %3583 = vmatmul.mubr.f32.gmra.mrb[0].mxu0 %v3469
      %v3584 = vpop.f32.mrb[0].mxu0
      %v3585 = vadd.f32 0.0, %v3584
      %v3586 = vpop.f32.mrb[0].mxu0
      %3587 = vmatprep.mubr.f32.mxu0 0.0
      %3588 = vmatmul.mubr.f32.gmra.mrb[0].mxu0 %v3470
      %v3589 = vpop.f32.mrb[0].mxu0
      %v3590 = vadd.f32 0.0, %v3589
      %v3591 = vpop.f32.mrb[0].mxu0
      %3592 = vmatprep.mubr.f32.mxu0 0.0
      %3593 = vmatmul.mubr.f32.gmra.mrb[0].mxu0 %v3471
      %v3594 = vpop.f32.mrb[0].mxu0
      %v3595 = vadd.f32 0.0, %v3594
      %v3596 = vpop.f32.mrb[0].mxu0
      %3597 = vmatprep.mubr.f32.mxu0 0.0
      %3598 = vmatmul.mubr.f32.gmra.mrb[0].mxu0 %v3472
      %v3599 = vpop.f32.mrb[0].mxu0
      %v3600 = vadd.f32 0.0, %v3599
      %v3601 = vpop.f32.mrb[0].mxu0
      %3602 = vmatprep.mubr.f32.mxu0 0.0
      %3603 = vmatmul.mubr.f32.gmra.mrb[0].mxu0 %v3473
      %v3604 = vpop.f32.mrb[0].mxu0
      %v3605 = vadd.f32 0.0, %v3604
      %v3606 = vpop.f32.mrb[0].mxu0
      %3607 = vmatprep.mubr.f32.mxu0 0.0
      %3608 = vmatmul.mubr.f32.gmra.mrb[0].mxu0 %v3474
      %v3609 = vpop.f32.mrb[0].mxu0
      %v3610 = vadd.f32 0.0, %v3609
      %v3611 = vpop.f32.mrb[0].mxu0
      %3612 = vmatprep.mubr.f32.mxu0 0.0
      %3613 = vmatmul.mubr.f32.gmra.mrb[0].mxu0 %v3475
      %v3614 = vpop.f32.mrb[0].mxu0
      %v3615 = vadd.f32 0.0, %v3614
      %v3616 = vpop.f32.mrb[0].mxu0
      %3617 = vmatprep.mubr.f32.mxu0 0.0
      %3618 = vmatmul.mubr.f32.gmra.mrb[0].mxu0 %v3476
      %v3619 = vpop.f32.mrb[0].mxu0
      %v3620 = vadd.f32 0.0, %v3619
      %v3621 = vpop.f32.mrb[0].mxu0
      %3622 = vmatprep.mubr.f32.mxu0 0.0
      %3623 = vmatmul.mubr.f32.gmra.mrb[0].mxu0 %v3477
      %v3624 = vpop.f32.mrb[0].mxu0
      %v3625 = vadd.f32 0.0, %v3624
      %v3626 = vpop.f32.mrb[0].mxu0
      %3627 = vmatprep.mubr.f32.mxu0 0.0
      %3628 = vmatmul.mubr.f32.gmra.mrb[0].mxu0 %v3478
      %v3629 = vpop.f32.mrb[0].mxu0
      %v3630 = vadd.f32 0.0, %v3629
      %v3631 = vpop.f32.mrb[0].mxu0
      %3632 = vmatprep.mubr.f32.mxu0 0.0
      %3633 = vmatmul.mubr.f32.gmra.mrb[0].mxu0 %v3479
      %v3634 = vpop.f32.mrb[0].mxu0
      %v3635 = vadd.f32 0.0, %v3634
      %v3636 = vpop.f32.mrb[0].mxu0
      %3637 = vmatprep.mubr.f32.mxu0 0.0
      %3638 = vmatmul.mubr.f32.gmra.mrb[0].mxu0 %v3480
      %v3639 = vpop.f32.mrb[0].mxu0
      %v3640 = vadd.f32 0.0, %v3639
      %v3641 = vpop.f32.mrb[0].mxu0
      %3642 = vmatprep.mubr.f32.mxu0 0.0
      %3643 = vmatmul.mubr.f32.gmra.mrb[0].mxu0 %v3481
      %v3644 = vpop.f32.mrb[0].mxu0
      %v3645 = vadd.f32 0.0, %v3644
      %v3646 = vpop.f32.mrb[0].mxu0
      %3647 = vmatprep.mubr.f32.mxu0 0.0
      %3648 = vmatmul.mubr.f32.gmra.mrb[0].mxu0 %v3482
      %v3649 = vpop.f32.mrb[0].mxu0
      %v3650 = vadd.f32 0.0, %v3649
      %v3651 = vpop.f32.mrb[0].mxu0
      %3652 = vmatprep.mubr.f32.mxu0 0.0
      %3653 = vmatmul.mubr.f32.gmra.mrb[0].mxu0 %v3483
      %v3654 = vpop.f32.mrb[0].mxu0
      %v3655 = vadd.f32 0.0, %v3654
      %v3656 = vpop.f32.mrb[0].mxu0
      %3657 = vmatprep.mubr.f32.mxu0 0.0
      %3658 = vmatmul.mubr.f32.gmra.mrb[0].mxu0 %v3484
      %v3659 = vpop.f32.mrb[0].mxu0
      %v3660 = vadd.f32 0.0, %v3659
      %v3661 = vpop.f32.mrb[0].mxu0
      %3662 = vmatprep.mubr.f32.mxu0 0.0
      %3663 = vmatmul.mubr.f32.gmra.mrb[0].mxu0 %v3485
      %v3664 = vpop.f32.mrb[0].mxu0
      %v3665 = vadd.f32 0.0, %v3664
      %v3666 = vpop.f32.mrb[0].mxu0
      %3667 = vmatprep.mubr.f32.mxu0 0.0
      %3668 = vmatmul.mubr.f32.gmra.mrb[0].mxu0 %v3486
      %v3669 = vpop.f32.mrb[0].mxu0
      %v3670 = vadd.f32 0.0, %v3669
      %v3671 = vpop.f32.mrb[0].mxu0
      %3672 = vmatprep.mubr.f32.mxu0 0.0
      %3673 = vmatmul.mubr.f32.gmra.mrb[0].mxu0 %v3487
      %v3674 = vpop.f32.mrb[0].mxu0
      %v3675 = vadd.f32 0.0, %v3674
      %v3676 = vpop.f32.mrb[0].mxu0
      %3677 = vmatprep.mubr.f32.mxu0 0.0
      %3678 = vmatmul.mubr.f32.gmra.mrb[0].mxu0 %v3488
      %v3679 = vpop.f32.mrb[0].mxu0
      %v3680 = vadd.f32 0.0, %v3679
      %v3681 = vpop.f32.mrb[0].mxu0
      %3682 = vmatprep.mubr.f32.mxu0 0.0
      %3683 = vmatmul.mubr.f32.gmra.mrb[0].mxu0 %v3489
      %v3684 = vpop.f32.mrb[0].mxu0
      %v3685 = vadd.f32 0.0, %v3684
      %v3686 = vpop.f32.mrb[0].mxu0
      %3687 = vmatprep.mubr.f32.mxu0 0.0
      %3688 = vmatmul.mubr.f32.gmra.mrb[0].mxu0 %v3490
      %v3689 = vpop.f32.mrb[0].mxu0
      %v3690 = vadd.f32 0.0, %v3689
      %v3691 = vpop.f32.mrb[0].mxu0
      %3692 = vmatprep.mubr.f32.mxu0 0.0
      %3693 = vmatmul.mubr.f32.gmra.mrb[0].mxu0 %v3491
      %v3694 = vpop.f32.mrb[0].mxu0
      %v3695 = vadd.f32 0.0, %v3694
      %v3696 = vpop.f32.mrb[0].mxu0
      %3697 = vmatprep.mubr.f32.mxu0 0.0
      %3698 = vmatmul.mubr.f32.gmra.mrb[0].mxu0 %v3492
      %v3699 = vpop.f32.mrb[0].mxu0
      %v3700 = vadd.f32 0.0, %v3699
      %v3701 = vpop.f32.mrb[0].mxu0
      %3702 = vmatprep.mubr.f32.mxu0 0.0
      %3703 = vmatmul.mubr.f32.gmra.mrb[0].mxu0 %v3493
      %v3704 = vpop.f32.mrb[0].mxu0
      %v3705 = vadd.f32 0.0, %v3704
      %v3706 = vpop.f32.mrb[0].mxu0
      %3707 = vmatprep.mubr.f32.mxu0 0.0
      %3708 = vmatmul.mubr.f32.gmra.mrb[0].mxu0 %v3494
      %v3709 = vpop.f32.mrb[0].mxu0
      %v3710 = vadd.f32 0.0, %v3709
      %v3711 = vpop.f32.mrb[0].mxu0
      %3712 = vmatprep.mubr.f32.mxu0 0.0
      %3713 = vmatmul.mubr.f32.gmra.mrb[0].mxu0 %v3495
      %v3714 = vpop.f32.mrb[0].mxu0
      %v3715 = vadd.f32 0.0, %v3714
      %v3716 = vpop.f32.mrb[0].mxu0
      %3717 = vmatprep.mubr.f32.mxu0 0.0
      %3718 = vmatmul.mubr.f32.gmra.mrb[0].mxu0 %v3496
      %v3719 = vpop.f32.mrb[0].mxu0
      %v3720 = vadd.f32 0.0, %v3719
      %v3721 = vpop.f32.mrb[0].mxu0
      %3722 = vmatprep.mubr.f32.mxu0 0.0
      %3723 = vmatmul.mubr.f32.gmra.mrb[0].mxu0 %v3497
      %v3724 = vpop.f32.mrb[0].mxu0
      %v3725 = vadd.f32 0.0, %v3724
      %v3726 = vpop.f32.mrb[0].mxu0
      %3727 = vmatprep.mubr.f32.mxu0 0.0
      %3728 = vmatmul.mubr.f32.gmra.mrb[0].mxu0 %v3498
      %v3729 = vpop.f32.mrb[0].mxu0
      %v3730 = vadd.f32 0.0, %v3729
      %v3731 = vpop.f32.mrb[0].mxu0
      %3732 = vmatprep.mubr.f32.mxu0 0.0
      %3733 = vmatmul.mubr.f32.gmra.mrb[0].mxu0 %v3499
      %v3734 = vpop.f32.mrb[0].mxu0
      %v3735 = vadd.f32 0.0, %v3734
      %v3736 = vpop.f32.mrb[0].mxu0
      %3737 = vmatprep.mubr.f32.mxu0 0.0
      %3738 = vmatmul.mubr.f32.gmra.mrb[0].mxu0 %v3500
      %v3739 = vpop.f32.mrb[0].mxu0
      %v3740 = vadd.f32 0.0, %v3739
      %v3741 = vpop.f32.mrb[0].mxu0
      %3742 = vdwg.mxu0
      %v3743 = vadd.f32 %v3437, %v3585
      %v3744 = vadd.f32 %v3438, %v3590
      %v3745 = vadd.f32 %v3439, %v3595
      %v3746 = vadd.f32 %v3440, %v3600
      %v3747 = vadd.f32 %v3441, %v3605
      %v3748 = vadd.f32 %v3442, %v3610
      %v3749 = vadd.f32 %v3443, %v3615
      %v3750 = vadd.f32 %v3444, %v3620
      %v3751 = vadd.f32 %v3445, %v3625
      %v3752 = vadd.f32 %v3446, %v3630
      %v3753 = vadd.f32 %v3447, %v3635
      %v3754 = vadd.f32 %v3448, %v3640
      %v3755 = vadd.f32 %v3449, %v3645
      %v3756 = vadd.f32 %v3450, %v3650
      %v3757 = vadd.f32 %v3451, %v3655
      %v3758 = vadd.f32 %v3452, %v3660
      %v3759 = vadd.f32 %v3453, %v3665
      %v3760 = vadd.f32 %v3454, %v3670
      %v3761 = vadd.f32 %v3455, %v3675
      %v3762 = vadd.f32 %v3456, %v3680
      %v3763 = vadd.f32 %v3457, %v3685
      %v3764 = vadd.f32 %v3458, %v3690
      %v3765 = vadd.f32 %v3459, %v3695
      %v3766 = vadd.f32 %v3460, %v3700
      %v3767 = vadd.f32 %v3461, %v3705
      %v3768 = vadd.f32 %v3462, %v3710
      %v3769 = vadd.f32 %v3463, %v3715
      %v3770 = vadd.f32 %v3464, %v3720
      %v3771 = vadd.f32 %v3465, %v3725
      %v3772 = vadd.f32 %v3466, %v3730
      %v3773 = vadd.f32 %v3467, %v3735
      %v3774 = vadd.f32 %v3468, %v3740
      %s3775 = scalar_lea.vmem [#allocation2], 48
      %v3776 = vld [vmem:[%s3775] sm:$0xff]
      %v3777 = vld [vmem:[%s3775 + $0x8] sm:$0xff]
      %v3778 = vld [vmem:[%s3775 + $0x18] sm:$0xff]
      %v3779 = vld [vmem:[%s3775 + $0x20] sm:$0xff]
      %v3780 = vld [vmem:[%s3775 + $0x30] sm:$0xff]
      %v3781 = vld [vmem:[%s3775 + $0x38] sm:$0xff]
      %v3782 = vld [vmem:[%s3775 + $0x48] sm:$0xff]
      %v3783 = vld [vmem:[%s3775 + $0x50] sm:$0xff]
      %v3784 = vld [vmem:[%s3775 + $0x60] sm:$0xff]
      %v3785 = vld [vmem:[%s3775 + $0x68] sm:$0xff]
      %v3786 = vld [vmem:[%s3775 + $0x78] sm:$0xff]
      %v3787 = vld [vmem:[%s3775 + $0x80] sm:$0xff]
      %v3788 = vld [vmem:[%s3775 + $0x90] sm:$0xff]
      %v3789 = vld [vmem:[%s3775 + $0x98] sm:$0xff]
      %v3790 = vld [vmem:[%s3775 + $0xa8] sm:$0xff]
      %v3791 = vld [vmem:[%s3775 + $0xb0] sm:$0xff]
      %v3792 = vld [vmem:[%s3775 + $0xc0] sm:$0xff]
      %v3793 = vld [vmem:[%s3775 + $0xc8] sm:$0xff]
      %v3794 = vld [vmem:[%s3775 + $0xd8] sm:$0xff]
      %v3795 = vld [vmem:[%s3775 + $0xe0] sm:$0xff]
      %v3796 = vld [vmem:[%s3775 + $0xf0] sm:$0xff]
      %v3797 = vld [vmem:[%s3775 + $0xf8] sm:$0xff]
      %v3798 = vld [vmem:[%s3775 + $0x108] sm:$0xff]
      %v3799 = vld [vmem:[%s3775 + $0x110] sm:$0xff]
      %v3800 = vld [vmem:[%s3775 + $0x120] sm:$0xff]
      %v3801 = vld [vmem:[%s3775 + $0x128] sm:$0xff]
      %v3802 = vld [vmem:[%s3775 + $0x138] sm:$0xff]
      %v3803 = vld [vmem:[%s3775 + $0x140] sm:$0xff]
      %v3804 = vld [vmem:[%s3775 + $0x150] sm:$0xff]
      %v3805 = vld [vmem:[%s3775 + $0x158] sm:$0xff]
      %v3806 = vld [vmem:[%s3775 + $0x168] sm:$0xff]
      %v3807 = vld [vmem:[%s3775 + $0x170] sm:$0xff]
      %s3808 = scalar_lea.vmem %s3, 768
      %v3809 = vld [vmem:[%s3808] sm:$0xff]
      %v3810 = vld [vmem:[%s3808 + $0x8] sm:$0xff]
      %v3811 = vld [vmem:[%s3808 + $0x10] sm:$0xff]
      %v3812 = vld [vmem:[%s3808 + $0x18] sm:$0xff]
      %v3813 = vld [vmem:[%s3808 + $0x20] sm:$0xff]
      %v3814 = vld [vmem:[%s3808 + $0x28] sm:$0xff]
      %v3815 = vld [vmem:[%s3808 + $0x30] sm:$0xff]
      %v3816 = vld [vmem:[%s3808 + $0x38] sm:$0xff]
      %v3817 = vld [vmem:[%s3808 + $0x40] sm:$0xff]
      %v3818 = vld [vmem:[%s3808 + $0x48] sm:$0xff]
      %v3819 = vld [vmem:[%s3808 + $0x50] sm:$0xff]
      %v3820 = vld [vmem:[%s3808 + $0x58] sm:$0xff]
      %v3821 = vld [vmem:[%s3808 + $0x60] sm:$0xff]
      %v3822 = vld [vmem:[%s3808 + $0x68] sm:$0xff]
      %v3823 = vld [vmem:[%s3808 + $0x70] sm:$0xff]
      %v3824 = vld [vmem:[%s3808 + $0x78] sm:$0xff]
      %3825 = vmatprep.subr.mxu0 0.0
      %3826 = vmatpush1.msra.mxu0 %v3809
      %3827 = vmatprep.subr.mxu0 0.0
      %3828 = vmatpush1.msra.mxu0 %v3810
      %3829 = vmatprep.subr.mxu0 0.0
      %3830 = vmatpush1.msra.mxu0 %v3811
      %3831 = vmatprep.subr.mxu0 0.0
      %3832 = vmatpush1.msra.mxu0 %v3812
      %3833 = vmatprep.subr.mxu0 0.0
      %3834 = vmatpush1.msra.mxu0 %v3813
      %3835 = vmatprep.subr.mxu0 0.0
      %3836 = vmatpush1.msra.mxu0 %v3814
      %3837 = vmatprep.subr.mxu0 0.0
      %3838 = vmatpush1.msra.mxu0 %v3815
      %3839 = vmatprep.subr.mxu0 0.0
      %3840 = vmatpush1.msra.mxu0 %v3816
      %3841 = vmatprep.subr.mxu0 0.0
      %3842 = vmatpush1.msra.mxu0 %v3817
      %3843 = vmatprep.subr.mxu0 0.0
      %3844 = vmatpush1.msra.mxu0 %v3818
      %3845 = vmatprep.subr.mxu0 0.0
      %3846 = vmatpush1.msra.mxu0 %v3819
      %3847 = vmatprep.subr.mxu0 0.0
      %3848 = vmatpush1.msra.mxu0 %v3820
      %3849 = vmatprep.subr.mxu0 0.0
      %3850 = vmatpush1.msra.mxu0 %v3821
      %3851 = vmatprep.subr.mxu0 0.0
      %3852 = vmatpush1.msra.mxu0 %v3822
      %3853 = vmatprep.subr.mxu0 0.0
      %3854 = vmatpush1.msra.mxu0 %v3823
      %3855 = vmatprep.subr.mxu0 0.0
      %3856 = vmatpush1.msra.mxu0 %v3824
      %3857 = vmatprep.subr.mxu0 0.0
      %3858 = vmatpush1.msra.mxu0 0.0
      %3859 = vmatprep.subr.mxu0 0.0
      %3860 = vmatpush1.msra.mxu0 0.0
      %3861 = vmatprep.subr.mxu0 0.0
      %3862 = vmatpush1.msra.mxu0 0.0
      %3863 = vmatprep.subr.mxu0 0.0
      %3864 = vmatpush1.msra.mxu0 0.0
      %3865 = vmatprep.subr.mxu0 0.0
      %3866 = vmatpush1.msra.mxu0 0.0
      %3867 = vmatprep.subr.mxu0 0.0
      %3868 = vmatpush1.msra.mxu0 0.0
      %3869 = vmatprep.subr.mxu0 0.0
      %3870 = vmatpush1.msra.mxu0 0.0
      %3871 = vmatprep.subr.mxu0 0.0
      %3872 = vmatpush1.msra.mxu0 0.0
      %3873 = vmatprep.subr.mxu0 0.0
      %3874 = vmatpush1.msra.mxu0 0.0
      %3875 = vmatprep.subr.mxu0 0.0
      %3876 = vmatpush1.msra.mxu0 0.0
      %3877 = vmatprep.subr.mxu0 0.0
      %3878 = vmatpush1.msra.mxu0 0.0
      %3879 = vmatprep.subr.mxu0 0.0
      %3880 = vmatpush1.msra.mxu0 0.0
      %3881 = vmatprep.subr.mxu0 0.0
      %3882 = vmatpush1.msra.mxu0 0.0
      %3883 = vmatprep.subr.mxu0 0.0
      %3884 = vmatpush1.msra.mxu0 0.0
      %3885 = vmatprep.subr.mxu0 0.0
      %3886 = vmatpush1.msra.mxu0 0.0
      %3887 = vmatprep.subr.mxu0 0.0
      %3888 = vmatpush1.msra.mxu0 0.0
      %3889 = vmatprep.mubr.f32.mxu0 0.0
      %3890 = vmatmul.mubr.f32.gmra.mrb[0].mxu0 %v3776
      %v3891 = vpop.f32.mrb[0].mxu0
      %v3892 = vadd.f32 0.0, %v3891
      %v3893 = vpop.f32.mrb[0].mxu0
      %3894 = vmatprep.mubr.f32.mxu0 0.0
      %3895 = vmatmul.mubr.f32.gmra.mrb[0].mxu0 %v3777
      %v3896 = vpop.f32.mrb[0].mxu0
      %v3897 = vadd.f32 0.0, %v3896
      %v3898 = vpop.f32.mrb[0].mxu0
      %3899 = vmatprep.mubr.f32.mxu0 0.0
      %3900 = vmatmul.mubr.f32.gmra.mrb[0].mxu0 %v3778
      %v3901 = vpop.f32.mrb[0].mxu0
      %v3902 = vadd.f32 0.0, %v3901
      %v3903 = vpop.f32.mrb[0].mxu0
      %3904 = vmatprep.mubr.f32.mxu0 0.0
      %3905 = vmatmul.mubr.f32.gmra.mrb[0].mxu0 %v3779
      %v3906 = vpop.f32.mrb[0].mxu0
      %v3907 = vadd.f32 0.0, %v3906
      %v3908 = vpop.f32.mrb[0].mxu0
      %3909 = vmatprep.mubr.f32.mxu0 0.0
      %3910 = vmatmul.mubr.f32.gmra.mrb[0].mxu0 %v3780
      %v3911 = vpop.f32.mrb[0].mxu0
      %v3912 = vadd.f32 0.0, %v3911
      %v3913 = vpop.f32.mrb[0].mxu0
      %3914 = vmatprep.mubr.f32.mxu0 0.0
      %3915 = vmatmul.mubr.f32.gmra.mrb[0].mxu0 %v3781
      %v3916 = vpop.f32.mrb[0].mxu0
      %v3917 = vadd.f32 0.0, %v3916
      %v3918 = vpop.f32.mrb[0].mxu0
      %3919 = vmatprep.mubr.f32.mxu0 0.0
      %3920 = vmatmul.mubr.f32.gmra.mrb[0].mxu0 %v3782
      %v3921 = vpop.f32.mrb[0].mxu0
      %v3922 = vadd.f32 0.0, %v3921
      %v3923 = vpop.f32.mrb[0].mxu0
      %3924 = vmatprep.mubr.f32.mxu0 0.0
      %3925 = vmatmul.mubr.f32.gmra.mrb[0].mxu0 %v3783
      %v3926 = vpop.f32.mrb[0].mxu0
      %v3927 = vadd.f32 0.0, %v3926
      %v3928 = vpop.f32.mrb[0].mxu0
      %3929 = vmatprep.mubr.f32.mxu0 0.0
      %3930 = vmatmul.mubr.f32.gmra.mrb[0].mxu0 %v3784
      %v3931 = vpop.f32.mrb[0].mxu0
      %v3932 = vadd.f32 0.0, %v3931
      %v3933 = vpop.f32.mrb[0].mxu0
      %3934 = vmatprep.mubr.f32.mxu0 0.0
      %3935 = vmatmul.mubr.f32.gmra.mrb[0].mxu0 %v3785
      %v3936 = vpop.f32.mrb[0].mxu0
      %v3937 = vadd.f32 0.0, %v3936
      %v3938 = vpop.f32.mrb[0].mxu0
      %3939 = vmatprep.mubr.f32.mxu0 0.0
      %3940 = vmatmul.mubr.f32.gmra.mrb[0].mxu0 %v3786
      %v3941 = vpop.f32.mrb[0].mxu0
      %v3942 = vadd.f32 0.0, %v3941
      %v3943 = vpop.f32.mrb[0].mxu0
      %3944 = vmatprep.mubr.f32.mxu0 0.0
      %3945 = vmatmul.mubr.f32.gmra.mrb[0].mxu0 %v3787
      %v3946 = vpop.f32.mrb[0].mxu0
      %v3947 = vadd.f32 0.0, %v3946
      %v3948 = vpop.f32.mrb[0].mxu0
      %3949 = vmatprep.mubr.f32.mxu0 0.0
      %3950 = vmatmul.mubr.f32.gmra.mrb[0].mxu0 %v3788
      %v3951 = vpop.f32.mrb[0].mxu0
      %v3952 = vadd.f32 0.0, %v3951
      %v3953 = vpop.f32.mrb[0].mxu0
      %3954 = vmatprep.mubr.f32.mxu0 0.0
      %3955 = vmatmul.mubr.f32.gmra.mrb[0].mxu0 %v3789
      %v3956 = vpop.f32.mrb[0].mxu0
      %v3957 = vadd.f32 0.0, %v3956
      %v3958 = vpop.f32.mrb[0].mxu0
      %3959 = vmatprep.mubr.f32.mxu0 0.0
      %3960 = vmatmul.mubr.f32.gmra.mrb[0].mxu0 %v3790
      %v3961 = vpop.f32.mrb[0].mxu0
      %v3962 = vadd.f32 0.0, %v3961
      %v3963 = vpop.f32.mrb[0].mxu0
      %3964 = vmatprep.mubr.f32.mxu0 0.0
      %3965 = vmatmul.mubr.f32.gmra.mrb[0].mxu0 %v3791
      %v3966 = vpop.f32.mrb[0].mxu0
      %v3967 = vadd.f32 0.0, %v3966
      %v3968 = vpop.f32.mrb[0].mxu0
      %3969 = vmatprep.mubr.f32.mxu0 0.0
      %3970 = vmatmul.mubr.f32.gmra.mrb[0].mxu0 %v3792
      %v3971 = vpop.f32.mrb[0].mxu0
      %v3972 = vadd.f32 0.0, %v3971
      %v3973 = vpop.f32.mrb[0].mxu0
      %3974 = vmatprep.mubr.f32.mxu0 0.0
      %3975 = vmatmul.mubr.f32.gmra.mrb[0].mxu0 %v3793
      %v3976 = vpop.f32.mrb[0].mxu0
      %v3977 = vadd.f32 0.0, %v3976
      %v3978 = vpop.f32.mrb[0].mxu0
      %3979 = vmatprep.mubr.f32.mxu0 0.0
      %3980 = vmatmul.mubr.f32.gmra.mrb[0].mxu0 %v3794
      %v3981 = vpop.f32.mrb[0].mxu0
      %v3982 = vadd.f32 0.0, %v3981
      %v3983 = vpop.f32.mrb[0].mxu0
      %3984 = vmatprep.mubr.f32.mxu0 0.0
      %3985 = vmatmul.mubr.f32.gmra.mrb[0].mxu0 %v3795
      %v3986 = vpop.f32.mrb[0].mxu0
      %v3987 = vadd.f32 0.0, %v3986
      %v3988 = vpop.f32.mrb[0].mxu0
      %3989 = vmatprep.mubr.f32.mxu0 0.0
      %3990 = vmatmul.mubr.f32.gmra.mrb[0].mxu0 %v3796
      %v3991 = vpop.f32.mrb[0].mxu0
      %v3992 = vadd.f32 0.0, %v3991
      %v3993 = vpop.f32.mrb[0].mxu0
      %3994 = vmatprep.mubr.f32.mxu0 0.0
      %3995 = vmatmul.mubr.f32.gmra.mrb[0].mxu0 %v3797
      %v3996 = vpop.f32.mrb[0].mxu0
      %v3997 = vadd.f32 0.0, %v3996
      %v3998 = vpop.f32.mrb[0].mxu0
      %3999 = vmatprep.mubr.f32.mxu0 0.0
      %4000 = vmatmul.mubr.f32.gmra.mrb[0].mxu0 %v3798
      %v4001 = vpop.f32.mrb[0].mxu0
      %v4002 = vadd.f32 0.0, %v4001
      %v4003 = vpop.f32.mrb[0].mxu0
      %4004 = vmatprep.mubr.f32.mxu0 0.0
      %4005 = vmatmul.mubr.f32.gmra.mrb[0].mxu0 %v3799
      %v4006 = vpop.f32.mrb[0].mxu0
      %v4007 = vadd.f32 0.0, %v4006
      %v4008 = vpop.f32.mrb[0].mxu0
      %4009 = vmatprep.mubr.f32.mxu0 0.0
      %4010 = vmatmul.mubr.f32.gmra.mrb[0].mxu0 %v3800
      %v4011 = vpop.f32.mrb[0].mxu0
      %v4012 = vadd.f32 0.0, %v4011
      %v4013 = vpop.f32.mrb[0].mxu0
      %4014 = vmatprep.mubr.f32.mxu0 0.0
      %4015 = vmatmul.mubr.f32.gmra.mrb[0].mxu0 %v3801
      %v4016 = vpop.f32.mrb[0].mxu0
      %v4017 = vadd.f32 0.0, %v4016
      %v4018 = vpop.f32.mrb[0].mxu0
      %4019 = vmatprep.mubr.f32.mxu0 0.0
      %4020 = vmatmul.mubr.f32.gmra.mrb[0].mxu0 %v3802
      %v4021 = vpop.f32.mrb[0].mxu0
      %v4022 = vadd.f32 0.0, %v4021
      %v4023 = vpop.f32.mrb[0].mxu0
      %4024 = vmatprep.mubr.f32.mxu0 0.0
      %4025 = vmatmul.mubr.f32.gmra.mrb[0].mxu0 %v3803
      %v4026 = vpop.f32.mrb[0].mxu0
      %v4027 = vadd.f32 0.0, %v4026
      %v4028 = vpop.f32.mrb[0].mxu0
      %4029 = vmatprep.mubr.f32.mxu0 0.0
      %4030 = vmatmul.mubr.f32.gmra.mrb[0].mxu0 %v3804
      %v4031 = vpop.f32.mrb[0].mxu0
      %v4032 = vadd.f32 0.0, %v4031
      %v4033 = vpop.f32.mrb[0].mxu0
      %4034 = vmatprep.mubr.f32.mxu0 0.0
      %4035 = vmatmul.mubr.f32.gmra.mrb[0].mxu0 %v3805
      %v4036 = vpop.f32.mrb[0].mxu0
      %v4037 = vadd.f32 0.0, %v4036
      %v4038 = vpop.f32.mrb[0].mxu0
      %4039 = vmatprep.mubr.f32.mxu0 0.0
      %4040 = vmatmul.mubr.f32.gmra.mrb[0].mxu0 %v3806
      %v4041 = vpop.f32.mrb[0].mxu0
      %v4042 = vadd.f32 0.0, %v4041
      %v4043 = vpop.f32.mrb[0].mxu0
      %4044 = vmatprep.mubr.f32.mxu0 0.0
      %4045 = vmatmul.mubr.f32.gmra.mrb[0].mxu0 %v3807
      %v4046 = vpop.f32.mrb[0].mxu0
      %v4047 = vadd.f32 0.0, %v4046
      %v4048 = vpop.f32.mrb[0].mxu0
      %4049 = vdwg.mxu0
      %v4050 = vadd.f32 %v3743, %v3892
      %v4051 = vadd.f32 %v3744, %v3897
      %v4052 = vadd.f32 %v3745, %v3902
      %v4053 = vadd.f32 %v3746, %v3907
      %v4054 = vadd.f32 %v3747, %v3912
      %v4055 = vadd.f32 %v3748, %v3917
      %v4056 = vadd.f32 %v3749, %v3922
      %v4057 = vadd.f32 %v3750, %v3927
      %v4058 = vadd.f32 %v3751, %v3932
      %v4059 = vadd.f32 %v3752, %v3937
      %v4060 = vadd.f32 %v3753, %v3942
      %v4061 = vadd.f32 %v3754, %v3947
      %v4062 = vadd.f32 %v3755, %v3952
      %v4063 = vadd.f32 %v3756, %v3957
      %v4064 = vadd.f32 %v3757, %v3962
      %v4065 = vadd.f32 %v3758, %v3967
      %v4066 = vadd.f32 %v3759, %v3972
      %v4067 = vadd.f32 %v3760, %v3977
      %v4068 = vadd.f32 %v3761, %v3982
      %v4069 = vadd.f32 %v3762, %v3987
      %v4070 = vadd.f32 %v3763, %v3992
      %v4071 = vadd.f32 %v3764, %v3997
      %v4072 = vadd.f32 %v3765, %v4002
      %v4073 = vadd.f32 %v3766, %v4007
      %v4074 = vadd.f32 %v3767, %v4012
      %v4075 = vadd.f32 %v3768, %v4017
      %v4076 = vadd.f32 %v3769, %v4022
      %v4077 = vadd.f32 %v3770, %v4027
      %v4078 = vadd.f32 %v3771, %v4032
      %v4079 = vadd.f32 %v3772, %v4037
      %v4080 = vadd.f32 %v3773, %v4042
      %v4081 = vadd.f32 %v3774, %v4047
      %v4082 = vld [vmem:[%s3775 + $0x1] sm:$0xff]
      %v4083 = vld [vmem:[%s3775 + $0x9] sm:$0xff]
      %v4084 = vld [vmem:[%s3775 + $0x19] sm:$0xff]
      %v4085 = vld [vmem:[%s3775 + $0x21] sm:$0xff]
      %v4086 = vld [vmem:[%s3775 + $0x31] sm:$0xff]
      %v4087 = vld [vmem:[%s3775 + $0x39] sm:$0xff]
      %v4088 = vld [vmem:[%s3775 + $0x49] sm:$0xff]
      %v4089 = vld [vmem:[%s3775 + $0x51] sm:$0xff]
      %v4090 = vld [vmem:[%s3775 + $0x61] sm:$0xff]
      %v4091 = vld [vmem:[%s3775 + $0x69] sm:$0xff]
      %v4092 = vld [vmem:[%s3775 + $0x79] sm:$0xff]
      %v4093 = vld [vmem:[%s3775 + $0x81] sm:$0xff]
      %v4094 = vld [vmem:[%s3775 + $0x91] sm:$0xff]
      %v4095 = vld [vmem:[%s3775 + $0x99] sm:$0xff]
      %v4096 = vld [vmem:[%s3775 + $0xa9] sm:$0xff]
      %v4097 = vld [vmem:[%s3775 + $0xb1] sm:$0xff]
      %v4098 = vld [vmem:[%s3775 + $0xc1] sm:$0xff]
      %v4099 = vld [vmem:[%s3775 + $0xc9] sm:$0xff]
      %v4100 = vld [vmem:[%s3775 + $0xd9] sm:$0xff]
      %v4101 = vld [vmem:[%s3775 + $0xe1] sm:$0xff]
      %v4102 = vld [vmem:[%s3775 + $0xf1] sm:$0xff]
      %v4103 = vld [vmem:[%s3775 + $0xf9] sm:$0xff]
      %v4104 = vld [vmem:[%s3775 + $0x109] sm:$0xff]
      %v4105 = vld [vmem:[%s3775 + $0x111] sm:$0xff]
      %v4106 = vld [vmem:[%s3775 + $0x121] sm:$0xff]
      %v4107 = vld [vmem:[%s3775 + $0x129] sm:$0xff]
      %v4108 = vld [vmem:[%s3775 + $0x139] sm:$0xff]
      %v4109 = vld [vmem:[%s3775 + $0x141] sm:$0xff]
      %v4110 = vld [vmem:[%s3775 + $0x151] sm:$0xff]
      %v4111 = vld [vmem:[%s3775 + $0x159] sm:$0xff]
      %v4112 = vld [vmem:[%s3775 + $0x169] sm:$0xff]
      %v4113 = vld [vmem:[%s3775 + $0x171] sm:$0xff]
      %s4114 = scalar_lea.vmem %s3, 896
      %v4115 = vld [vmem:[%s4114] sm:$0xff]
      %v4116 = vld [vmem:[%s4114 + $0x8] sm:$0xff]
      %v4117 = vld [vmem:[%s4114 + $0x10] sm:$0xff]
      %v4118 = vld [vmem:[%s4114 + $0x18] sm:$0xff]
      %v4119 = vld [vmem:[%s4114 + $0x20] sm:$0xff]
      %v4120 = vld [vmem:[%s4114 + $0x28] sm:$0xff]
      %v4121 = vld [vmem:[%s4114 + $0x30] sm:$0xff]
      %v4122 = vld [vmem:[%s4114 + $0x38] sm:$0xff]
      %v4123 = vld [vmem:[%s4114 + $0x40] sm:$0xff]
      %v4124 = vld [vmem:[%s4114 + $0x48] sm:$0xff]
      %v4125 = vld [vmem:[%s4114 + $0x50] sm:$0xff]
      %v4126 = vld [vmem:[%s4114 + $0x58] sm:$0xff]
      %v4127 = vld [vmem:[%s4114 + $0x60] sm:$0xff]
      %v4128 = vld [vmem:[%s4114 + $0x68] sm:$0xff]
      %v4129 = vld [vmem:[%s4114 + $0x70] sm:$0xff]
      %v4130 = vld [vmem:[%s4114 + $0x78] sm:$0xff]
      %4131 = vmatprep.subr.mxu0 0.0
      %4132 = vmatpush1.msra.mxu0 %v4115
      %4133 = vmatprep.subr.mxu0 0.0
      %4134 = vmatpush1.msra.mxu0 %v4116
      %4135 = vmatprep.subr.mxu0 0.0
      %4136 = vmatpush1.msra.mxu0 %v4117
      %4137 = vmatprep.subr.mxu0 0.0
      %4138 = vmatpush1.msra.mxu0 %v4118
      %4139 = vmatprep.subr.mxu0 0.0
      %4140 = vmatpush1.msra.mxu0 %v4119
      %4141 = vmatprep.subr.mxu0 0.0
      %4142 = vmatpush1.msra.mxu0 %v4120
      %4143 = vmatprep.subr.mxu0 0.0
      %4144 = vmatpush1.msra.mxu0 %v4121
      %4145 = vmatprep.subr.mxu0 0.0
      %4146 = vmatpush1.msra.mxu0 %v4122
      %4147 = vmatprep.subr.mxu0 0.0
      %4148 = vmatpush1.msra.mxu0 %v4123
      %4149 = vmatprep.subr.mxu0 0.0
      %4150 = vmatpush1.msra.mxu0 %v4124
      %4151 = vmatprep.subr.mxu0 0.0
      %4152 = vmatpush1.msra.mxu0 %v4125
      %4153 = vmatprep.subr.mxu0 0.0
      %4154 = vmatpush1.msra.mxu0 %v4126
      %4155 = vmatprep.subr.mxu0 0.0
      %4156 = vmatpush1.msra.mxu0 %v4127
      %4157 = vmatprep.subr.mxu0 0.0
      %4158 = vmatpush1.msra.mxu0 %v4128
      %4159 = vmatprep.subr.mxu0 0.0
      %4160 = vmatpush1.msra.mxu0 %v4129
      %4161 = vmatprep.subr.mxu0 0.0
      %4162 = vmatpush1.msra.mxu0 %v4130
      %4163 = vmatprep.subr.mxu0 0.0
      %4164 = vmatpush1.msra.mxu0 0.0
      %4165 = vmatprep.subr.mxu0 0.0
      %4166 = vmatpush1.msra.mxu0 0.0
      %4167 = vmatprep.subr.mxu0 0.0
      %4168 = vmatpush1.msra.mxu0 0.0
      %4169 = vmatprep.subr.mxu0 0.0
      %4170 = vmatpush1.msra.mxu0 0.0
      %4171 = vmatprep.subr.mxu0 0.0
      %4172 = vmatpush1.msra.mxu0 0.0
      %4173 = vmatprep.subr.mxu0 0.0
      %4174 = vmatpush1.msra.mxu0 0.0
      %4175 = vmatprep.subr.mxu0 0.0
      %4176 = vmatpush1.msra.mxu0 0.0
      %4177 = vmatprep.subr.mxu0 0.0
      %4178 = vmatpush1.msra.mxu0 0.0
      %4179 = vmatprep.subr.mxu0 0.0
      %4180 = vmatpush1.msra.mxu0 0.0
      %4181 = vmatprep.subr.mxu0 0.0
      %4182 = vmatpush1.msra.mxu0 0.0
      %4183 = vmatprep.subr.mxu0 0.0
      %4184 = vmatpush1.msra.mxu0 0.0
      %4185 = vmatprep.subr.mxu0 0.0
      %4186 = vmatpush1.msra.mxu0 0.0
      %4187 = vmatprep.subr.mxu0 0.0
      %4188 = vmatpush1.msra.mxu0 0.0
      %4189 = vmatprep.subr.mxu0 0.0
      %4190 = vmatpush1.msra.mxu0 0.0
      %4191 = vmatprep.subr.mxu0 0.0
      %4192 = vmatpush1.msra.mxu0 0.0
      %4193 = vmatprep.subr.mxu0 0.0
      %4194 = vmatpush1.msra.mxu0 0.0
      %4195 = vmatprep.mubr.f32.mxu0 0.0
      %4196 = vmatmul.mubr.f32.gmra.mrb[0].mxu0 %v4082
      %v4197 = vpop.f32.mrb[0].mxu0
      %v4198 = vadd.f32 0.0, %v4197
      %v4199 = vpop.f32.mrb[0].mxu0
      %4200 = vmatprep.mubr.f32.mxu0 0.0
      %4201 = vmatmul.mubr.f32.gmra.mrb[0].mxu0 %v4083
      %v4202 = vpop.f32.mrb[0].mxu0
      %v4203 = vadd.f32 0.0, %v4202
      %v4204 = vpop.f32.mrb[0].mxu0
      %4205 = vmatprep.mubr.f32.mxu0 0.0
      %4206 = vmatmul.mubr.f32.gmra.mrb[0].mxu0 %v4084
      %v4207 = vpop.f32.mrb[0].mxu0
      %v4208 = vadd.f32 0.0, %v4207
      %v4209 = vpop.f32.mrb[0].mxu0
      %4210 = vmatprep.mubr.f32.mxu0 0.0
      %4211 = vmatmul.mubr.f32.gmra.mrb[0].mxu0 %v4085
      %v4212 = vpop.f32.mrb[0].mxu0
      %v4213 = vadd.f32 0.0, %v4212
      %v4214 = vpop.f32.mrb[0].mxu0
      %4215 = vmatprep.mubr.f32.mxu0 0.0
      %4216 = vmatmul.mubr.f32.gmra.mrb[0].mxu0 %v4086
      %v4217 = vpop.f32.mrb[0].mxu0
      %v4218 = vadd.f32 0.0, %v4217
      %v4219 = vpop.f32.mrb[0].mxu0
      %4220 = vmatprep.mubr.f32.mxu0 0.0
      %4221 = vmatmul.mubr.f32.gmra.mrb[0].mxu0 %v4087
      %v4222 = vpop.f32.mrb[0].mxu0
      %v4223 = vadd.f32 0.0, %v4222
      %v4224 = vpop.f32.mrb[0].mxu0
      %4225 = vmatprep.mubr.f32.mxu0 0.0
      %4226 = vmatmul.mubr.f32.gmra.mrb[0].mxu0 %v4088
      %v4227 = vpop.f32.mrb[0].mxu0
      %v4228 = vadd.f32 0.0, %v4227
      %v4229 = vpop.f32.mrb[0].mxu0
      %4230 = vmatprep.mubr.f32.mxu0 0.0
      %4231 = vmatmul.mubr.f32.gmra.mrb[0].mxu0 %v4089
      %v4232 = vpop.f32.mrb[0].mxu0
      %v4233 = vadd.f32 0.0, %v4232
      %v4234 = vpop.f32.mrb[0].mxu0
      %4235 = vmatprep.mubr.f32.mxu0 0.0
      %4236 = vmatmul.mubr.f32.gmra.mrb[0].mxu0 %v4090
      %v4237 = vpop.f32.mrb[0].mxu0
      %v4238 = vadd.f32 0.0, %v4237
      %v4239 = vpop.f32.mrb[0].mxu0
      %4240 = vmatprep.mubr.f32.mxu0 0.0
      %4241 = vmatmul.mubr.f32.gmra.mrb[0].mxu0 %v4091
      %v4242 = vpop.f32.mrb[0].mxu0
      %v4243 = vadd.f32 0.0, %v4242
      %v4244 = vpop.f32.mrb[0].mxu0
      %4245 = vmatprep.mubr.f32.mxu0 0.0
      %4246 = vmatmul.mubr.f32.gmra.mrb[0].mxu0 %v4092
      %v4247 = vpop.f32.mrb[0].mxu0
      %v4248 = vadd.f32 0.0, %v4247
      %v4249 = vpop.f32.mrb[0].mxu0
      %4250 = vmatprep.mubr.f32.mxu0 0.0
      %4251 = vmatmul.mubr.f32.gmra.mrb[0].mxu0 %v4093
      %v4252 = vpop.f32.mrb[0].mxu0
      %v4253 = vadd.f32 0.0, %v4252
      %v4254 = vpop.f32.mrb[0].mxu0
      %4255 = vmatprep.mubr.f32.mxu0 0.0
      %4256 = vmatmul.mubr.f32.gmra.mrb[0].mxu0 %v4094
      %v4257 = vpop.f32.mrb[0].mxu0
      %v4258 = vadd.f32 0.0, %v4257
      %v4259 = vpop.f32.mrb[0].mxu0
      %4260 = vmatprep.mubr.f32.mxu0 0.0
      %4261 = vmatmul.mubr.f32.gmra.mrb[0].mxu0 %v4095
      %v4262 = vpop.f32.mrb[0].mxu0
      %v4263 = vadd.f32 0.0, %v4262
      %v4264 = vpop.f32.mrb[0].mxu0
      %4265 = vmatprep.mubr.f32.mxu0 0.0
      %4266 = vmatmul.mubr.f32.gmra.mrb[0].mxu0 %v4096
      %v4267 = vpop.f32.mrb[0].mxu0
      %v4268 = vadd.f32 0.0, %v4267
      %v4269 = vpop.f32.mrb[0].mxu0
      %4270 = vmatprep.mubr.f32.mxu0 0.0
      %4271 = vmatmul.mubr.f32.gmra.mrb[0].mxu0 %v4097
      %v4272 = vpop.f32.mrb[0].mxu0
      %v4273 = vadd.f32 0.0, %v4272
      %v4274 = vpop.f32.mrb[0].mxu0
      %4275 = vmatprep.mubr.f32.mxu0 0.0
      %4276 = vmatmul.mubr.f32.gmra.mrb[0].mxu0 %v4098
      %v4277 = vpop.f32.mrb[0].mxu0
      %v4278 = vadd.f32 0.0, %v4277
      %v4279 = vpop.f32.mrb[0].mxu0
      %4280 = vmatprep.mubr.f32.mxu0 0.0
      %4281 = vmatmul.mubr.f32.gmra.mrb[0].mxu0 %v4099
      %v4282 = vpop.f32.mrb[0].mxu0
      %v4283 = vadd.f32 0.0, %v4282
      %v4284 = vpop.f32.mrb[0].mxu0
      %4285 = vmatprep.mubr.f32.mxu0 0.0
      %4286 = vmatmul.mubr.f32.gmra.mrb[0].mxu0 %v4100
      %v4287 = vpop.f32.mrb[0].mxu0
      %v4288 = vadd.f32 0.0, %v4287
      %v4289 = vpop.f32.mrb[0].mxu0
      %4290 = vmatprep.mubr.f32.mxu0 0.0
      %4291 = vmatmul.mubr.f32.gmra.mrb[0].mxu0 %v4101
      %v4292 = vpop.f32.mrb[0].mxu0
      %v4293 = vadd.f32 0.0, %v4292
      %v4294 = vpop.f32.mrb[0].mxu0
      %4295 = vmatprep.mubr.f32.mxu0 0.0
      %4296 = vmatmul.mubr.f32.gmra.mrb[0].mxu0 %v4102
      %v4297 = vpop.f32.mrb[0].mxu0
      %v4298 = vadd.f32 0.0, %v4297
      %v4299 = vpop.f32.mrb[0].mxu0
      %4300 = vmatprep.mubr.f32.mxu0 0.0
      %4301 = vmatmul.mubr.f32.gmra.mrb[0].mxu0 %v4103
      %v4302 = vpop.f32.mrb[0].mxu0
      %v4303 = vadd.f32 0.0, %v4302
      %v4304 = vpop.f32.mrb[0].mxu0
      %4305 = vmatprep.mubr.f32.mxu0 0.0
      %4306 = vmatmul.mubr.f32.gmra.mrb[0].mxu0 %v4104
      %v4307 = vpop.f32.mrb[0].mxu0
      %v4308 = vadd.f32 0.0, %v4307
      %v4309 = vpop.f32.mrb[0].mxu0
      %4310 = vmatprep.mubr.f32.mxu0 0.0
      %4311 = vmatmul.mubr.f32.gmra.mrb[0].mxu0 %v4105
      %v4312 = vpop.f32.mrb[0].mxu0
      %v4313 = vadd.f32 0.0, %v4312
      %v4314 = vpop.f32.mrb[0].mxu0
      %4315 = vmatprep.mubr.f32.mxu0 0.0
      %4316 = vmatmul.mubr.f32.gmra.mrb[0].mxu0 %v4106
      %v4317 = vpop.f32.mrb[0].mxu0
      %v4318 = vadd.f32 0.0, %v4317
      %v4319 = vpop.f32.mrb[0].mxu0
      %4320 = vmatprep.mubr.f32.mxu0 0.0
      %4321 = vmatmul.mubr.f32.gmra.mrb[0].mxu0 %v4107
      %v4322 = vpop.f32.mrb[0].mxu0
      %v4323 = vadd.f32 0.0, %v4322
      %v4324 = vpop.f32.mrb[0].mxu0
      %4325 = vmatprep.mubr.f32.mxu0 0.0
      %4326 = vmatmul.mubr.f32.gmra.mrb[0].mxu0 %v4108
      %v4327 = vpop.f32.mrb[0].mxu0
      %v4328 = vadd.f32 0.0, %v4327
      %v4329 = vpop.f32.mrb[0].mxu0
      %4330 = vmatprep.mubr.f32.mxu0 0.0
      %4331 = vmatmul.mubr.f32.gmra.mrb[0].mxu0 %v4109
      %v4332 = vpop.f32.mrb[0].mxu0
      %v4333 = vadd.f32 0.0, %v4332
      %v4334 = vpop.f32.mrb[0].mxu0
      %4335 = vmatprep.mubr.f32.mxu0 0.0
      %4336 = vmatmul.mubr.f32.gmra.mrb[0].mxu0 %v4110
      %v4337 = vpop.f32.mrb[0].mxu0
      %v4338 = vadd.f32 0.0, %v4337
      %v4339 = vpop.f32.mrb[0].mxu0
      %4340 = vmatprep.mubr.f32.mxu0 0.0
      %4341 = vmatmul.mubr.f32.gmra.mrb[0].mxu0 %v4111
      %v4342 = vpop.f32.mrb[0].mxu0
      %v4343 = vadd.f32 0.0, %v4342
      %v4344 = vpop.f32.mrb[0].mxu0
      %4345 = vmatprep.mubr.f32.mxu0 0.0
      %4346 = vmatmul.mubr.f32.gmra.mrb[0].mxu0 %v4112
      %v4347 = vpop.f32.mrb[0].mxu0
      %v4348 = vadd.f32 0.0, %v4347
      %v4349 = vpop.f32.mrb[0].mxu0
      %4350 = vmatprep.mubr.f32.mxu0 0.0
      %4351 = vmatmul.mubr.f32.gmra.mrb[0].mxu0 %v4113
      %v4352 = vpop.f32.mrb[0].mxu0
      %v4353 = vadd.f32 0.0, %v4352
      %v4354 = vpop.f32.mrb[0].mxu0
      %4355 = vdwg.mxu0
      %v4356 = vadd.f32 %v4050, %v4198
      %v4357 = vadd.f32 %v4051, %v4203
      %v4358 = vadd.f32 %v4052, %v4208
      %v4359 = vadd.f32 %v4053, %v4213
      %v4360 = vadd.f32 %v4054, %v4218
      %v4361 = vadd.f32 %v4055, %v4223
      %v4362 = vadd.f32 %v4056, %v4228
      %v4363 = vadd.f32 %v4057, %v4233
      %v4364 = vadd.f32 %v4058, %v4238
      %v4365 = vadd.f32 %v4059, %v4243
      %v4366 = vadd.f32 %v4060, %v4248
      %v4367 = vadd.f32 %v4061, %v4253
      %v4368 = vadd.f32 %v4062, %v4258
      %v4369 = vadd.f32 %v4063, %v4263
      %v4370 = vadd.f32 %v4064, %v4268
      %v4371 = vadd.f32 %v4065, %v4273
      %v4372 = vadd.f32 %v4066, %v4278
      %v4373 = vadd.f32 %v4067, %v4283
      %v4374 = vadd.f32 %v4068, %v4288
      %v4375 = vadd.f32 %v4069, %v4293
      %v4376 = vadd.f32 %v4070, %v4298
      %v4377 = vadd.f32 %v4071, %v4303
      %v4378 = vadd.f32 %v4072, %v4308
      %v4379 = vadd.f32 %v4073, %v4313
      %v4380 = vadd.f32 %v4074, %v4318
      %v4381 = vadd.f32 %v4075, %v4323
      %v4382 = vadd.f32 %v4076, %v4328
      %v4383 = vadd.f32 %v4077, %v4333
      %v4384 = vadd.f32 %v4078, %v4338
      %v4385 = vadd.f32 %v4079, %v4343
      %v4386 = vadd.f32 %v4080, %v4348
      %v4387 = vadd.f32 %v4081, %v4353
      %v4388 = vld [vmem:[%s3775 + $0x2] sm:$0xff]
      %v4389 = vld [vmem:[%s3775 + $0xa] sm:$0xff]
      %v4390 = vld [vmem:[%s3775 + $0x1a] sm:$0xff]
      %v4391 = vld [vmem:[%s3775 + $0x22] sm:$0xff]
      %v4392 = vld [vmem:[%s3775 + $0x32] sm:$0xff]
      %v4393 = vld [vmem:[%s3775 + $0x3a] sm:$0xff]
      %v4394 = vld [vmem:[%s3775 + $0x4a] sm:$0xff]
      %v4395 = vld [vmem:[%s3775 + $0x52] sm:$0xff]
      %v4396 = vld [vmem:[%s3775 + $0x62] sm:$0xff]
      %v4397 = vld [vmem:[%s3775 + $0x6a] sm:$0xff]
      %v4398 = vld [vmem:[%s3775 + $0x7a] sm:$0xff]
      %v4399 = vld [vmem:[%s3775 + $0x82] sm:$0xff]
      %v4400 = vld [vmem:[%s3775 + $0x92] sm:$0xff]
      %v4401 = vld [vmem:[%s3775 + $0x9a] sm:$0xff]
      %v4402 = vld [vmem:[%s3775 + $0xaa] sm:$0xff]
      %v4403 = vld [vmem:[%s3775 + $0xb2] sm:$0xff]
      %v4404 = vld [vmem:[%s3775 + $0xc2] sm:$0xff]
      %v4405 = vld [vmem:[%s3775 + $0xca] sm:$0xff]
      %v4406 = vld [vmem:[%s3775 + $0xda] sm:$0xff]
      %v4407 = vld [vmem:[%s3775 + $0xe2] sm:$0xff]
      %v4408 = vld [vmem:[%s3775 + $0xf2] sm:$0xff]
      %v4409 = vld [vmem:[%s3775 + $0xfa] sm:$0xff]
      %v4410 = vld [vmem:[%s3775 + $0x10a] sm:$0xff]
      %v4411 = vld [vmem:[%s3775 + $0x112] sm:$0xff]
      %v4412 = vld [vmem:[%s3775 + $0x122] sm:$0xff]
      %v4413 = vld [vmem:[%s3775 + $0x12a] sm:$0xff]
      %v4414 = vld [vmem:[%s3775 + $0x13a] sm:$0xff]
      %v4415 = vld [vmem:[%s3775 + $0x142] sm:$0xff]
      %v4416 = vld [vmem:[%s3775 + $0x152] sm:$0xff]
      %v4417 = vld [vmem:[%s3775 + $0x15a] sm:$0xff]
      %v4418 = vld [vmem:[%s3775 + $0x16a] sm:$0xff]
      %v4419 = vld [vmem:[%s3775 + $0x172] sm:$0xff]
      %s4420 = scalar_lea.vmem %s3, 1024
      %v4421 = vld [vmem:[%s4420] sm:$0xff]
      %v4422 = vld [vmem:[%s4420 + $0x8] sm:$0xff]
      %v4423 = vld [vmem:[%s4420 + $0x10] sm:$0xff]
      %v4424 = vld [vmem:[%s4420 + $0x18] sm:$0xff]
      %v4425 = vld [vmem:[%s4420 + $0x20] sm:$0xff]
      %v4426 = vld [vmem:[%s4420 + $0x28] sm:$0xff]
      %v4427 = vld [vmem:[%s4420 + $0x30] sm:$0xff]
      %v4428 = vld [vmem:[%s4420 + $0x38] sm:$0xff]
      %v4429 = vld [vmem:[%s4420 + $0x40] sm:$0xff]
      %v4430 = vld [vmem:[%s4420 + $0x48] sm:$0xff]
      %v4431 = vld [vmem:[%s4420 + $0x50] sm:$0xff]
      %v4432 = vld [vmem:[%s4420 + $0x58] sm:$0xff]
      %v4433 = vld [vmem:[%s4420 + $0x60] sm:$0xff]
      %v4434 = vld [vmem:[%s4420 + $0x68] sm:$0xff]
      %v4435 = vld [vmem:[%s4420 + $0x70] sm:$0xff]
      %v4436 = vld [vmem:[%s4420 + $0x78] sm:$0xff]
      %4437 = vmatprep.subr.mxu0 0.0
      %4438 = vmatpush1.msra.mxu0 %v4421
      %4439 = vmatprep.subr.mxu0 0.0
      %4440 = vmatpush1.msra.mxu0 %v4422
      %4441 = vmatprep.subr.mxu0 0.0
      %4442 = vmatpush1.msra.mxu0 %v4423
      %4443 = vmatprep.subr.mxu0 0.0
      %4444 = vmatpush1.msra.mxu0 %v4424
      %4445 = vmatprep.subr.mxu0 0.0
      %4446 = vmatpush1.msra.mxu0 %v4425
      %4447 = vmatprep.subr.mxu0 0.0
      %4448 = vmatpush1.msra.mxu0 %v4426
      %4449 = vmatprep.subr.mxu0 0.0
      %4450 = vmatpush1.msra.mxu0 %v4427
      %4451 = vmatprep.subr.mxu0 0.0
      %4452 = vmatpush1.msra.mxu0 %v4428
      %4453 = vmatprep.subr.mxu0 0.0
      %4454 = vmatpush1.msra.mxu0 %v4429
      %4455 = vmatprep.subr.mxu0 0.0
      %4456 = vmatpush1.msra.mxu0 %v4430
      %4457 = vmatprep.subr.mxu0 0.0
      %4458 = vmatpush1.msra.mxu0 %v4431
      %4459 = vmatprep.subr.mxu0 0.0
      %4460 = vmatpush1.msra.mxu0 %v4432
      %4461 = vmatprep.subr.mxu0 0.0
      %4462 = vmatpush1.msra.mxu0 %v4433
      %4463 = vmatprep.subr.mxu0 0.0
      %4464 = vmatpush1.msra.mxu0 %v4434
      %4465 = vmatprep.subr.mxu0 0.0
      %4466 = vmatpush1.msra.mxu0 %v4435
      %4467 = vmatprep.subr.mxu0 0.0
      %4468 = vmatpush1.msra.mxu0 %v4436
      %4469 = vmatprep.subr.mxu0 0.0
      %4470 = vmatpush1.msra.mxu0 0.0
      %4471 = vmatprep.subr.mxu0 0.0
      %4472 = vmatpush1.msra.mxu0 0.0
      %4473 = vmatprep.subr.mxu0 0.0
      %4474 = vmatpush1.msra.mxu0 0.0
      %4475 = vmatprep.subr.mxu0 0.0
      %4476 = vmatpush1.msra.mxu0 0.0
      %4477 = vmatprep.subr.mxu0 0.0
      %4478 = vmatpush1.msra.mxu0 0.0
      %4479 = vmatprep.subr.mxu0 0.0
      %4480 = vmatpush1.msra.mxu0 0.0
      %4481 = vmatprep.subr.mxu0 0.0
      %4482 = vmatpush1.msra.mxu0 0.0
      %4483 = vmatprep.subr.mxu0 0.0
      %4484 = vmatpush1.msra.mxu0 0.0
      %4485 = vmatprep.subr.mxu0 0.0
      %4486 = vmatpush1.msra.mxu0 0.0
      %4487 = vmatprep.subr.mxu0 0.0
      %4488 = vmatpush1.msra.mxu0 0.0
      %4489 = vmatprep.subr.mxu0 0.0
      %4490 = vmatpush1.msra.mxu0 0.0
      %4491 = vmatprep.subr.mxu0 0.0
      %4492 = vmatpush1.msra.mxu0 0.0
      %4493 = vmatprep.subr.mxu0 0.0
      %4494 = vmatpush1.msra.mxu0 0.0
      %4495 = vmatprep.subr.mxu0 0.0
      %4496 = vmatpush1.msra.mxu0 0.0
      %4497 = vmatprep.subr.mxu0 0.0
      %4498 = vmatpush1.msra.mxu0 0.0
      %4499 = vmatprep.subr.mxu0 0.0
      %4500 = vmatpush1.msra.mxu0 0.0
      %4501 = vmatprep.mubr.f32.mxu0 0.0
      %4502 = vmatmul.mubr.f32.gmra.mrb[0].mxu0 %v4388
      %v4503 = vpop.f32.mrb[0].mxu0
      %v4504 = vadd.f32 0.0, %v4503
      %v4505 = vpop.f32.mrb[0].mxu0
      %4506 = vmatprep.mubr.f32.mxu0 0.0
      %4507 = vmatmul.mubr.f32.gmra.mrb[0].mxu0 %v4389
      %v4508 = vpop.f32.mrb[0].mxu0
      %v4509 = vadd.f32 0.0, %v4508
      %v4510 = vpop.f32.mrb[0].mxu0
      %4511 = vmatprep.mubr.f32.mxu0 0.0
      %4512 = vmatmul.mubr.f32.gmra.mrb[0].mxu0 %v4390
      %v4513 = vpop.f32.mrb[0].mxu0
      %v4514 = vadd.f32 0.0, %v4513
      %v4515 = vpop.f32.mrb[0].mxu0
      %4516 = vmatprep.mubr.f32.mxu0 0.0
      %4517 = vmatmul.mubr.f32.gmra.mrb[0].mxu0 %v4391
      %v4518 = vpop.f32.mrb[0].mxu0
      %v4519 = vadd.f32 0.0, %v4518
      %v4520 = vpop.f32.mrb[0].mxu0
      %4521 = vmatprep.mubr.f32.mxu0 0.0
      %4522 = vmatmul.mubr.f32.gmra.mrb[0].mxu0 %v4392
      %v4523 = vpop.f32.mrb[0].mxu0
      %v4524 = vadd.f32 0.0, %v4523
      %v4525 = vpop.f32.mrb[0].mxu0
      %4526 = vmatprep.mubr.f32.mxu0 0.0
      %4527 = vmatmul.mubr.f32.gmra.mrb[0].mxu0 %v4393
      %v4528 = vpop.f32.mrb[0].mxu0
      %v4529 = vadd.f32 0.0, %v4528
      %v4530 = vpop.f32.mrb[0].mxu0
      %4531 = vmatprep.mubr.f32.mxu0 0.0
      %4532 = vmatmul.mubr.f32.gmra.mrb[0].mxu0 %v4394
      %v4533 = vpop.f32.mrb[0].mxu0
      %v4534 = vadd.f32 0.0, %v4533
      %v4535 = vpop.f32.mrb[0].mxu0
      %4536 = vmatprep.mubr.f32.mxu0 0.0
      %4537 = vmatmul.mubr.f32.gmra.mrb[0].mxu0 %v4395
      %v4538 = vpop.f32.mrb[0].mxu0
      %v4539 = vadd.f32 0.0, %v4538
      %v4540 = vpop.f32.mrb[0].mxu0
      %4541 = vmatprep.mubr.f32.mxu0 0.0
      %4542 = vmatmul.mubr.f32.gmra.mrb[0].mxu0 %v4396
      %v4543 = vpop.f32.mrb[0].mxu0
      %v4544 = vadd.f32 0.0, %v4543
      %v4545 = vpop.f32.mrb[0].mxu0
      %4546 = vmatprep.mubr.f32.mxu0 0.0
      %4547 = vmatmul.mubr.f32.gmra.mrb[0].mxu0 %v4397
      %v4548 = vpop.f32.mrb[0].mxu0
      %v4549 = vadd.f32 0.0, %v4548
      %v4550 = vpop.f32.mrb[0].mxu0
      %4551 = vmatprep.mubr.f32.mxu0 0.0
      %4552 = vmatmul.mubr.f32.gmra.mrb[0].mxu0 %v4398
      %v4553 = vpop.f32.mrb[0].mxu0
      %v4554 = vadd.f32 0.0, %v4553
      %v4555 = vpop.f32.mrb[0].mxu0
      %4556 = vmatprep.mubr.f32.mxu0 0.0
      %4557 = vmatmul.mubr.f32.gmra.mrb[0].mxu0 %v4399
      %v4558 = vpop.f32.mrb[0].mxu0
      %v4559 = vadd.f32 0.0, %v4558
      %v4560 = vpop.f32.mrb[0].mxu0
      %4561 = vmatprep.mubr.f32.mxu0 0.0
      %4562 = vmatmul.mubr.f32.gmra.mrb[0].mxu0 %v4400
      %v4563 = vpop.f32.mrb[0].mxu0
      %v4564 = vadd.f32 0.0, %v4563
      %v4565 = vpop.f32.mrb[0].mxu0
      %4566 = vmatprep.mubr.f32.mxu0 0.0
      %4567 = vmatmul.mubr.f32.gmra.mrb[0].mxu0 %v4401
      %v4568 = vpop.f32.mrb[0].mxu0
      %v4569 = vadd.f32 0.0, %v4568
      %v4570 = vpop.f32.mrb[0].mxu0
      %4571 = vmatprep.mubr.f32.mxu0 0.0
      %4572 = vmatmul.mubr.f32.gmra.mrb[0].mxu0 %v4402
      %v4573 = vpop.f32.mrb[0].mxu0
      %v4574 = vadd.f32 0.0, %v4573
      %v4575 = vpop.f32.mrb[0].mxu0
      %4576 = vmatprep.mubr.f32.mxu0 0.0
      %4577 = vmatmul.mubr.f32.gmra.mrb[0].mxu0 %v4403
      %v4578 = vpop.f32.mrb[0].mxu0
      %v4579 = vadd.f32 0.0, %v4578
      %v4580 = vpop.f32.mrb[0].mxu0
      %4581 = vmatprep.mubr.f32.mxu0 0.0
      %4582 = vmatmul.mubr.f32.gmra.mrb[0].mxu0 %v4404
      %v4583 = vpop.f32.mrb[0].mxu0
      %v4584 = vadd.f32 0.0, %v4583
      %v4585 = vpop.f32.mrb[0].mxu0
      %4586 = vmatprep.mubr.f32.mxu0 0.0
      %4587 = vmatmul.mubr.f32.gmra.mrb[0].mxu0 %v4405
      %v4588 = vpop.f32.mrb[0].mxu0
      %v4589 = vadd.f32 0.0, %v4588
      %v4590 = vpop.f32.mrb[0].mxu0
      %4591 = vmatprep.mubr.f32.mxu0 0.0
      %4592 = vmatmul.mubr.f32.gmra.mrb[0].mxu0 %v4406
      %v4593 = vpop.f32.mrb[0].mxu0
      %v4594 = vadd.f32 0.0, %v4593
      %v4595 = vpop.f32.mrb[0].mxu0
      %4596 = vmatprep.mubr.f32.mxu0 0.0
      %4597 = vmatmul.mubr.f32.gmra.mrb[0].mxu0 %v4407
      %v4598 = vpop.f32.mrb[0].mxu0
      %v4599 = vadd.f32 0.0, %v4598
      %v4600 = vpop.f32.mrb[0].mxu0
      %4601 = vmatprep.mubr.f32.mxu0 0.0
      %4602 = vmatmul.mubr.f32.gmra.mrb[0].mxu0 %v4408
      %v4603 = vpop.f32.mrb[0].mxu0
      %v4604 = vadd.f32 0.0, %v4603
      %v4605 = vpop.f32.mrb[0].mxu0
      %4606 = vmatprep.mubr.f32.mxu0 0.0
      %4607 = vmatmul.mubr.f32.gmra.mrb[0].mxu0 %v4409
      %v4608 = vpop.f32.mrb[0].mxu0
      %v4609 = vadd.f32 0.0, %v4608
      %v4610 = vpop.f32.mrb[0].mxu0
      %4611 = vmatprep.mubr.f32.mxu0 0.0
      %4612 = vmatmul.mubr.f32.gmra.mrb[0].mxu0 %v4410
      %v4613 = vpop.f32.mrb[0].mxu0
      %v4614 = vadd.f32 0.0, %v4613
      %v4615 = vpop.f32.mrb[0].mxu0
      %4616 = vmatprep.mubr.f32.mxu0 0.0
      %4617 = vmatmul.mubr.f32.gmra.mrb[0].mxu0 %v4411
      %v4618 = vpop.f32.mrb[0].mxu0
      %v4619 = vadd.f32 0.0, %v4618
      %v4620 = vpop.f32.mrb[0].mxu0
      %4621 = vmatprep.mubr.f32.mxu0 0.0
      %4622 = vmatmul.mubr.f32.gmra.mrb[0].mxu0 %v4412
      %v4623 = vpop.f32.mrb[0].mxu0
      %v4624 = vadd.f32 0.0, %v4623
      %v4625 = vpop.f32.mrb[0].mxu0
      %4626 = vmatprep.mubr.f32.mxu0 0.0
      %4627 = vmatmul.mubr.f32.gmra.mrb[0].mxu0 %v4413
      %v4628 = vpop.f32.mrb[0].mxu0
      %v4629 = vadd.f32 0.0, %v4628
      %v4630 = vpop.f32.mrb[0].mxu0
      %4631 = vmatprep.mubr.f32.mxu0 0.0
      %4632 = vmatmul.mubr.f32.gmra.mrb[0].mxu0 %v4414
      %v4633 = vpop.f32.mrb[0].mxu0
      %v4634 = vadd.f32 0.0, %v4633
      %v4635 = vpop.f32.mrb[0].mxu0
      %4636 = vmatprep.mubr.f32.mxu0 0.0
      %4637 = vmatmul.mubr.f32.gmra.mrb[0].mxu0 %v4415
      %v4638 = vpop.f32.mrb[0].mxu0
      %v4639 = vadd.f32 0.0, %v4638
      %v4640 = vpop.f32.mrb[0].mxu0
      %4641 = vmatprep.mubr.f32.mxu0 0.0
      %4642 = vmatmul.mubr.f32.gmra.mrb[0].mxu0 %v4416
      %v4643 = vpop.f32.mrb[0].mxu0
      %v4644 = vadd.f32 0.0, %v4643
      %v4645 = vpop.f32.mrb[0].mxu0
      %4646 = vmatprep.mubr.f32.mxu0 0.0
      %4647 = vmatmul.mubr.f32.gmra.mrb[0].mxu0 %v4417
      %v4648 = vpop.f32.mrb[0].mxu0
      %v4649 = vadd.f32 0.0, %v4648
      %v4650 = vpop.f32.mrb[0].mxu0
      %4651 = vmatprep.mubr.f32.mxu0 0.0
      %4652 = vmatmul.mubr.f32.gmra.mrb[0].mxu0 %v4418
      %v4653 = vpop.f32.mrb[0].mxu0
      %v4654 = vadd.f32 0.0, %v4653
      %v4655 = vpop.f32.mrb[0].mxu0
      %4656 = vmatprep.mubr.f32.mxu0 0.0
      %4657 = vmatmul.mubr.f32.gmra.mrb[0].mxu0 %v4419
      %v4658 = vpop.f32.mrb[0].mxu0
      %v4659 = vadd.f32 0.0, %v4658
      %v4660 = vpop.f32.mrb[0].mxu0
      %4661 = vdwg.mxu0
      %v4662 = vadd.f32 %v4356, %v4504
      %v4663 = vadd.f32 %v4357, %v4509
      %v4664 = vadd.f32 %v4358, %v4514
      %v4665 = vadd.f32 %v4359, %v4519
      %v4666 = vadd.f32 %v4360, %v4524
      %v4667 = vadd.f32 %v4361, %v4529
      %v4668 = vadd.f32 %v4362, %v4534
      %v4669 = vadd.f32 %v4363, %v4539
      %v4670 = vadd.f32 %v4364, %v4544
      %v4671 = vadd.f32 %v4365, %v4549
      %v4672 = vadd.f32 %v4366, %v4554
      %v4673 = vadd.f32 %v4367, %v4559
      %v4674 = vadd.f32 %v4368, %v4564
      %v4675 = vadd.f32 %v4369, %v4569
      %v4676 = vadd.f32 %v4370, %v4574
      %v4677 = vadd.f32 %v4371, %v4579
      %v4678 = vadd.f32 %v4372, %v4584
      %v4679 = vadd.f32 %v4373, %v4589
      %v4680 = vadd.f32 %v4374, %v4594
      %v4681 = vadd.f32 %v4375, %v4599
      %v4682 = vadd.f32 %v4376, %v4604
      %v4683 = vadd.f32 %v4377, %v4609
      %v4684 = vadd.f32 %v4378, %v4614
      %v4685 = vadd.f32 %v4379, %v4619
      %v4686 = vadd.f32 %v4380, %v4624
      %v4687 = vadd.f32 %v4381, %v4629
      %v4688 = vadd.f32 %v4382, %v4634
      %v4689 = vadd.f32 %v4383, %v4639
      %v4690 = vadd.f32 %v4384, %v4644
      %v4691 = vadd.f32 %v4385, %v4649
      %v4692 = vadd.f32 %v4386, %v4654
      %v4693 = vadd.f32 %v4387, %v4659
      %v4694 = vld [vmem:[%s4] sm:$0x1]
      %v4696 = vlaneseq
      %v4697 = vshrl.u32 %v4696, 7
      %v4698 = vsub.s32 0, %v4697
      %v4699 = vrot.slane %v4694, %v4698
      %v4701 = vadd.f32 %v4662, %v4699
      %v4702 = vadd.f32 %v4663, %v4699
      %v4703 = vadd.f32 %v4664, %v4699
      %v4704 = vadd.f32 %v4665, %v4699
      %v4705 = vadd.f32 %v4666, %v4699
      %v4706 = vadd.f32 %v4667, %v4699
      %v4707 = vadd.f32 %v4668, %v4699
      %v4708 = vadd.f32 %v4669, %v4699
      %v4709 = vadd.f32 %v4670, %v4699
      %v4710 = vadd.f32 %v4671, %v4699
      %v4711 = vadd.f32 %v4672, %v4699
      %v4712 = vadd.f32 %v4673, %v4699
      %v4713 = vadd.f32 %v4674, %v4699
      %v4714 = vadd.f32 %v4675, %v4699
      %v4715 = vadd.f32 %v4676, %v4699
      %v4716 = vadd.f32 %v4677, %v4699
      %v4717 = vadd.f32 %v4678, %v4699
      %v4718 = vadd.f32 %v4679, %v4699
      %v4719 = vadd.f32 %v4680, %v4699
      %v4720 = vadd.f32 %v4681, %v4699
      %v4721 = vadd.f32 %v4682, %v4699
      %v4722 = vadd.f32 %v4683, %v4699
      %v4723 = vadd.f32 %v4684, %v4699
      %v4724 = vadd.f32 %v4685, %v4699
      %v4725 = vadd.f32 %v4686, %v4699
      %v4726 = vadd.f32 %v4687, %v4699
      %v4727 = vadd.f32 %v4688, %v4699
      %v4728 = vadd.f32 %v4689, %v4699
      %v4729 = vadd.f32 %v4690, %v4699
      %v4730 = vadd.f32 %v4691, %v4699
      %v4731 = vadd.f32 %v4692, %v4699
      %v4732 = vadd.f32 %v4693, %v4699
      %v4733 = vmax.f32 %v4701, 0.0
      %v4734 = vmax.f32 %v4702, 0.0
      %v4735 = vmax.f32 %v4703, 0.0
      %v4736 = vmax.f32 %v4704, 0.0
      %v4737 = vmax.f32 %v4705, 0.0
      %v4738 = vmax.f32 %v4706, 0.0
      %v4739 = vmax.f32 %v4707, 0.0
      %v4740 = vmax.f32 %v4708, 0.0
      %v4741 = vmax.f32 %v4709, 0.0
      %v4742 = vmax.f32 %v4710, 0.0
      %v4743 = vmax.f32 %v4711, 0.0
      %v4744 = vmax.f32 %v4712, 0.0
      %v4745 = vmax.f32 %v4713, 0.0
      %v4746 = vmax.f32 %v4714, 0.0
      %v4747 = vmax.f32 %v4715, 0.0
      %v4748 = vmax.f32 %v4716, 0.0
      %v4749 = vmax.f32 %v4717, 0.0
      %v4750 = vmax.f32 %v4718, 0.0
      %v4751 = vmax.f32 %v4719, 0.0
      %v4752 = vmax.f32 %v4720, 0.0
      %v4753 = vmax.f32 %v4721, 0.0
      %v4754 = vmax.f32 %v4722, 0.0
      %v4755 = vmax.f32 %v4723, 0.0
      %v4756 = vmax.f32 %v4724, 0.0
      %v4757 = vmax.f32 %v4725, 0.0
      %v4758 = vmax.f32 %v4726, 0.0
      %v4759 = vmax.f32 %v4727, 0.0
      %v4760 = vmax.f32 %v4728, 0.0
      %v4761 = vmax.f32 %v4729, 0.0
      %v4762 = vmax.f32 %v4730, 0.0
      %v4763 = vmax.f32 %v4731, 0.0
      %v4764 = vmax.f32 %v4732, 0.0
      %4765 = vst [vmem:[%s224] sm:$0xff] %v4733
      %4766 = vst [vmem:[%s224 + $0x8] sm:$0xff] %v4734
      %4767 = vst [vmem:[%s224 + $0x10] sm:$0xff] %v4735
      %4768 = vst [vmem:[%s224 + $0x18] sm:$0xff] %v4736
      %4769 = vst [vmem:[%s224 + $0x20] sm:$0xff] %v4737
      %4770 = vst [vmem:[%s224 + $0x28] sm:$0xff] %v4738
      %4771 = vst [vmem:[%s224 + $0x30] sm:$0xff] %v4739
      %4772 = vst [vmem:[%s224 + $0x38] sm:$0xff] %v4740
      %4773 = vst [vmem:[%s224 + $0x40] sm:$0xff] %v4741
      %4774 = vst [vmem:[%s224 + $0x48] sm:$0xff] %v4742
      %4775 = vst [vmem:[%s224 + $0x50] sm:$0xff] %v4743
      %4776 = vst [vmem:[%s224 + $0x58] sm:$0xff] %v4744
      %4777 = vst [vmem:[%s224 + $0x60] sm:$0xff] %v4745
      %4778 = vst [vmem:[%s224 + $0x68] sm:$0xff] %v4746
      %4779 = vst [vmem:[%s224 + $0x70] sm:$0xff] %v4747
      %4780 = vst [vmem:[%s224 + $0x78] sm:$0xff] %v4748
      %4781 = vst [vmem:[%s224 + $0x80] sm:$0xff] %v4749
      %4782 = vst [vmem:[%s224 + $0x88] sm:$0xff] %v4750
      %4783 = vst [vmem:[%s224 + $0x90] sm:$0xff] %v4751
      %4784 = vst [vmem:[%s224 + $0x98] sm:$0xff] %v4752
      %4785 = vst [vmem:[%s224 + $0xa0] sm:$0xff] %v4753
      %4786 = vst [vmem:[%s224 + $0xa8] sm:$0xff] %v4754
      %4787 = vst [vmem:[%s224 + $0xb0] sm:$0xff] %v4755
      %4788 = vst [vmem:[%s224 + $0xb8] sm:$0xff] %v4756
      %4789 = vst [vmem:[%s224 + $0xc0] sm:$0xff] %v4757
      %4790 = vst [vmem:[%s224 + $0xc8] sm:$0xff] %v4758
      %4791 = vst [vmem:[%s224 + $0xd0] sm:$0xff] %v4759
      %4792 = vst [vmem:[%s224 + $0xd8] sm:$0xff] %v4760
      %4793 = vst [vmem:[%s224 + $0xe0] sm:$0xff] %v4761
      %4794 = vst [vmem:[%s224 + $0xe8] sm:$0xff] %v4762
      %4795 = vst [vmem:[%s224 + $0xf0] sm:$0xff] %v4763
      %4796 = vst [vmem:[%s224 + $0xf8] sm:$0xff] %v4764
      %p4797 = scmp.lt.s32.totalorder %s16, 1
      %s4798 = scalar_select %p4797, %s16, 1
      %s4799 = smul.addr %s4798, 32
      %s4800 = smul.addr %s4799, 8
      %s4801 = scalar_lea.vmem %s5, %s4800
      // Predicated region
      $region41: #{conv_relu2_forward.1} parent=39 // pred_check
        %p4802 = pneg %p144
      $region42: #{conv_relu2_forward.1} parent=39 // pred_check_branch
        %4804 = sbr.rel (%p4802) target = $region44
      $region43: #{conv_relu2_forward.1} parent=39 // pred_region
        _
      $region44: #{conv_relu2_forward.1} parent=39 // pred_fallthru
        _
    $region40: #{conv_relu2_forward.1} parent=5 // pred_fallthru
      _
    %p4805 = scmp.le.s32.totalorder 2, %s11
    // Predicated region
    $region45: #{conv_relu2_forward.1} parent=5 // pred_check
      %p4806 = pneg %p4805
    $region46: #{conv_relu2_forward.1} parent=5 // pred_check_branch
      %4808 = sbr.rel (%p4806) target = $region48
    $region47: #{conv_relu2_forward.1} parent=5 // pred_region
      %s4809 = ssub.s32 %s11, 2
      // Predicated region
      $region49: #{conv_relu2_forward.1} parent=47 // pred_check
        %p4810 = pneg %p150
      $region50: #{conv_relu2_forward.1} parent=47 // pred_check_branch
        %4812 = sbr.rel (%p4810) target = $region52
      $region51: #{conv_relu2_forward.1} parent=47 // pred_region
        %p4813 = scmp.lt.s32.totalorder %s17, 1
        %s4814 = scalar_select %p4813, %s17, 1
        %s4815 = smul.addr %s4814, 32
        %s4816 = smul.addr %s4815, 8
        %s4817 = scalar_lea.vmem %s5, %s4816
      $region52: #{conv_relu2_forward.1} parent=47 // pred_fallthru
        _
    $region48: #{conv_relu2_forward.1} parent=5 // pred_fallthru
      _
  $region6: #{conv_relu2_forward.1} parent=0 // loop_footer
    %s15 = sadd.s32 1, %s11
  $region7: #{conv_relu2_forward.1} parent=0 // loop_footer_branch
    %10 = sbr.rel target = $region3
  $region8: #{conv_relu2_forward.1} parent=0 // loop_exit
    _

</llo_original>
